<compile_context>
chip_gen: v6e
topology: v6e:2x2x1
jax: 0.10.0
libtpu: 0.0.40
codegen_flags: <defaults>
</compile_context>

<pallas_src>
import functools
import math

import jax
import jax.numpy as jnp
from jax import lax
from jax.experimental import pallas as pl
from jax.experimental.pallas import tpu as pltpu

# ---------------- model config (small, StableLM / GPT-NeoX style) ----------------
VOCAB = 64
HIDDEN = 32
HEADS = 4
HEAD_DIM = HIDDEN // HEADS               # 8
LAYERS = 2
INTERMEDIATE = 4 * HIDDEN                # 128
ROTARY_PCT = 0.25
ROTARY_DIM = int(HEAD_DIM * ROTARY_PCT)  # 2 (partial rotary, NeoX style)
EPS = 1e-5

LANE = 128
DP = ((HIDDEN + LANE - 1) // LANE) * LANE        # padded hidden  -> 128
IP = ((INTERMEDIATE + LANE - 1) // LANE) * LANE  # padded interm. -> 128
VP = ((VOCAB + LANE - 1) // LANE) * LANE         # padded vocab   -> 128
NEG_INF = -1e9                                   # finite in f32 (scores are f32)

WCOLS_PER_LAYER = 6 * DP     # [ w_qkv (3*DP) | w_o (DP) | w_fc1 (IP) | w_fc2 (DP) ]
VROWS_PER_LAYER = 8          # [ b_qkv, ln1_g, ln1_b, ln2_g, ln2_b, b_o, b_fc1, b_fc2 ]
VW = 3 * DP                  # width of the vector slab (b_qkv is the widest row)


# ------------------------------- in-kernel helpers --------------------------------
def _layernorm(x, g, b, d_true):
    """LayerNorm over the first `d_true` lanes of a zero-padded (rows, DP) f32 block.

    Padded lanes of x are zero on entry; gamma/beta are zero-padded so padded lanes of the
    output stay zero.
    """
    mean = jnp.sum(x, axis=-1, keepdims=True) * (1.0 / d_true)
    c = x - mean
    col = lax.broadcasted_iota(jnp.int32, x.shape, x.ndim - 1)
    cm = jnp.where(col < d_true, c, 0.0)
    var = jnp.sum(cm * cm, axis=-1, keepdims=True) * (1.0 / d_true)
    return c * lax.rsqrt(var + EPS) * g + b


def _bf16(x):
    return x.astype(jnp.bfloat16)


# ------------------------------ fully fused model kernel --------------------------
def _model_kernel(h_ref, mask_ref, cs_ref, rot_ref, wslab_ref, vslab_ref,
                  finv_ref, wout_ref, o_ref):
    S = h_ref.shape[1]
    h = h_ref[0]                               # (S, DP) f32, padded lanes = 0
    cos = cs_ref[0]                            # (S, DP) f32
    sin = cs_ref[1]                            # (S, DP) f32
    rot = rot_ref[...]                         # (DP, DP) bf16 (rotate-half mix matrix)

    # Causal + padding additive bias built in-kernel (no (B,S,S) DMA stream).
    row = lax.broadcasted_iota(jnp.int32, (S, S), 0)
    col = lax.broadcasted_iota(jnp.int32, (S, S), 1)
    colmask = mask_ref[0][:, 0:S] > 0.5                          # (1, S) key-padding mask
    bias = jnp.where(jnp.logical_and(col <= row, colmask), 0.0, NEG_INF)  # (S, S) f32

    # Per-head lane-selection masks (constants, hoisted out of the layer loop).
    lane = lax.broadcasted_iota(jnp.int32, (1, DP), 1)
    head_masks = [
        jnp.where(jnp.logical_and(lane >= hh * HEAD_DIM, lane < (hh + 1) * HEAD_DIM),
                  1.0, 0.0).astype(jnp.bfloat16)
        for hh in range(HEADS)
    ]

    scale = 1.0 / math.sqrt(HEAD_DIM)

    for l in range(LAYERS):                    # static unroll over layers
        c0 = l * WCOLS_PER_LAYER
        wqkv = wslab_ref[:, c0:c0 + 3 * DP]            # (DP, 3*DP) bf16
        wo = wslab_ref[:, c0 + 3 * DP:c0 + 4 * DP]     # (DP, DP)   bf16
        wfc1 = wslab_ref[:, c0 + 4 * DP:c0 + 5 * DP]   # (DP, IP)   bf16
        wfc2 = wslab_ref[:, c0 + 5 * DP:c0 + 6 * DP]   # (IP, DP)   bf16

        vec = vslab_ref[l * VROWS_PER_LAYER:(l + 1) * VROWS_PER_LAYER, :]  # (8, 3*DP) f32
        b_qkv = vec[0:1, :]
        ln1g, ln1b = vec[1:2, 0:DP], vec[2:3, 0:DP]
        ln2g, ln2b = vec[3:4, 0:DP], vec[4:5, 0:DP]
        b_o = vec[5:6, 0:DP]
        b_fc1 = vec[6:7, 0:IP]
        b_fc2 = vec[7:8, 0:DP]

        # ---- attention branch: LN1 -> QKV -> rotary -> masked softmax -> out-proj ----
        ln1 = _layernorm(h, ln1g, ln1b, HIDDEN)
        qkv = jnp.dot(_bf16(ln1), wqkv, preferred_element_type=jnp.float32) + b_qkv
        q = qkv[:, 0:DP]
        k = qkv[:, DP:2 * DP]
        v = qkv[:, 2 * DP:3 * DP]

        # NeoX partial rotary folded into a VPU multiply + tiny MXU matmul (MXU is idle here).
        q = q * cos + jnp.dot(_bf16(q), rot, preferred_element_type=jnp.float32) * sin
        k = k * cos + jnp.dot(_bf16(k), rot, preferred_element_type=jnp.float32) * sin

        qb = _bf16(q)      # cast once; reused by every head
        kb = _bf16(k)
        vb = _bf16(v)

        # Per-head attention via lane-selection masks: no sub-vreg slices, no concat.
        ctx = jnp.zeros((S, DP), jnp.float32)
        for hm in head_masks:
            s = lax.dot_general(qb * hm, kb, (((1,), (1,)), ((), ())),
                                preferred_element_type=jnp.float32) * scale + bias
            m = jnp.max(s, axis=-1, keepdims=True)
            p = jnp.exp(s - m)
            p = p * pl.reciprocal(jnp.sum(p, axis=-1, keepdims=True), approx=True)
            ctx = ctx + jnp.dot(_bf16(p), vb * hm, preferred_element_type=jnp.float32)

        attn_out = jnp.dot(_bf16(ctx), wo, preferred_element_type=jnp.float32) + b_o

        # ---- MLP branch on the *input* hidden state (parallel residual) ----
        ln2 = _layernorm(h, ln2g, ln2b, HIDDEN)
        a1 = jnp.dot(_bf16(ln2), wfc1, preferred_element_type=jnp.float32) + b_fc1
        a1 = jax.nn.gelu(a1)   # tanh approx; use approximate=False for bit-exact HF erf GELU
        mlp_out = jnp.dot(_bf16(a1), wfc2, preferred_element_type=jnp.float32) + b_fc2

        # GPT-NeoX / StableLM-Alpha parallel residual
        h = h + attn_out + mlp_out

    # ---- final LN + lm_head, fused into the same kernel ----
    y = _layernorm(h, finv_ref[0:1, :], finv_ref[1:2, :], HIDDEN)
    logits = jnp.dot(_bf16(y), wout_ref[...], preferred_element_type=jnp.float32)
    o_ref[0] = logits.astype(o_ref.dtype)


# ------------------------------ plain-JAX glue / params ---------------------------
def rotary_tables(seq_len):
    """Stacked (2, S, DP) cos/sin tables: rotary on the first ROTARY_DIM dims of each head,
    identity (cos=1, sin=0) elsewhere (and on padded lanes)."""
    inv_freq = 1.0 / (10000.0 ** (jnp.arange(0, ROTARY_DIM, 2, dtype=jnp.float32)
                                  / ROTARY_DIM))
    t = jnp.arange(seq_len, dtype=jnp.float32)
    freqs = jnp.outer(t, inv_freq)                       # (S, ROTARY_DIM//2)
    emb = jnp.concatenate([freqs, freqs], axis=-1)       # (S, ROTARY_DIM)
    cos_rd, sin_rd = jnp.cos(emb), jnp.sin(emb)
    cos_full = jnp.ones((seq_len, DP), jnp.float32)
    sin_full = jnp.zeros((seq_len, DP), jnp.float32)
    for hh in range(HEADS):
        base = hh * HEAD_DIM
        cos_full = cos_full.at[:, base:base + ROTARY_DIM].set(cos_rd)
        sin_full = sin_full.at[:, base:base + ROTARY_DIM].set(sin_rd)
    return jnp.stack([cos_full, sin_full])               # (2, S, DP)


def rotary_mix_matrix():
    """Constant (DP, DP) matrix R with (x @ R) == NeoX rotate_half(x) on the rotary dims of
    every head (zero elsewhere).  Fine at this size (MXU idle); don't grow this pattern."""
    half = ROTARY_DIM // 2
    rot = jnp.zeros((DP, DP), jnp.float32)
    for hh in range(HEADS):
        base = hh * HEAD_DIM
        for j in range(half):
            rot = rot.at[base + half + j, base + j].set(-1.0)
            rot = rot.at[base + j, base + half + j].set(1.0)
    return rot.astype(jnp.bfloat16)


def init_params(key):
    keys = iter(jax.random.split(key, 8 * LAYERS + 8))

    def nrm(shape, scale=0.02):
        return scale * jax.random.normal(next(keys), shape, jnp.float32)

    params = {
        "wte": nrm((VOCAB, HIDDEN)),
        "layers": [],
        "lnf_g": jnp.ones((HIDDEN,), jnp.float32),
        "lnf_b": jnp.zeros((HIDDEN,), jnp.float32),
        "w_out": nrm((HIDDEN, VOCAB)),   # embed_out / lm_head (no bias)
    }
    for _ in range(LAYERS):
        params["layers"].append({
            "ln1_g": jnp.ones((HIDDEN,), jnp.float32),
            "ln1_b": jnp.zeros((HIDDEN,), jnp.float32),
            "ln2_g": jnp.ones((HIDDEN,), jnp.float32),
            "ln2_b": jnp.zeros((HIDDEN,), jnp.float32),
            "w_qkv": nrm((HIDDEN, 3 * HIDDEN)),
            "b_qkv": jnp.zeros((3 * HIDDEN,), jnp.float32),
            "w_o": nrm((HIDDEN, HIDDEN)),
            "b_o": jnp.zeros((HIDDEN,), jnp.float32),
            "w_fc1": nrm((HIDDEN, INTERMEDIATE)),
            "b_fc1": jnp.zeros((INTERMEDIATE,), jnp.float32),
            "w_fc2": nrm((INTERMEDIATE, HIDDEN)),
            "b_fc2": jnp.zeros((HIDDEN,), jnp.float32),
        })
    return params


def _pad2(x, rows, cols):
    return jnp.pad(x, ((0, rows - x.shape[0]), (0, cols - x.shape[1])))


def _pad1(v, n):
    return jnp.pad(v, (0, n - v.shape[0]))


def pack_params(p):
    """Zero-pad to lane-dense (128-aligned) layouts and collapse per-layer params into
    two slabs: one bf16 matmul-weight slab and one f32 vector slab."""
    w_cols, v_rows = [], []
    for lyr in p["layers"]:
        wq, wk, wv = jnp.split(lyr["w_qkv"], 3, axis=1)
        bq, bk, bv = jnp.split(lyr["b_qkv"], 3)
        wqkv = jnp.concatenate(
            [_pad2(wq, DP, DP), _pad2(wk, DP, DP), _pad2(wv, DP, DP)], axis=1)  # (DP, 3*DP)
        w_cols.append(jnp.concatenate([
            wqkv,
            _pad2(lyr["w_o"], DP, DP),
            _pad2(lyr["w_fc1"], DP, IP),
            _pad2(lyr["w_fc2"], IP, DP),
        ], axis=1))                                                             # (DP, 6*DP)
        b_qkv = jnp.concatenate([_pad1(bq, DP), _pad1(bk, DP), _pad1(bv, DP)])  # (3*DP,)
        v_rows.append(jnp.stack([
            b_qkv,
            _pad1(lyr["ln1_g"], VW), _pad1(lyr["ln1_b"], VW),
            _pad1(lyr["ln2_g"], VW), _pad1(lyr["ln2_b"], VW),
            _pad1(lyr["b_o"], VW), _pad1(lyr["b_fc1"], VW), _pad1(lyr["b_fc2"], VW),
        ]))                                                                     # (8, 3*DP)
    return {
        "wte": _pad2(p["wte"], VOCAB, DP),                        # f32 gather table
        "wslab": jnp.concatenate(w_cols, axis=1).astype(jnp.bfloat16),  # (DP, LAYERS*6*DP)
        "vslab": jnp.concatenate(v_rows, axis=0),                       # (LAYERS*8, 3*DP) f32
        "finv": jnp.stack([_pad1(p["lnf_g"], DP), _pad1(p["lnf_b"], DP)]),  # (2, DP) f32
        "w_out": _pad2(p["w_out"], DP, VP).astype(jnp.bfloat16),        # (DP, VP)
    }


def stablelm_forward(packed, input_ids, attention_mask):
    """Returns logits of shape (B, S, VOCAB), matching `output.logits` in PyTorch."""
    B, S = input_ids.shape
    # TODO(synk): token-embedding gather kept in plain JAX (data-dependent gather, not a tiled hot path).
    h = packed["wte"][input_ids]                          # (B, S, DP), padded lanes = 0

    cs = rotary_tables(S)                                 # (2, S, DP)
    rot = rotary_mix_matrix()                             # (DP, DP) bf16

    # Lane-dense padding-mask vector; causal+padding bias is rebuilt in-kernel.
    mask_p = jnp.zeros((B, 1, LANE), jnp.float32)
    mask_p = mask_p.at[:, 0, :S].set(attention_mask.astype(jnp.float32))

    logits_p = pl.pallas_call(
        _model_kernel,
        out_shape=jax.ShapeDtypeStruct((B, S, VP), jnp.float32),
        grid=(B,),
        in_specs=[
            pl.BlockSpec((1, S, DP), lambda b: (b, 0, 0)),                       # h
            pl.BlockSpec((1, 1, LANE), lambda b: (b, 0, 0)),                     # padding mask
            pl.BlockSpec((2, S, DP), lambda b: (0, 0, 0)),                       # cos/sin
            pl.BlockSpec((DP, DP), lambda b: (0, 0)),                            # rotary mix
            pl.BlockSpec((DP, LAYERS * WCOLS_PER_LAYER), lambda b: (0, 0)),      # weight slab
            pl.BlockSpec((LAYERS * VROWS_PER_LAYER, VW), lambda b: (0, 0)),      # vector slab
            pl.BlockSpec((2, DP), lambda b: (0, 0)),                             # final LN g/b
            pl.BlockSpec((DP, VP), lambda b: (0, 0)),                            # lm_head
        ],
        out_specs=pl.BlockSpec((1, S, VP), lambda b: (b, 0, 0)),
        compiler_params=pltpu.CompilerParams(dimension_semantics=("parallel",)),
    )(h, mask_p, cs, rot, packed["wslab"], packed["vslab"], packed["finv"], packed["w_out"])
    return logits_p[:, :, :VOCAB]


# ------------------------------------ main ----------------------------------------
if __name__ == "__main__":
    key = jax.random.PRNGKey(0)
    pkey, ikey = jax.random.split(key)
    params = init_params(pkey)
    packed = pack_params(params)

    B, S = 2, 8
    input_ids = jax.random.randint(ikey, (B, S), 0, VOCAB, dtype=jnp.int32)
    # second sequence has 2 padding tokens at the end
    attention_mask = jnp.array([[1] * S, [1] * (S - 2) + [0, 0]], dtype=jnp.int32)

    fwd = jax.jit(functools.partial(stablelm_forward, packed))
    logits = fwd(input_ids, attention_mask)
    jax.block_until_ready(logits)

    assert logits.shape == (B, S, VOCAB), logits.shape
    assert logits.dtype == jnp.float32
    assert bool(jnp.all(jnp.isfinite(logits)))
    print("KERNEL_OK")
</pallas_src>

<mosaic_0001>
module attributes {stable_mosaic.version = 11 : i64} {
  func.func @_model_kernel(%arg0: i32, %arg1: memref<1x8x128xf32, #tpu.memory_space<vmem>>, %arg2: memref<1x1x128xf32, #tpu.memory_space<vmem>>, %arg3: memref<2x8x128xf32, #tpu.memory_space<vmem>>, %arg4: memref<128x128xbf16, #tpu.memory_space<vmem>>, %arg5: memref<128x1536xbf16, #tpu.memory_space<vmem>>, %arg6: memref<16x384xf32, #tpu.memory_space<vmem>>, %arg7: memref<2x128xf32, #tpu.memory_space<vmem>>, %arg8: memref<128x128xbf16, #tpu.memory_space<vmem>>, %arg9: memref<1x8x128xf32, #tpu.memory_space<vmem>>) attributes {dimension_semantics = [#tpu.dimension_semantics<parallel>], iteration_bounds = array<i64: 2>, scalar_prefetch = 0 : i64, scratch_operands = 0 : i64, tpu.core_type = #tpu.core_type<tc>, window_params = [{transform_indices = @transform_0, window_bounds = array<i64: 1, 8, 128>}, {transform_indices = @transform_1, window_bounds = array<i64: 1, 1, 128>}, {pipeline_mode = #tpu.pipeline_mode<synchronous>, transform_indices = @transform_2, window_bounds = array<i64: 2, 8, 128>}, {pipeline_mode = #tpu.pipeline_mode<synchronous>, transform_indices = @transform_3, window_bounds = array<i64: 128, 128>}, {pipeline_mode = #tpu.pipeline_mode<synchronous>, transform_indices = @transform_4, window_bounds = array<i64: 128, 1536>}, {pipeline_mode = #tpu.pipeline_mode<synchronous>, transform_indices = @transform_5, window_bounds = array<i64: 16, 384>}, {pipeline_mode = #tpu.pipeline_mode<synchronous>, transform_indices = @transform_6, window_bounds = array<i64: 2, 128>}, {pipeline_mode = #tpu.pipeline_mode<synchronous>, transform_indices = @transform_7, window_bounds = array<i64: 128, 128>}, {transform_indices = @transform_8, window_bounds = array<i64: 1, 8, 128>}]} {
    %c0 = arith.constant 0 : index
    %c0_0 = arith.constant 0 : index
    %c0_1 = arith.constant 0 : index
    %0 = vector.load %arg1[%c0, %c0_0, %c0_1] : memref<1x8x128xf32, #tpu.memory_space<vmem>>, vector<1x8x128xf32>
    %1 = vector.shape_cast %0 : vector<1x8x128xf32> to vector<8x128xf32>
    %c0_2 = arith.constant 0 : index
    %c0_3 = arith.constant 0 : index
    %c0_4 = arith.constant 0 : index
    %2 = vector.load %arg3[%c0_2, %c0_3, %c0_4] : memref<2x8x128xf32, #tpu.memory_space<vmem>>, vector<1x8x128xf32>
    %3 = vector.shape_cast %2 : vector<1x8x128xf32> to vector<8x128xf32>
    %c1 = arith.constant 1 : index
    %c0_5 = arith.constant 0 : index
    %c0_6 = arith.constant 0 : index
    %4 = vector.load %arg3[%c1, %c0_5, %c0_6] : memref<2x8x128xf32, #tpu.memory_space<vmem>>, vector<1x8x128xf32>
    %5 = vector.shape_cast %4 : vector<1x8x128xf32> to vector<8x128xf32>
    %c0_7 = arith.constant 0 : index
    %c0_8 = arith.constant 0 : index
    %6 = vector.load %arg4[%c0_7, %c0_8] : memref<128x128xbf16, #tpu.memory_space<vmem>>, vector<128x128xbf16>
    %7 = tpu.iota {dimensions = array<i32: 0>} : vector<8x8xi32>
    %8 = tpu.iota {dimensions = array<i32: 1>} : vector<8x8xi32>
    %c0_9 = arith.constant 0 : index
    %c0_10 = arith.constant 0 : index
    %c0_11 = arith.constant 0 : index
    %9 = vector.load %arg2[%c0_9, %c0_10, %c0_11] : memref<1x1x128xf32, #tpu.memory_space<vmem>>, vector<1x1x128xf32>
    %10 = vector.shape_cast %9 : vector<1x1x128xf32> to vector<1x128xf32>
    %11 = vector.extract_strided_slice %10 {offsets = [0, 0], sizes = [1, 8], strides = [1, 1]} : vector<1x128xf32> to vector<1x8xf32>
    %cst = arith.constant 5.000000e-01 : f32
    %12 = vector.broadcast %cst : f32 to vector<1x8xf32>
    %13 = arith.cmpf ogt, %11, %12 : vector<1x8xf32>
    %14 = arith.cmpi sle, %8, %7 : vector<8x8xi32>
    %15 = vector.broadcast %13 : vector<1x8xi1> to vector<8x8xi1>
    %16 = arith.andi %14, %15 : vector<8x8xi1>
    %cst_12 = arith.constant 0.000000e+00 : f32
    %cst_13 = arith.constant -1.000000e+09 : f32
    %17 = vector.broadcast %cst_12 : f32 to vector<8x8xf32>
    %18 = vector.broadcast %cst_13 : f32 to vector<8x8xf32>
    %19 = arith.select %16, %17, %18 : vector<8x8xi1>, vector<8x8xf32>
    %20 = tpu.iota {dimensions = array<i32: 1>} : vector<1x128xi32>
    %c0_i32 = arith.constant 0 : i32
    %21 = vector.broadcast %c0_i32 : i32 to vector<1x128xi32>
    %22 = arith.cmpi sge, %20, %21 : vector<1x128xi32>
    %c8_i32 = arith.constant 8 : i32
    %23 = vector.broadcast %c8_i32 : i32 to vector<1x128xi32>
    %24 = arith.cmpi slt, %20, %23 : vector<1x128xi32>
    %25 = arith.andi %22, %24 : vector<1x128xi1>
    %cst_14 = arith.constant 1.000000e+00 : f32
    %cst_15 = arith.constant 0.000000e+00 : f32
    %26 = vector.broadcast %cst_14 : f32 to vector<1x128xf32>
    %27 = vector.broadcast %cst_15 : f32 to vector<1x128xf32>
    %28 = arith.select %25, %26, %27 : vector<1x128xi1>, vector<1x128xf32>
    %29 = arith.truncf %28 : vector<1x128xf32> to vector<1x128xbf16>
    %c8_i32_16 = arith.constant 8 : i32
    %30 = vector.broadcast %c8_i32_16 : i32 to vector<1x128xi32>
    %31 = arith.cmpi sge, %20, %30 : vector<1x128xi32>
    %c16_i32 = arith.constant 16 : i32
    %32 = vector.broadcast %c16_i32 : i32 to vector<1x128xi32>
    %33 = arith.cmpi slt, %20, %32 : vector<1x128xi32>
    %34 = arith.andi %31, %33 : vector<1x128xi1>
    %cst_17 = arith.constant 1.000000e+00 : f32
    %cst_18 = arith.constant 0.000000e+00 : f32
    %35 = vector.broadcast %cst_17 : f32 to vector<1x128xf32>
    %36 = vector.broadcast %cst_18 : f32 to vector<1x128xf32>
    %37 = arith.select %34, %35, %36 : vector<1x128xi1>, vector<1x128xf32>
    %38 = arith.truncf %37 : vector<1x128xf32> to vector<1x128xbf16>
    %c16_i32_19 = arith.constant 16 : i32
    %39 = vector.broadcast %c16_i32_19 : i32 to vector<1x128xi32>
    %40 = arith.cmpi sge, %20, %39 : vector<1x128xi32>
    %c24_i32 = arith.constant 24 : i32
    %41 = vector.broadcast %c24_i32 : i32 to vector<1x128xi32>
    %42 = arith.cmpi slt, %20, %41 : vector<1x128xi32>
    %43 = arith.andi %40, %42 : vector<1x128xi1>
    %cst_20 = arith.constant 1.000000e+00 : f32
    %cst_21 = arith.constant 0.000000e+00 : f32
    %44 = vector.broadcast %cst_20 : f32 to vector<1x128xf32>
    %45 = vector.broadcast %cst_21 : f32 to vector<1x128xf32>
    %46 = arith.select %43, %44, %45 : vector<1x128xi1>, vector<1x128xf32>
    %47 = arith.truncf %46 : vector<1x128xf32> to vector<1x128xbf16>
    %c24_i32_22 = arith.constant 24 : i32
    %48 = vector.broadcast %c24_i32_22 : i32 to vector<1x128xi32>
    %49 = arith.cmpi sge, %20, %48 : vector<1x128xi32>
    %c32_i32 = arith.constant 32 : i32
    %50 = vector.broadcast %c32_i32 : i32 to vector<1x128xi32>
    %51 = arith.cmpi slt, %20, %50 : vector<1x128xi32>
    %52 = arith.andi %49, %51 : vector<1x128xi1>
    %cst_23 = arith.constant 1.000000e+00 : f32
    %cst_24 = arith.constant 0.000000e+00 : f32
    %53 = vector.broadcast %cst_23 : f32 to vector<1x128xf32>
    %54 = vector.broadcast %cst_24 : f32 to vector<1x128xf32>
    %55 = arith.select %52, %53, %54 : vector<1x128xi1>, vector<1x128xf32>
    %56 = arith.truncf %55 : vector<1x128xf32> to vector<1x128xbf16>
    %c0_25 = arith.constant 0 : index
    %c0_26 = arith.constant 0 : index
    %57 = vector.load %arg5[%c0_25, %c0_26] : memref<128x1536xbf16, #tpu.memory_space<vmem>>, vector<128x384xbf16>
    %c0_27 = arith.constant 0 : index
    %c384 = arith.constant 384 : index
    %58 = vector.load %arg5[%c0_27, %c384] : memref<128x1536xbf16, #tpu.memory_space<vmem>>, vector<128x128xbf16>
    %c0_28 = arith.constant 0 : index
    %c512 = arith.constant 512 : index
    %59 = vector.load %arg5[%c0_28, %c512] : memref<128x1536xbf16, #tpu.memory_space<vmem>>, vector<128x128xbf16>
    %c0_29 = arith.constant 0 : index
    %c640 = arith.constant 640 : index
    %60 = vector.load %arg5[%c0_29, %c640] : memref<128x1536xbf16, #tpu.memory_space<vmem>>, vector<128x128xbf16>
    %c0_30 = arith.constant 0 : index
    %c0_31 = arith.constant 0 : index
    %61 = vector.load %arg6[%c0_30, %c0_31] : memref<16x384xf32, #tpu.memory_space<vmem>>, vector<8x384xf32>
    %62 = vector.extract_strided_slice %61 {offsets = [0, 0], sizes = [1, 384], strides = [1, 1]} : vector<8x384xf32> to vector<1x384xf32>
    %63 = vector.extract_strided_slice %61 {offsets = [1, 0], sizes = [1, 128], strides = [1, 1]} : vector<8x384xf32> to vector<1x128xf32>
    %64 = vector.extract_strided_slice %61 {offsets = [2, 0], sizes = [1, 128], strides = [1, 1]} : vector<8x384xf32> to vector<1x128xf32>
    %65 = vector.extract_strided_slice %61 {offsets = [3, 0], sizes = [1, 128], strides = [1, 1]} : vector<8x384xf32> to vector<1x128xf32>
    %66 = vector.extract_strided_slice %61 {offsets = [4, 0], sizes = [1, 128], strides = [1, 1]} : vector<8x384xf32> to vector<1x128xf32>
    %67 = vector.extract_strided_slice %61 {offsets = [5, 0], sizes = [1, 128], strides = [1, 1]} : vector<8x384xf32> to vector<1x128xf32>
    %68 = vector.extract_strided_slice %61 {offsets = [6, 0], sizes = [1, 128], strides = [1, 1]} : vector<8x384xf32> to vector<1x128xf32>
    %69 = vector.extract_strided_slice %61 {offsets = [7, 0], sizes = [1, 128], strides = [1, 1]} : vector<8x384xf32> to vector<1x128xf32>
    %cst_32 = arith.constant dense<0.000000e+00> : vector<8xf32>
    %70 = vector.multi_reduction <add>, %1, %cst_32 [1] : vector<8x128xf32> to vector<8xf32>
    %71 = vector.shape_cast %70 : vector<8xf32> to vector<8x1xf32>
    %cst_33 = arith.constant 3.125000e-02 : f32
    %72 = vector.broadcast %cst_33 : f32 to vector<8x1xf32>
    %73 = arith.mulf %71, %72 : vector<8x1xf32>
    %74 = vector.broadcast %73 : vector<8x1xf32> to vector<8x128xf32>
    %75 = arith.subf %1, %74 : vector<8x128xf32>
    %76 = tpu.iota {dimensions = array<i32: 1>} : vector<8x128xi32>
    %c32_i32_34 = arith.constant 32 : i32
    %77 = vector.broadcast %c32_i32_34 : i32 to vector<8x128xi32>
    %78 = arith.cmpi slt, %76, %77 : vector<8x128xi32>
    %cst_35 = arith.constant 0.000000e+00 : f32
    %79 = vector.broadcast %cst_35 : f32 to vector<8x128xf32>
    %80 = arith.select %78, %75, %79 : vector<8x128xi1>, vector<8x128xf32>
    %81 = arith.mulf %80, %80 : vector<8x128xf32>
    %cst_36 = arith.constant dense<0.000000e+00> : vector<8xf32>
    %82 = vector.multi_reduction <add>, %81, %cst_36 [1] : vector<8x128xf32> to vector<8xf32>
    %83 = vector.shape_cast %82 : vector<8xf32> to vector<8x1xf32>
    %cst_37 = arith.constant 3.125000e-02 : f32
    %84 = vector.broadcast %cst_37 : f32 to vector<8x1xf32>
    %85 = arith.mulf %83, %84 : vector<8x1xf32>
    %cst_38 = arith.constant 9.99999974E-6 : f32
    %86 = vector.broadcast %cst_38 : f32 to vector<8x1xf32>
    %87 = arith.addf %85, %86 : vector<8x1xf32>
    %88 = math.rsqrt %87 : vector<8x1xf32>
    %89 = vector.broadcast %88 : vector<8x1xf32> to vector<8x128xf32>
    %90 = arith.mulf %75, %89 : vector<8x128xf32>
    %91 = vector.broadcast %63 : vector<1x128xf32> to vector<8x128xf32>
    %92 = arith.mulf %90, %91 : vector<8x128xf32>
    %93 = vector.broadcast %64 : vector<1x128xf32> to vector<8x128xf32>
    %94 = arith.addf %92, %93 : vector<8x128xf32>
    %95 = arith.truncf %94 : vector<8x128xf32> to vector<8x128xbf16>
    %cst_39 = arith.constant dense<0.000000e+00> : vector<8x384xf32>
    %96 = tpu.matmul %95, %57, %cst_39 {dimension_numbers = #tpu.dot_dimension_numbers<[1], [0], [0], [1], [0, 0, 1, 1], [], []>} : vector<8x128xbf16>, vector<128x384xbf16>, vector<8x384xf32> -> vector<8x384xf32>
    %97 = vector.broadcast %62 : vector<1x384xf32> to vector<8x384xf32>
    %98 = arith.addf %96, %97 : vector<8x384xf32>
    %99 = vector.extract_strided_slice %98 {offsets = [0, 0], sizes = [8, 128], strides = [1, 1]} : vector<8x384xf32> to vector<8x128xf32>
    %100 = vector.extract_strided_slice %98 {offsets = [0, 128], sizes = [8, 128], strides = [1, 1]} : vector<8x384xf32> to vector<8x128xf32>
    %101 = vector.extract_strided_slice %98 {offsets = [0, 256], sizes = [8, 128], strides = [1, 1]} : vector<8x384xf32> to vector<8x128xf32>
    %102 = arith.mulf %99, %3 : vector<8x128xf32>
    %103 = arith.truncf %99 : vector<8x128xf32> to vector<8x128xbf16>
    %cst_40 = arith.constant dense<0.000000e+00> : vector<8x128xf32>
    %104 = tpu.matmul %103, %6, %cst_40 {dimension_numbers = #tpu.dot_dimension_numbers<[1], [0], [0], [1], [0, 0, 1, 1], [], []>} : vector<8x128xbf16>, vector<128x128xbf16>, vector<8x128xf32> -> vector<8x128xf32>
    %105 = arith.mulf %104, %5 : vector<8x128xf32>
    %106 = arith.addf %102, %105 : vector<8x128xf32>
    %107 = arith.mulf %100, %3 : vector<8x128xf32>
    %108 = arith.truncf %100 : vector<8x128xf32> to vector<8x128xbf16>
    %cst_41 = arith.constant dense<0.000000e+00> : vector<8x128xf32>
    %109 = tpu.matmul %108, %6, %cst_41 {dimension_numbers = #tpu.dot_dimension_numbers<[1], [0], [0], [1], [0, 0, 1, 1], [], []>} : vector<8x128xbf16>, vector<128x128xbf16>, vector<8x128xf32> -> vector<8x128xf32>
    %110 = arith.mulf %109, %5 : vector<8x128xf32>
    %111 = arith.addf %107, %110 : vector<8x128xf32>
    %112 = arith.truncf %106 : vector<8x128xf32> to vector<8x128xbf16>
    %113 = arith.truncf %111 : vector<8x128xf32> to vector<8x128xbf16>
    %114 = arith.truncf %101 : vector<8x128xf32> to vector<8x128xbf16>
    %cst_42 = arith.constant 0.000000e+00 : f32
    %115 = vector.broadcast %cst_42 : f32 to vector<8x128xf32>
    %116 = vector.broadcast %29 : vector<1x128xbf16> to vector<8x128xbf16>
    %117 = arith.mulf %112, %116 : vector<8x128xbf16>
    %cst_43 = arith.constant dense<0.000000e+00> : vector<8x8xf32>
    %118 = tpu.matmul %117, %113, %cst_43 {dimension_numbers = #tpu.dot_dimension_numbers<[1], [1], [0], [0], [0, 0, 1, 0], [], []>} : vector<8x128xbf16>, vector<8x128xbf16>, vector<8x8xf32> -> vector<8x8xf32>
    %cst_44 = arith.constant 0.353553385 : f32
    %119 = vector.broadcast %cst_44 : f32 to vector<8x8xf32>
    %120 = arith.mulf %118, %119 : vector<8x8xf32>
    %121 = arith.addf %120, %19 : vector<8x8xf32>
    %cst_45 = arith.constant dense<0xFF800000> : vector<8xf32>
    %122 = vector.multi_reduction <maximumf>, %121, %cst_45 [1] : vector<8x8xf32> to vector<8xf32>
    %123 = vector.shape_cast %122 : vector<8xf32> to vector<8x1xf32>
    %124 = vector.broadcast %123 : vector<8x1xf32> to vector<8x8xf32>
    %125 = arith.subf %121, %124 : vector<8x8xf32>
    %126 = math.exp %125 : vector<8x8xf32>
    %cst_46 = arith.constant dense<0.000000e+00> : vector<8xf32>
    %127 = vector.multi_reduction <add>, %126, %cst_46 [1] : vector<8x8xf32> to vector<8xf32>
    %128 = vector.shape_cast %127 : vector<8xf32> to vector<8x1xf32>
    %129 = tpu.reciprocal %128 {approx = true} : vector<8x1xf32> -> vector<8x1xf32>
    %130 = vector.broadcast %129 : vector<8x1xf32> to vector<8x8xf32>
    %131 = arith.mulf %126, %130 : vector<8x8xf32>
    %132 = arith.truncf %131 : vector<8x8xf32> to vector<8x8xbf16>
    %133 = vector.broadcast %29 : vector<1x128xbf16> to vector<8x128xbf16>
    %134 = arith.mulf %114, %133 : vector<8x128xbf16>
    %cst_47 = arith.constant dense<0.000000e+00> : vector<8x128xf32>
    %135 = tpu.matmul %132, %134, %cst_47 {dimension_numbers = #tpu.dot_dimension_numbers<[1], [0], [0], [1], [0, 0, 1, 1], [], []>} : vector<8x8xbf16>, vector<8x128xbf16>, vector<8x128xf32> -> vector<8x128xf32>
    %136 = arith.addf %115, %135 : vector<8x128xf32>
    %137 = vector.broadcast %38 : vector<1x128xbf16> to vector<8x128xbf16>
    %138 = arith.mulf %112, %137 : vector<8x128xbf16>
    %cst_48 = arith.constant dense<0.000000e+00> : vector<8x8xf32>
    %139 = tpu.matmul %138, %113, %cst_48 {dimension_numbers = #tpu.dot_dimension_numbers<[1], [1], [0], [0], [0, 0, 1, 0], [], []>} : vector<8x128xbf16>, vector<8x128xbf16>, vector<8x8xf32> -> vector<8x8xf32>
    %cst_49 = arith.constant 0.353553385 : f32
    %140 = vector.broadcast %cst_49 : f32 to vector<8x8xf32>
    %141 = arith.mulf %139, %140 : vector<8x8xf32>
    %142 = arith.addf %141, %19 : vector<8x8xf32>
    %cst_50 = arith.constant dense<0xFF800000> : vector<8xf32>
    %143 = vector.multi_reduction <maximumf>, %142, %cst_50 [1] : vector<8x8xf32> to vector<8xf32>
    %144 = vector.shape_cast %143 : vector<8xf32> to vector<8x1xf32>
    %145 = vector.broadcast %144 : vector<8x1xf32> to vector<8x8xf32>
    %146 = arith.subf %142, %145 : vector<8x8xf32>
    %147 = math.exp %146 : vector<8x8xf32>
    %cst_51 = arith.constant dense<0.000000e+00> : vector<8xf32>
    %148 = vector.multi_reduction <add>, %147, %cst_51 [1] : vector<8x8xf32> to vector<8xf32>
    %149 = vector.shape_cast %148 : vector<8xf32> to vector<8x1xf32>
    %150 = tpu.reciprocal %149 {approx = true} : vector<8x1xf32> -> vector<8x1xf32>
    %151 = vector.broadcast %150 : vector<8x1xf32> to vector<8x8xf32>
    %152 = arith.mulf %147, %151 : vector<8x8xf32>
    %153 = arith.truncf %152 : vector<8x8xf32> to vector<8x8xbf16>
    %154 = vector.broadcast %38 : vector<1x128xbf16> to vector<8x128xbf16>
    %155 = arith.mulf %114, %154 : vector<8x128xbf16>
    %cst_52 = arith.constant dense<0.000000e+00> : vector<8x128xf32>
    %156 = tpu.matmul %153, %155, %cst_52 {dimension_numbers = #tpu.dot_dimension_numbers<[1], [0], [0], [1], [0, 0, 1, 1], [], []>} : vector<8x8xbf16>, vector<8x128xbf16>, vector<8x128xf32> -> vector<8x128xf32>
    %157 = arith.addf %136, %156 : vector<8x128xf32>
    %158 = vector.broadcast %47 : vector<1x128xbf16> to vector<8x128xbf16>
    %159 = arith.mulf %112, %158 : vector<8x128xbf16>
    %cst_53 = arith.constant dense<0.000000e+00> : vector<8x8xf32>
    %160 = tpu.matmul %159, %113, %cst_53 {dimension_numbers = #tpu.dot_dimension_numbers<[1], [1], [0], [0], [0, 0, 1, 0], [], []>} : vector<8x128xbf16>, vector<8x128xbf16>, vector<8x8xf32> -> vector<8x8xf32>
    %cst_54 = arith.constant 0.353553385 : f32
    %161 = vector.broadcast %cst_54 : f32 to vector<8x8xf32>
    %162 = arith.mulf %160, %161 : vector<8x8xf32>
    %163 = arith.addf %162, %19 : vector<8x8xf32>
    %cst_55 = arith.constant dense<0xFF800000> : vector<8xf32>
    %164 = vector.multi_reduction <maximumf>, %163, %cst_55 [1] : vector<8x8xf32> to vector<8xf32>
    %165 = vector.shape_cast %164 : vector<8xf32> to vector<8x1xf32>
    %166 = vector.broadcast %165 : vector<8x1xf32> to vector<8x8xf32>
    %167 = arith.subf %163, %166 : vector<8x8xf32>
    %168 = math.exp %167 : vector<8x8xf32>
    %cst_56 = arith.constant dense<0.000000e+00> : vector<8xf32>
    %169 = vector.multi_reduction <add>, %168, %cst_56 [1] : vector<8x8xf32> to vector<8xf32>
    %170 = vector.shape_cast %169 : vector<8xf32> to vector<8x1xf32>
    %171 = tpu.reciprocal %170 {approx = true} : vector<8x1xf32> -> vector<8x1xf32>
    %172 = vector.broadcast %171 : vector<8x1xf32> to vector<8x8xf32>
    %173 = arith.mulf %168, %172 : vector<8x8xf32>
    %174 = arith.truncf %173 : vector<8x8xf32> to vector<8x8xbf16>
    %175 = vector.broadcast %47 : vector<1x128xbf16> to vector<8x128xbf16>
    %176 = arith.mulf %114, %175 : vector<8x128xbf16>
    %cst_57 = arith.constant dense<0.000000e+00> : vector<8x128xf32>
    %177 = tpu.matmul %174, %176, %cst_57 {dimension_numbers = #tpu.dot_dimension_numbers<[1], [0], [0], [1], [0, 0, 1, 1], [], []>} : vector<8x8xbf16>, vector<8x128xbf16>, vector<8x128xf32> -> vector<8x128xf32>
    %178 = arith.addf %157, %177 : vector<8x128xf32>
    %179 = vector.broadcast %56 : vector<1x128xbf16> to vector<8x128xbf16>
    %180 = arith.mulf %112, %179 : vector<8x128xbf16>
    %cst_58 = arith.constant dense<0.000000e+00> : vector<8x8xf32>
    %181 = tpu.matmul %180, %113, %cst_58 {dimension_numbers = #tpu.dot_dimension_numbers<[1], [1], [0], [0], [0, 0, 1, 0], [], []>} : vector<8x128xbf16>, vector<8x128xbf16>, vector<8x8xf32> -> vector<8x8xf32>
    %cst_59 = arith.constant 0.353553385 : f32
    %182 = vector.broadcast %cst_59 : f32 to vector<8x8xf32>
    %183 = arith.mulf %181, %182 : vector<8x8xf32>
    %184 = arith.addf %183, %19 : vector<8x8xf32>
    %cst_60 = arith.constant dense<0xFF800000> : vector<8xf32>
    %185 = vector.multi_reduction <maximumf>, %184, %cst_60 [1] : vector<8x8xf32> to vector<8xf32>
    %186 = vector.shape_cast %185 : vector<8xf32> to vector<8x1xf32>
    %187 = vector.broadcast %186 : vector<8x1xf32> to vector<8x8xf32>
    %188 = arith.subf %184, %187 : vector<8x8xf32>
    %189 = math.exp %188 : vector<8x8xf32>
    %cst_61 = arith.constant dense<0.000000e+00> : vector<8xf32>
    %190 = vector.multi_reduction <add>, %189, %cst_61 [1] : vector<8x8xf32> to vector<8xf32>
    %191 = vector.shape_cast %190 : vector<8xf32> to vector<8x1xf32>
    %192 = tpu.reciprocal %191 {approx = true} : vector<8x1xf32> -> vector<8x1xf32>
    %193 = vector.broadcast %192 : vector<8x1xf32> to vector<8x8xf32>
    %194 = arith.mulf %189, %193 : vector<8x8xf32>
    %195 = arith.truncf %194 : vector<8x8xf32> to vector<8x8xbf16>
    %196 = vector.broadcast %56 : vector<1x128xbf16> to vector<8x128xbf16>
    %197 = arith.mulf %114, %196 : vector<8x128xbf16>
    %cst_62 = arith.constant dense<0.000000e+00> : vector<8x128xf32>
    %198 = tpu.matmul %195, %197, %cst_62 {dimension_numbers = #tpu.dot_dimension_numbers<[1], [0], [0], [1], [0, 0, 1, 1], [], []>} : vector<8x8xbf16>, vector<8x128xbf16>, vector<8x128xf32> -> vector<8x128xf32>
    %199 = arith.addf %178, %198 : vector<8x128xf32>
    %200 = arith.truncf %199 : vector<8x128xf32> to vector<8x128xbf16>
    %cst_63 = arith.constant dense<0.000000e+00> : vector<8x128xf32>
    %201 = tpu.matmul %200, %58, %cst_63 {dimension_numbers = #tpu.dot_dimension_numbers<[1], [0], [0], [1], [0, 0, 1, 1], [], []>} : vector<8x128xbf16>, vector<128x128xbf16>, vector<8x128xf32> -> vector<8x128xf32>
    %202 = vector.broadcast %67 : vector<1x128xf32> to vector<8x128xf32>
    %203 = arith.addf %201, %202 : vector<8x128xf32>
    %cst_64 = arith.constant dense<0.000000e+00> : vector<8xf32>
    %204 = vector.multi_reduction <add>, %1, %cst_64 [1] : vector<8x128xf32> to vector<8xf32>
    %205 = vector.shape_cast %204 : vector<8xf32> to vector<8x1xf32>
    %cst_65 = arith.constant 3.125000e-02 : f32
    %206 = vector.broadcast %cst_65 : f32 to vector<8x1xf32>
    %207 = arith.mulf %205, %206 : vector<8x1xf32>
    %208 = vector.broadcast %207 : vector<8x1xf32> to vector<8x128xf32>
    %209 = arith.subf %1, %208 : vector<8x128xf32>
    %210 = tpu.iota {dimensions = array<i32: 1>} : vector<8x128xi32>
    %c32_i32_66 = arith.constant 32 : i32
    %211 = vector.broadcast %c32_i32_66 : i32 to vector<8x128xi32>
    %212 = arith.cmpi slt, %210, %211 : vector<8x128xi32>
    %cst_67 = arith.constant 0.000000e+00 : f32
    %213 = vector.broadcast %cst_67 : f32 to vector<8x128xf32>
    %214 = arith.select %212, %209, %213 : vector<8x128xi1>, vector<8x128xf32>
    %215 = arith.mulf %214, %214 : vector<8x128xf32>
    %cst_68 = arith.constant dense<0.000000e+00> : vector<8xf32>
    %216 = vector.multi_reduction <add>, %215, %cst_68 [1] : vector<8x128xf32> to vector<8xf32>
    %217 = vector.shape_cast %216 : vector<8xf32> to vector<8x1xf32>
    %cst_69 = arith.constant 3.125000e-02 : f32
    %218 = vector.broadcast %cst_69 : f32 to vector<8x1xf32>
    %219 = arith.mulf %217, %218 : vector<8x1xf32>
    %cst_70 = arith.constant 9.99999974E-6 : f32
    %220 = vector.broadcast %cst_70 : f32 to vector<8x1xf32>
    %221 = arith.addf %219, %220 : vector<8x1xf32>
    %222 = math.rsqrt %221 : vector<8x1xf32>
    %223 = vector.broadcast %222 : vector<8x1xf32> to vector<8x128xf32>
    %224 = arith.mulf %209, %223 : vector<8x128xf32>
    %225 = vector.broadcast %65 : vector<1x128xf32> to vector<8x128xf32>
    %226 = arith.mulf %224, %225 : vector<8x128xf32>
    %227 = vector.broadcast %66 : vector<1x128xf32> to vector<8x128xf32>
    %228 = arith.addf %226, %227 : vector<8x128xf32>
    %229 = arith.truncf %228 : vector<8x128xf32> to vector<8x128xbf16>
    %cst_71 = arith.constant dense<0.000000e+00> : vector<8x128xf32>
    %230 = tpu.matmul %229, %59, %cst_71 {dimension_numbers = #tpu.dot_dimension_numbers<[1], [0], [0], [1], [0, 0, 1, 1], [], []>} : vector<8x128xbf16>, vector<128x128xbf16>, vector<8x128xf32> -> vector<8x128xf32>
    %231 = vector.broadcast %68 : vector<1x128xf32> to vector<8x128xf32>
    %232 = arith.addf %230, %231 : vector<8x128xf32>
    %233 = arith.mulf %232, %232 : vector<8x128xf32>
    %234 = arith.mulf %232, %233 : vector<8x128xf32>
    %cst_72 = arith.constant 4.471500e-02 : f32
    %235 = vector.broadcast %cst_72 : f32 to vector<8x128xf32>
    %236 = arith.mulf %235, %234 : vector<8x128xf32>
    %237 = arith.addf %232, %236 : vector<8x128xf32>
    %cst_73 = arith.constant 0.797884583 : f32
    %238 = vector.broadcast %cst_73 : f32 to vector<8x128xf32>
    %239 = arith.mulf %238, %237 : vector<8x128xf32>
    %240 = math.tanh %239 : vector<8x128xf32>
    %cst_74 = arith.constant 1.000000e+00 : f32
    %241 = vector.broadcast %cst_74 : f32 to vector<8x128xf32>
    %242 = arith.addf %241, %240 : vector<8x128xf32>
    %cst_75 = arith.constant 5.000000e-01 : f32
    %243 = vector.broadcast %cst_75 : f32 to vector<8x128xf32>
    %244 = arith.mulf %243, %242 : vector<8x128xf32>
    %245 = arith.mulf %232, %244 : vector<8x128xf32>
    %246 = arith.truncf %245 : vector<8x128xf32> to vector<8x128xbf16>
    %cst_76 = arith.constant dense<0.000000e+00> : vector<8x128xf32>
    %247 = tpu.matmul %246, %60, %cst_76 {dimension_numbers = #tpu.dot_dimension_numbers<[1], [0], [0], [1], [0, 0, 1, 1], [], []>} : vector<8x128xbf16>, vector<128x128xbf16>, vector<8x128xf32> -> vector<8x128xf32>
    %248 = vector.broadcast %69 : vector<1x128xf32> to vector<8x128xf32>
    %249 = arith.addf %247, %248 : vector<8x128xf32>
    %250 = arith.addf %1, %203 : vector<8x128xf32>
    %251 = arith.addf %250, %249 : vector<8x128xf32>
    %c0_77 = arith.constant 0 : index
    %c768 = arith.constant 768 : index
    %252 = vector.load %arg5[%c0_77, %c768] : memref<128x1536xbf16, #tpu.memory_space<vmem>>, vector<128x384xbf16>
    %c0_78 = arith.constant 0 : index
    %c1152 = arith.constant 1152 : index
    %253 = vector.load %arg5[%c0_78, %c1152] : memref<128x1536xbf16, #tpu.memory_space<vmem>>, vector<128x128xbf16>
    %c0_79 = arith.constant 0 : index
    %c1280 = arith.constant 1280 : index
    %254 = vector.load %arg5[%c0_79, %c1280] : memref<128x1536xbf16, #tpu.memory_space<vmem>>, vector<128x128xbf16>
    %c0_80 = arith.constant 0 : index
    %c1408 = arith.constant 1408 : index
    %255 = vector.load %arg5[%c0_80, %c1408] : memref<128x1536xbf16, #tpu.memory_space<vmem>>, vector<128x128xbf16>
    %c8 = arith.constant 8 : index
    %c0_81 = arith.constant 0 : index
    %256 = vector.load %arg6[%c8, %c0_81] : memref<16x384xf32, #tpu.memory_space<vmem>>, vector<8x384xf32>
    %257 = vector.extract_strided_slice %256 {offsets = [0, 0], sizes = [1, 384], strides = [1, 1]} : vector<8x384xf32> to vector<1x384xf32>
    %258 = vector.extract_strided_slice %256 {offsets = [1, 0], sizes = [1, 128], strides = [1, 1]} : vector<8x384xf32> to vector<1x128xf32>
    %259 = vector.extract_strided_slice %256 {offsets = [2, 0], sizes = [1, 128], strides = [1, 1]} : vector<8x384xf32> to vector<1x128xf32>
    %260 = vector.extract_strided_slice %256 {offsets = [3, 0], sizes = [1, 128], strides = [1, 1]} : vector<8x384xf32> to vector<1x128xf32>
    %261 = vector.extract_strided_slice %256 {offsets = [4, 0], sizes = [1, 128], strides = [1, 1]} : vector<8x384xf32> to vector<1x128xf32>
    %262 = vector.extract_strided_slice %256 {offsets = [5, 0], sizes = [1, 128], strides = [1, 1]} : vector<8x384xf32> to vector<1x128xf32>
    %263 = vector.extract_strided_slice %256 {offsets = [6, 0], sizes = [1, 128], strides = [1, 1]} : vector<8x384xf32> to vector<1x128xf32>
    %264 = vector.extract_strided_slice %256 {offsets = [7, 0], sizes = [1, 128], strides = [1, 1]} : vector<8x384xf32> to vector<1x128xf32>
    %cst_82 = arith.constant dense<0.000000e+00> : vector<8xf32>
    %265 = vector.multi_reduction <add>, %251, %cst_82 [1] : vector<8x128xf32> to vector<8xf32>
    %266 = vector.shape_cast %265 : vector<8xf32> to vector<8x1xf32>
    %cst_83 = arith.constant 3.125000e-02 : f32
    %267 = vector.broadcast %cst_83 : f32 to vector<8x1xf32>
    %268 = arith.mulf %266, %267 : vector<8x1xf32>
    %269 = vector.broadcast %268 : vector<8x1xf32> to vector<8x128xf32>
    %270 = arith.subf %251, %269 : vector<8x128xf32>
    %271 = tpu.iota {dimensions = array<i32: 1>} : vector<8x128xi32>
    %c32_i32_84 = arith.constant 32 : i32
    %272 = vector.broadcast %c32_i32_84 : i32 to vector<8x128xi32>
    %273 = arith.cmpi slt, %271, %272 : vector<8x128xi32>
    %cst_85 = arith.constant 0.000000e+00 : f32
    %274 = vector.broadcast %cst_85 : f32 to vector<8x128xf32>
    %275 = arith.select %273, %270, %274 : vector<8x128xi1>, vector<8x128xf32>
    %276 = arith.mulf %275, %275 : vector<8x128xf32>
    %cst_86 = arith.constant dense<0.000000e+00> : vector<8xf32>
    %277 = vector.multi_reduction <add>, %276, %cst_86 [1] : vector<8x128xf32> to vector<8xf32>
    %278 = vector.shape_cast %277 : vector<8xf32> to vector<8x1xf32>
    %cst_87 = arith.constant 3.125000e-02 : f32
    %279 = vector.broadcast %cst_87 : f32 to vector<8x1xf32>
    %280 = arith.mulf %278, %279 : vector<8x1xf32>
    %cst_88 = arith.constant 9.99999974E-6 : f32
    %281 = vector.broadcast %cst_88 : f32 to vector<8x1xf32>
    %282 = arith.addf %280, %281 : vector<8x1xf32>
    %283 = math.rsqrt %282 : vector<8x1xf32>
    %284 = vector.broadcast %283 : vector<8x1xf32> to vector<8x128xf32>
    %285 = arith.mulf %270, %284 : vector<8x128xf32>
    %286 = vector.broadcast %258 : vector<1x128xf32> to vector<8x128xf32>
    %287 = arith.mulf %285, %286 : vector<8x128xf32>
    %288 = vector.broadcast %259 : vector<1x128xf32> to vector<8x128xf32>
    %289 = arith.addf %287, %288 : vector<8x128xf32>
    %290 = arith.truncf %289 : vector<8x128xf32> to vector<8x128xbf16>
    %cst_89 = arith.constant dense<0.000000e+00> : vector<8x384xf32>
    %291 = tpu.matmul %290, %252, %cst_89 {dimension_numbers = #tpu.dot_dimension_numbers<[1], [0], [0], [1], [0, 0, 1, 1], [], []>} : vector<8x128xbf16>, vector<128x384xbf16>, vector<8x384xf32> -> vector<8x384xf32>
    %292 = vector.broadcast %257 : vector<1x384xf32> to vector<8x384xf32>
    %293 = arith.addf %291, %292 : vector<8x384xf32>
    %294 = vector.extract_strided_slice %293 {offsets = [0, 0], sizes = [8, 128], strides = [1, 1]} : vector<8x384xf32> to vector<8x128xf32>
    %295 = vector.extract_strided_slice %293 {offsets = [0, 128], sizes = [8, 128], strides = [1, 1]} : vector<8x384xf32> to vector<8x128xf32>
    %296 = vector.extract_strided_slice %293 {offsets = [0, 256], sizes = [8, 128], strides = [1, 1]} : vector<8x384xf32> to vector<8x128xf32>
    %297 = arith.mulf %294, %3 : vector<8x128xf32>
    %298 = arith.truncf %294 : vector<8x128xf32> to vector<8x128xbf16>
    %cst_90 = arith.constant dense<0.000000e+00> : vector<8x128xf32>
    %299 = tpu.matmul %298, %6, %cst_90 {dimension_numbers = #tpu.dot_dimension_numbers<[1], [0], [0], [1], [0, 0, 1, 1], [], []>} : vector<8x128xbf16>, vector<128x128xbf16>, vector<8x128xf32> -> vector<8x128xf32>
    %300 = arith.mulf %299, %5 : vector<8x128xf32>
    %301 = arith.addf %297, %300 : vector<8x128xf32>
    %302 = arith.mulf %295, %3 : vector<8x128xf32>
    %303 = arith.truncf %295 : vector<8x128xf32> to vector<8x128xbf16>
    %cst_91 = arith.constant dense<0.000000e+00> : vector<8x128xf32>
    %304 = tpu.matmul %303, %6, %cst_91 {dimension_numbers = #tpu.dot_dimension_numbers<[1], [0], [0], [1], [0, 0, 1, 1], [], []>} : vector<8x128xbf16>, vector<128x128xbf16>, vector<8x128xf32> -> vector<8x128xf32>
    %305 = arith.mulf %304, %5 : vector<8x128xf32>
    %306 = arith.addf %302, %305 : vector<8x128xf32>
    %307 = arith.truncf %301 : vector<8x128xf32> to vector<8x128xbf16>
    %308 = arith.truncf %306 : vector<8x128xf32> to vector<8x128xbf16>
    %309 = arith.truncf %296 : vector<8x128xf32> to vector<8x128xbf16>
    %cst_92 = arith.constant 0.000000e+00 : f32
    %310 = vector.broadcast %cst_92 : f32 to vector<8x128xf32>
    %311 = vector.broadcast %29 : vector<1x128xbf16> to vector<8x128xbf16>
    %312 = arith.mulf %307, %311 : vector<8x128xbf16>
    %cst_93 = arith.constant dense<0.000000e+00> : vector<8x8xf32>
    %313 = tpu.matmul %312, %308, %cst_93 {dimension_numbers = #tpu.dot_dimension_numbers<[1], [1], [0], [0], [0, 0, 1, 0], [], []>} : vector<8x128xbf16>, vector<8x128xbf16>, vector<8x8xf32> -> vector<8x8xf32>
    %cst_94 = arith.constant 0.353553385 : f32
    %314 = vector.broadcast %cst_94 : f32 to vector<8x8xf32>
    %315 = arith.mulf %313, %314 : vector<8x8xf32>
    %316 = arith.addf %315, %19 : vector<8x8xf32>
    %cst_95 = arith.constant dense<0xFF800000> : vector<8xf32>
    %317 = vector.multi_reduction <maximumf>, %316, %cst_95 [1] : vector<8x8xf32> to vector<8xf32>
    %318 = vector.shape_cast %317 : vector<8xf32> to vector<8x1xf32>
    %319 = vector.broadcast %318 : vector<8x1xf32> to vector<8x8xf32>
    %320 = arith.subf %316, %319 : vector<8x8xf32>
    %321 = math.exp %320 : vector<8x8xf32>
    %cst_96 = arith.constant dense<0.000000e+00> : vector<8xf32>
    %322 = vector.multi_reduction <add>, %321, %cst_96 [1] : vector<8x8xf32> to vector<8xf32>
    %323 = vector.shape_cast %322 : vector<8xf32> to vector<8x1xf32>
    %324 = tpu.reciprocal %323 {approx = true} : vector<8x1xf32> -> vector<8x1xf32>
    %325 = vector.broadcast %324 : vector<8x1xf32> to vector<8x8xf32>
    %326 = arith.mulf %321, %325 : vector<8x8xf32>
    %327 = arith.truncf %326 : vector<8x8xf32> to vector<8x8xbf16>
    %328 = vector.broadcast %29 : vector<1x128xbf16> to vector<8x128xbf16>
    %329 = arith.mulf %309, %328 : vector<8x128xbf16>
    %cst_97 = arith.constant dense<0.000000e+00> : vector<8x128xf32>
    %330 = tpu.matmul %327, %329, %cst_97 {dimension_numbers = #tpu.dot_dimension_numbers<[1], [0], [0], [1], [0, 0, 1, 1], [], []>} : vector<8x8xbf16>, vector<8x128xbf16>, vector<8x128xf32> -> vector<8x128xf32>
    %331 = arith.addf %310, %330 : vector<8x128xf32>
    %332 = vector.broadcast %38 : vector<1x128xbf16> to vector<8x128xbf16>
    %333 = arith.mulf %307, %332 : vector<8x128xbf16>
    %cst_98 = arith.constant dense<0.000000e+00> : vector<8x8xf32>
    %334 = tpu.matmul %333, %308, %cst_98 {dimension_numbers = #tpu.dot_dimension_numbers<[1], [1], [0], [0], [0, 0, 1, 0], [], []>} : vector<8x128xbf16>, vector<8x128xbf16>, vector<8x8xf32> -> vector<8x8xf32>
    %cst_99 = arith.constant 0.353553385 : f32
    %335 = vector.broadcast %cst_99 : f32 to vector<8x8xf32>
    %336 = arith.mulf %334, %335 : vector<8x8xf32>
    %337 = arith.addf %336, %19 : vector<8x8xf32>
    %cst_100 = arith.constant dense<0xFF800000> : vector<8xf32>
    %338 = vector.multi_reduction <maximumf>, %337, %cst_100 [1] : vector<8x8xf32> to vector<8xf32>
    %339 = vector.shape_cast %338 : vector<8xf32> to vector<8x1xf32>
    %340 = vector.broadcast %339 : vector<8x1xf32> to vector<8x8xf32>
    %341 = arith.subf %337, %340 : vector<8x8xf32>
    %342 = math.exp %341 : vector<8x8xf32>
    %cst_101 = arith.constant dense<0.000000e+00> : vector<8xf32>
    %343 = vector.multi_reduction <add>, %342, %cst_101 [1] : vector<8x8xf32> to vector<8xf32>
    %344 = vector.shape_cast %343 : vector<8xf32> to vector<8x1xf32>
    %345 = tpu.reciprocal %344 {approx = true} : vector<8x1xf32> -> vector<8x1xf32>
    %346 = vector.broadcast %345 : vector<8x1xf32> to vector<8x8xf32>
    %347 = arith.mulf %342, %346 : vector<8x8xf32>
    %348 = arith.truncf %347 : vector<8x8xf32> to vector<8x8xbf16>
    %349 = vector.broadcast %38 : vector<1x128xbf16> to vector<8x128xbf16>
    %350 = arith.mulf %309, %349 : vector<8x128xbf16>
    %cst_102 = arith.constant dense<0.000000e+00> : vector<8x128xf32>
    %351 = tpu.matmul %348, %350, %cst_102 {dimension_numbers = #tpu.dot_dimension_numbers<[1], [0], [0], [1], [0, 0, 1, 1], [], []>} : vector<8x8xbf16>, vector<8x128xbf16>, vector<8x128xf32> -> vector<8x128xf32>
    %352 = arith.addf %331, %351 : vector<8x128xf32>
    %353 = vector.broadcast %47 : vector<1x128xbf16> to vector<8x128xbf16>
    %354 = arith.mulf %307, %353 : vector<8x128xbf16>
    %cst_103 = arith.constant dense<0.000000e+00> : vector<8x8xf32>
    %355 = tpu.matmul %354, %308, %cst_103 {dimension_numbers = #tpu.dot_dimension_numbers<[1], [1], [0], [0], [0, 0, 1, 0], [], []>} : vector<8x128xbf16>, vector<8x128xbf16>, vector<8x8xf32> -> vector<8x8xf32>
    %cst_104 = arith.constant 0.353553385 : f32
    %356 = vector.broadcast %cst_104 : f32 to vector<8x8xf32>
    %357 = arith.mulf %355, %356 : vector<8x8xf32>
    %358 = arith.addf %357, %19 : vector<8x8xf32>
    %cst_105 = arith.constant dense<0xFF800000> : vector<8xf32>
    %359 = vector.multi_reduction <maximumf>, %358, %cst_105 [1] : vector<8x8xf32> to vector<8xf32>
    %360 = vector.shape_cast %359 : vector<8xf32> to vector<8x1xf32>
    %361 = vector.broadcast %360 : vector<8x1xf32> to vector<8x8xf32>
    %362 = arith.subf %358, %361 : vector<8x8xf32>
    %363 = math.exp %362 : vector<8x8xf32>
    %cst_106 = arith.constant dense<0.000000e+00> : vector<8xf32>
    %364 = vector.multi_reduction <add>, %363, %cst_106 [1] : vector<8x8xf32> to vector<8xf32>
    %365 = vector.shape_cast %364 : vector<8xf32> to vector<8x1xf32>
    %366 = tpu.reciprocal %365 {approx = true} : vector<8x1xf32> -> vector<8x1xf32>
    %367 = vector.broadcast %366 : vector<8x1xf32> to vector<8x8xf32>
    %368 = arith.mulf %363, %367 : vector<8x8xf32>
    %369 = arith.truncf %368 : vector<8x8xf32> to vector<8x8xbf16>
    %370 = vector.broadcast %47 : vector<1x128xbf16> to vector<8x128xbf16>
    %371 = arith.mulf %309, %370 : vector<8x128xbf16>
    %cst_107 = arith.constant dense<0.000000e+00> : vector<8x128xf32>
    %372 = tpu.matmul %369, %371, %cst_107 {dimension_numbers = #tpu.dot_dimension_numbers<[1], [0], [0], [1], [0, 0, 1, 1], [], []>} : vector<8x8xbf16>, vector<8x128xbf16>, vector<8x128xf32> -> vector<8x128xf32>
    %373 = arith.addf %352, %372 : vector<8x128xf32>
    %374 = vector.broadcast %56 : vector<1x128xbf16> to vector<8x128xbf16>
    %375 = arith.mulf %307, %374 : vector<8x128xbf16>
    %cst_108 = arith.constant dense<0.000000e+00> : vector<8x8xf32>
    %376 = tpu.matmul %375, %308, %cst_108 {dimension_numbers = #tpu.dot_dimension_numbers<[1], [1], [0], [0], [0, 0, 1, 0], [], []>} : vector<8x128xbf16>, vector<8x128xbf16>, vector<8x8xf32> -> vector<8x8xf32>
    %cst_109 = arith.constant 0.353553385 : f32
    %377 = vector.broadcast %cst_109 : f32 to vector<8x8xf32>
    %378 = arith.mulf %376, %377 : vector<8x8xf32>
    %379 = arith.addf %378, %19 : vector<8x8xf32>
    %cst_110 = arith.constant dense<0xFF800000> : vector<8xf32>
    %380 = vector.multi_reduction <maximumf>, %379, %cst_110 [1] : vector<8x8xf32> to vector<8xf32>
    %381 = vector.shape_cast %380 : vector<8xf32> to vector<8x1xf32>
    %382 = vector.broadcast %381 : vector<8x1xf32> to vector<8x8xf32>
    %383 = arith.subf %379, %382 : vector<8x8xf32>
    %384 = math.exp %383 : vector<8x8xf32>
    %cst_111 = arith.constant dense<0.000000e+00> : vector<8xf32>
    %385 = vector.multi_reduction <add>, %384, %cst_111 [1] : vector<8x8xf32> to vector<8xf32>
    %386 = vector.shape_cast %385 : vector<8xf32> to vector<8x1xf32>
    %387 = tpu.reciprocal %386 {approx = true} : vector<8x1xf32> -> vector<8x1xf32>
    %388 = vector.broadcast %387 : vector<8x1xf32> to vector<8x8xf32>
    %389 = arith.mulf %384, %388 : vector<8x8xf32>
    %390 = arith.truncf %389 : vector<8x8xf32> to vector<8x8xbf16>
    %391 = vector.broadcast %56 : vector<1x128xbf16> to vector<8x128xbf16>
    %392 = arith.mulf %309, %391 : vector<8x128xbf16>
    %cst_112 = arith.constant dense<0.000000e+00> : vector<8x128xf32>
    %393 = tpu.matmul %390, %392, %cst_112 {dimension_numbers = #tpu.dot_dimension_numbers<[1], [0], [0], [1], [0, 0, 1, 1], [], []>} : vector<8x8xbf16>, vector<8x128xbf16>, vector<8x128xf32> -> vector<8x128xf32>
    %394 = arith.addf %373, %393 : vector<8x128xf32>
    %395 = arith.truncf %394 : vector<8x128xf32> to vector<8x128xbf16>
    %cst_113 = arith.constant dense<0.000000e+00> : vector<8x128xf32>
    %396 = tpu.matmul %395, %253, %cst_113 {dimension_numbers = #tpu.dot_dimension_numbers<[1], [0], [0], [1], [0, 0, 1, 1], [], []>} : vector<8x128xbf16>, vector<128x128xbf16>, vector<8x128xf32> -> vector<8x128xf32>
    %397 = vector.broadcast %262 : vector<1x128xf32> to vector<8x128xf32>
    %398 = arith.addf %396, %397 : vector<8x128xf32>
    %cst_114 = arith.constant dense<0.000000e+00> : vector<8xf32>
    %399 = vector.multi_reduction <add>, %251, %cst_114 [1] : vector<8x128xf32> to vector<8xf32>
    %400 = vector.shape_cast %399 : vector<8xf32> to vector<8x1xf32>
    %cst_115 = arith.constant 3.125000e-02 : f32
    %401 = vector.broadcast %cst_115 : f32 to vector<8x1xf32>
    %402 = arith.mulf %400, %401 : vector<8x1xf32>
    %403 = vector.broadcast %402 : vector<8x1xf32> to vector<8x128xf32>
    %404 = arith.subf %251, %403 : vector<8x128xf32>
    %405 = tpu.iota {dimensions = array<i32: 1>} : vector<8x128xi32>
    %c32_i32_116 = arith.constant 32 : i32
    %406 = vector.broadcast %c32_i32_116 : i32 to vector<8x128xi32>
    %407 = arith.cmpi slt, %405, %406 : vector<8x128xi32>
    %cst_117 = arith.constant 0.000000e+00 : f32
    %408 = vector.broadcast %cst_117 : f32 to vector<8x128xf32>
    %409 = arith.select %407, %404, %408 : vector<8x128xi1>, vector<8x128xf32>
    %410 = arith.mulf %409, %409 : vector<8x128xf32>
    %cst_118 = arith.constant dense<0.000000e+00> : vector<8xf32>
    %411 = vector.multi_reduction <add>, %410, %cst_118 [1] : vector<8x128xf32> to vector<8xf32>
    %412 = vector.shape_cast %411 : vector<8xf32> to vector<8x1xf32>
    %cst_119 = arith.constant 3.125000e-02 : f32
    %413 = vector.broadcast %cst_119 : f32 to vector<8x1xf32>
    %414 = arith.mulf %412, %413 : vector<8x1xf32>
    %cst_120 = arith.constant 9.99999974E-6 : f32
    %415 = vector.broadcast %cst_120 : f32 to vector<8x1xf32>
    %416 = arith.addf %414, %415 : vector<8x1xf32>
    %417 = math.rsqrt %416 : vector<8x1xf32>
    %418 = vector.broadcast %417 : vector<8x1xf32> to vector<8x128xf32>
    %419 = arith.mulf %404, %418 : vector<8x128xf32>
    %420 = vector.broadcast %260 : vector<1x128xf32> to vector<8x128xf32>
    %421 = arith.mulf %419, %420 : vector<8x128xf32>
    %422 = vector.broadcast %261 : vector<1x128xf32> to vector<8x128xf32>
    %423 = arith.addf %421, %422 : vector<8x128xf32>
    %424 = arith.truncf %423 : vector<8x128xf32> to vector<8x128xbf16>
    %cst_121 = arith.constant dense<0.000000e+00> : vector<8x128xf32>
    %425 = tpu.matmul %424, %254, %cst_121 {dimension_numbers = #tpu.dot_dimension_numbers<[1], [0], [0], [1], [0, 0, 1, 1], [], []>} : vector<8x128xbf16>, vector<128x128xbf16>, vector<8x128xf32> -> vector<8x128xf32>
    %426 = vector.broadcast %263 : vector<1x128xf32> to vector<8x128xf32>
    %427 = arith.addf %425, %426 : vector<8x128xf32>
    %428 = arith.mulf %427, %427 : vector<8x128xf32>
    %429 = arith.mulf %427, %428 : vector<8x128xf32>
    %cst_122 = arith.constant 4.471500e-02 : f32
    %430 = vector.broadcast %cst_122 : f32 to vector<8x128xf32>
    %431 = arith.mulf %430, %429 : vector<8x128xf32>
    %432 = arith.addf %427, %431 : vector<8x128xf32>
    %cst_123 = arith.constant 0.797884583 : f32
    %433 = vector.broadcast %cst_123 : f32 to vector<8x128xf32>
    %434 = arith.mulf %433, %432 : vector<8x128xf32>
    %435 = math.tanh %434 : vector<8x128xf32>
    %cst_124 = arith.constant 1.000000e+00 : f32
    %436 = vector.broadcast %cst_124 : f32 to vector<8x128xf32>
    %437 = arith.addf %436, %435 : vector<8x128xf32>
    %cst_125 = arith.constant 5.000000e-01 : f32
    %438 = vector.broadcast %cst_125 : f32 to vector<8x128xf32>
    %439 = arith.mulf %438, %437 : vector<8x128xf32>
    %440 = arith.mulf %427, %439 : vector<8x128xf32>
    %441 = arith.truncf %440 : vector<8x128xf32> to vector<8x128xbf16>
    %cst_126 = arith.constant dense<0.000000e+00> : vector<8x128xf32>
    %442 = tpu.matmul %441, %255, %cst_126 {dimension_numbers = #tpu.dot_dimension_numbers<[1], [0], [0], [1], [0, 0, 1, 1], [], []>} : vector<8x128xbf16>, vector<128x128xbf16>, vector<8x128xf32> -> vector<8x128xf32>
    %443 = vector.broadcast %264 : vector<1x128xf32> to vector<8x128xf32>
    %444 = arith.addf %442, %443 : vector<8x128xf32>
    %445 = arith.addf %251, %398 : vector<8x128xf32>
    %446 = arith.addf %445, %444 : vector<8x128xf32>
    %c0_127 = arith.constant 0 : index
    %c0_128 = arith.constant 0 : index
    %447 = vector.load %arg7[%c0_127, %c0_128] : memref<2x128xf32, #tpu.memory_space<vmem>>, vector<1x128xf32>
    %c1_129 = arith.constant 1 : index
    %c0_130 = arith.constant 0 : index
    %448 = vector.load %arg7[%c1_129, %c0_130] : memref<2x128xf32, #tpu.memory_space<vmem>>, vector<1x128xf32>
    %cst_131 = arith.constant dense<0.000000e+00> : vector<8xf32>
    %449 = vector.multi_reduction <add>, %446, %cst_131 [1] : vector<8x128xf32> to vector<8xf32>
    %450 = vector.shape_cast %449 : vector<8xf32> to vector<8x1xf32>
    %cst_132 = arith.constant 3.125000e-02 : f32
    %451 = vector.broadcast %cst_132 : f32 to vector<8x1xf32>
    %452 = arith.mulf %450, %451 : vector<8x1xf32>
    %453 = vector.broadcast %452 : vector<8x1xf32> to vector<8x128xf32>
    %454 = arith.subf %446, %453 : vector<8x128xf32>
    %455 = tpu.iota {dimensions = array<i32: 1>} : vector<8x128xi32>
    %c32_i32_133 = arith.constant 32 : i32
    %456 = vector.broadcast %c32_i32_133 : i32 to vector<8x128xi32>
    %457 = arith.cmpi slt, %455, %456 : vector<8x128xi32>
    %cst_134 = arith.constant 0.000000e+00 : f32
    %458 = vector.broadcast %cst_134 : f32 to vector<8x128xf32>
    %459 = arith.select %457, %454, %458 : vector<8x128xi1>, vector<8x128xf32>
    %460 = arith.mulf %459, %459 : vector<8x128xf32>
    %cst_135 = arith.constant dense<0.000000e+00> : vector<8xf32>
    %461 = vector.multi_reduction <add>, %460, %cst_135 [1] : vector<8x128xf32> to vector<8xf32>
    %462 = vector.shape_cast %461 : vector<8xf32> to vector<8x1xf32>
    %cst_136 = arith.constant 3.125000e-02 : f32
    %463 = vector.broadcast %cst_136 : f32 to vector<8x1xf32>
    %464 = arith.mulf %462, %463 : vector<8x1xf32>
    %cst_137 = arith.constant 9.99999974E-6 : f32
    %465 = vector.broadcast %cst_137 : f32 to vector<8x1xf32>
    %466 = arith.addf %464, %465 : vector<8x1xf32>
    %467 = math.rsqrt %466 : vector<8x1xf32>
    %468 = vector.broadcast %467 : vector<8x1xf32> to vector<8x128xf32>
    %469 = arith.mulf %454, %468 : vector<8x128xf32>
    %470 = vector.broadcast %447 : vector<1x128xf32> to vector<8x128xf32>
    %471 = arith.mulf %469, %470 : vector<8x128xf32>
    %472 = vector.broadcast %448 : vector<1x128xf32> to vector<8x128xf32>
    %473 = arith.addf %471, %472 : vector<8x128xf32>
    %474 = arith.truncf %473 : vector<8x128xf32> to vector<8x128xbf16>
    %c0_138 = arith.constant 0 : index
    %c0_139 = arith.constant 0 : index
    %475 = vector.load %arg8[%c0_138, %c0_139] : memref<128x128xbf16, #tpu.memory_space<vmem>>, vector<128x128xbf16>
    %cst_140 = arith.constant dense<0.000000e+00> : vector<8x128xf32>
    %476 = tpu.matmul %474, %475, %cst_140 {dimension_numbers = #tpu.dot_dimension_numbers<[1], [0], [0], [1], [0, 0, 1, 1], [], []>} : vector<8x128xbf16>, vector<128x128xbf16>, vector<8x128xf32> -> vector<8x128xf32>
    %c0_141 = arith.constant 0 : index
    %c0_142 = arith.constant 0 : index
    %c0_143 = arith.constant 0 : index
    %477 = vector.load %arg9[%c0_141, %c0_142, %c0_143] : memref<1x8x128xf32, #tpu.memory_space<vmem>>, vector<1x8x128xf32>
    %478 = vector.shape_cast %477 : vector<1x8x128xf32> to vector<8x128xf32>
    %479 = vector.shape_cast %476 : vector<8x128xf32> to vector<1x8x128xf32>
    tpu.vector_store %arg9[%c0_141, %c0_142, %c0_143], %479 {strides = array<i32>} : memref<1x8x128xf32, #tpu.memory_space<vmem>>, vector<1x8x128xf32>,
    return
  }
  func.func @transform_0(%arg0: i32) -> (i32, i32, i32) {
    %c0_i32 = arith.constant 0 : i32
    %c0_i32_0 = arith.constant 0 : i32
    %c0_i32_1 = arith.constant 0 : i32
    return %arg0, %c0_i32, %c0_i32_0 : i32, i32, i32
  }
  func.func @transform_1(%arg0: i32) -> (i32, i32, i32) {
    %c0_i32 = arith.constant 0 : i32
    %c0_i32_0 = arith.constant 0 : i32
    %c0_i32_1 = arith.constant 0 : i32
    return %arg0, %c0_i32, %c0_i32_0 : i32, i32, i32
  }
  func.func @transform_2(%arg0: i32) -> (i32, i32, i32) {
    %c0_i32 = arith.constant 0 : i32
    %c0_i32_0 = arith.constant 0 : i32
    %c0_i32_1 = arith.constant 0 : i32
    %c0_i32_2 = arith.constant 0 : i32
    return %c0_i32, %c0_i32_0, %c0_i32_1 : i32, i32, i32
  }
  func.func @transform_3(%arg0: i32) -> (i32, i32) {
    %c0_i32 = arith.constant 0 : i32
    %c0_i32_0 = arith.constant 0 : i32
    %c0_i32_1 = arith.constant 0 : i32
    return %c0_i32, %c0_i32_0 : i32, i32
  }
  func.func @transform_4(%arg0: i32) -> (i32, i32) {
    %c0_i32 = arith.constant 0 : i32
    %c0_i32_0 = arith.constant 0 : i32
    %c0_i32_1 = arith.constant 0 : i32
    return %c0_i32, %c0_i32_0 : i32, i32
  }
  func.func @transform_5(%arg0: i32) -> (i32, i32) {
    %c0_i32 = arith.constant 0 : i32
    %c0_i32_0 = arith.constant 0 : i32
    %c0_i32_1 = arith.constant 0 : i32
    return %c0_i32, %c0_i32_0 : i32, i32
  }
  func.func @transform_6(%arg0: i32) -> (i32, i32) {
    %c0_i32 = arith.constant 0 : i32
    %c0_i32_0 = arith.constant 0 : i32
    %c0_i32_1 = arith.constant 0 : i32
    return %c0_i32, %c0_i32_0 : i32, i32
  }
  func.func @transform_7(%arg0: i32) -> (i32, i32) {
    %c0_i32 = arith.constant 0 : i32
    %c0_i32_0 = arith.constant 0 : i32
    %c0_i32_1 = arith.constant 0 : i32
    return %c0_i32, %c0_i32_0 : i32, i32
  }
  func.func @transform_8(%arg0: i32) -> (i32, i32, i32) {
    %c0_i32 = arith.constant 0 : i32
    %c0_i32_0 = arith.constant 0 : i32
    %c0_i32_1 = arith.constant 0 : i32
    return %arg0, %c0_i32, %c0_i32_0 : i32, i32, i32
  }
}

</mosaic_0001>

<llo_original>
// kernel: stablelm_forward.1
$region0: #{stablelm_forward.1}
  #allocation0 [shape = 'u32[]', space=smem, size = 0x4, offset = 0x4, fixed_abs, tag = 'smem constant byte address 0x4 - core index']
  #allocation1 [shape = 'u32[144,128]{1,0:T(1,128)}', space=vmem, size = 0x12000, scoped, tag = 'internal scratch']
  %s0 = inlined_call_operand.vmem [shape: f32[2,8,128], index: 0, kind: input, shape index: {}]
  %s1 = inlined_call_operand.vmem [shape: f32[2,1,128], index: 1, kind: input, shape index: {}]
  %s2 = inlined_call_operand.vmem [shape: f32[2,8,128], index: 2, kind: input, shape index: {}]
  %s3 = inlined_call_operand.vmem [shape: bf16[128,128], index: 3, kind: input, shape index: {}]
  %s4 = inlined_call_operand.hbm [shape: bf16[128,1536], index: 4, kind: input, shape index: {}]
  %s5 = inlined_call_operand.vmem [shape: f32[16,384], index: 5, kind: input, shape index: {}]
  %s6 = inlined_call_operand.vmem [shape: f32[2,128], index: 6, kind: input, shape index: {}]
  %s7 = inlined_call_operand.vmem [shape: bf16[128,128], index: 7, kind: input, shape index: {}]
  %s8 = inlined_call_operand.hbm [shape: f32[2,8,128], index: 8, kind: output, shape index: {}]
  %s9 = sld [smem:[#allocation0]]
  $region69: #{stablelm_forward.1} parent=0
    _
  %s11 = ssub.s32 1, %s9
  %s12 = scalar_select 0, %s11, %s9
  $region1: #{stablelm_forward.1} parent=0
    #allocation2 [shape = 'u8[393216]{0}', space=vmem, size = 0x60000, scoped, tag = 'input window, operand 4, single buffered']
    #allocation3 [shape = 's32[2]{0}', space=sflag, size = 0x8, scoped, tag = 'scoped memory for stablelm_forward.1']
    #allocation4 [shape = 's32[2]{0}', space=sflag, size = 0x8, scoped, tag = 'scoped memory for stablelm_forward.1']
    #allocation5 [shape = 'u8[8192]{0}', space=vmem, size = 0x2000, scoped, tag = 'output window, operand 0']
    %13 = vsyncpa [#allocation3], 0
    %14 = vsyncpa [#allocation4], 0
    %s15 = scalar_lea.sflag [#allocation4], 1
    %16 = vsyncpa %s15, 0
    loop: start=0, step=1, limit=4
    $region2: #{stablelm_forward.1} parent=1 // loop_pre_header
      _
    $region3: #{stablelm_forward.1} parent=1 // loop_header
      %s18 = sphi 0, %s22
      %p19 = scmp.ge.s32.totalorder %s18, 4
      %s28 = sphi 0, %s30
      %s31 = sphi 0, %s28
      %s32 = sphi 0, %s31
      %s48 = sphi 0, %s32
      %s54 = sphi 0, %s56
      %s57 = sphi 0, %s54
      %s58 = sphi 0, %s57
      %s74 = sphi 0, %s58
      %s78 = sphi 0, %s78
      %s80 = sphi 0, %s78
      %s81 = sphi 0, %s80
      %s95 = sphi 0, %s81
      %s99 = sphi 0, %s99
      %s101 = sphi 0, %s99
      %s102 = sphi 0, %s101
      %s116 = sphi 0, %s102
      %s120 = sphi 0, %s120
      %s122 = sphi 0, %s120
      %s123 = sphi 0, %s122
      %s137 = sphi 0, %s123
      %s141 = sphi 0, %s141
      %s143 = sphi 0, %s141
      %s144 = sphi 0, %s143
      %s158 = sphi 0, %s144
      %s162 = sphi 0, %s162
      %s164 = sphi 0, %s162
      %s165 = sphi 0, %s164
      %s179 = sphi 0, %s165
      %s183 = sphi 0, %s183
      %s185 = sphi 0, %s183
      %s186 = sphi 0, %s185
      %s200 = sphi 0, %s186
      %s206 = sphi 0, %s208
      %s209 = sphi 0, %s206
      %s210 = sphi 0, %s209
      %s226 = sphi 0, %s210
    $region4: #{stablelm_forward.1} parent=1 // loop_header_branch
      %21 = sbr.rel (%p19) target = $region8
    $region5: #{stablelm_forward.1} parent=1 // loop_body
      %s23 = ssub.s32 %s18, 1
      %s24 = ssub.s32 %s18, 2
      %s25 = sadd.s32 %s18, 1
      %s26 = ssub.s32 %s18, %s25
      %p27 = scmp.eq.s32.totalorder %s26, 0
      %s29 = sadd.s32 %s28, 1
      %s30 = scalar_select %p27, %s28, %s29
      %p33 = pneg %p27
      %p34 = scmp.eq.s32.totalorder %s18, 1
      %p35 = por %p33, %p34
      %p36 = scmp.ne.s32.totalorder %s28, %s31
      %p37 = scmp.eq.s32.totalorder %s18, 0
      %p38 = por %p36, %p37
      %p39 = scmp.ne.s32.totalorder %s28, %s31
      %p40 = scmp.eq.s32.totalorder %s23, 1
      %p41 = por %p39, %p40
      %p42 = scmp.ne.s32.totalorder %s31, %s32
      %p43 = scmp.eq.s32.totalorder %s23, 0
      %p44 = por %p42, %p43
      %p45 = scmp.ne.s32.totalorder %s31, %s32
      %p46 = scmp.eq.s32.totalorder %s24, 1
      %p47 = por %p45, %p46
      %p49 = scmp.ne.s32.totalorder %s32, %s48
      %p50 = scmp.eq.s32.totalorder %s24, 0
      %p51 = por %p49, %p50
      %s52 = ssub.s32 %s18, %s25
      %p53 = scmp.eq.s32.totalorder %s52, 0
      %s55 = sadd.s32 %s54, 1
      %s56 = scalar_select %p53, %s54, %s55
      %p59 = pneg %p53
      %p60 = scmp.eq.s32.totalorder %s18, 1
      %p61 = por %p59, %p60
      %p62 = scmp.ne.s32.totalorder %s54, %s57
      %p63 = scmp.eq.s32.totalorder %s18, 0
      %p64 = por %p62, %p63
      %p65 = scmp.ne.s32.totalorder %s54, %s57
      %p66 = scmp.eq.s32.totalorder %s23, 1
      %p67 = por %p65, %p66
      %p68 = scmp.ne.s32.totalorder %s57, %s58
      %p69 = scmp.eq.s32.totalorder %s23, 0
      %p70 = por %p68, %p69
      %p71 = scmp.ne.s32.totalorder %s57, %s58
      %p72 = scmp.eq.s32.totalorder %s24, 1
      %p73 = por %p71, %p72
      %p75 = scmp.ne.s32.totalorder %s58, %s74
      %p76 = scmp.eq.s32.totalorder %s24, 0
      %p77 = por %p75, %p76
      %s79 = sadd.s32 %s78, 1
      %p82 = scmp.eq.s32.totalorder %s18, 1
      %p83 = scmp.ne.s32.totalorder %s78, %s80
      %p84 = scmp.eq.s32.totalorder %s18, 0
      %p85 = por %p83, %p84
      %p86 = scmp.ne.s32.totalorder %s78, %s80
      %p87 = scmp.eq.s32.totalorder %s23, 1
      %p88 = por %p86, %p87
      %p89 = scmp.ne.s32.totalorder %s80, %s81
      %p90 = scmp.eq.s32.totalorder %s23, 0
      %p91 = por %p89, %p90
      %p92 = scmp.ne.s32.totalorder %s80, %s81
      %p93 = scmp.eq.s32.totalorder %s24, 1
      %p94 = por %p92, %p93
      %p96 = scmp.ne.s32.totalorder %s81, %s95
      %p97 = scmp.eq.s32.totalorder %s24, 0
      %p98 = por %p96, %p97
      %s100 = sadd.s32 %s99, 1
      %p103 = scmp.eq.s32.totalorder %s18, 1
      %p104 = scmp.ne.s32.totalorder %s99, %s101
      %p105 = scmp.eq.s32.totalorder %s18, 0
      %p106 = por %p104, %p105
      %p107 = scmp.ne.s32.totalorder %s99, %s101
      %p108 = scmp.eq.s32.totalorder %s23, 1
      %p109 = por %p107, %p108
      %p110 = scmp.ne.s32.totalorder %s101, %s102
      %p111 = scmp.eq.s32.totalorder %s23, 0
      %p112 = por %p110, %p111
      %p113 = scmp.ne.s32.totalorder %s101, %s102
      %p114 = scmp.eq.s32.totalorder %s24, 1
      %p115 = por %p113, %p114
      %p117 = scmp.ne.s32.totalorder %s102, %s116
      %p118 = scmp.eq.s32.totalorder %s24, 0
      %p119 = por %p117, %p118
      %s121 = sadd.s32 %s120, 1
      %p124 = scmp.eq.s32.totalorder %s18, 1
      %p125 = scmp.ne.s32.totalorder %s120, %s122
      %p126 = scmp.eq.s32.totalorder %s18, 0
      %p127 = por %p125, %p126
      %p128 = scmp.ne.s32.totalorder %s120, %s122
      %p129 = scmp.eq.s32.totalorder %s23, 1
      %p130 = por %p128, %p129
      %p131 = scmp.ne.s32.totalorder %s122, %s123
      %p132 = scmp.eq.s32.totalorder %s23, 0
      %p133 = por %p131, %p132
      %p134 = scmp.ne.s32.totalorder %s122, %s123
      %p135 = scmp.eq.s32.totalorder %s24, 1
      %p136 = por %p134, %p135
      %p138 = scmp.ne.s32.totalorder %s123, %s137
      %p139 = scmp.eq.s32.totalorder %s24, 0
      %p140 = por %p138, %p139
      %s142 = sadd.s32 %s141, 1
      %p145 = scmp.eq.s32.totalorder %s18, 1
      %p146 = scmp.ne.s32.totalorder %s141, %s143
      %p147 = scmp.eq.s32.totalorder %s18, 0
      %p148 = por %p146, %p147
      %p149 = scmp.ne.s32.totalorder %s141, %s143
      %p150 = scmp.eq.s32.totalorder %s23, 1
      %p151 = por %p149, %p150
      %p152 = scmp.ne.s32.totalorder %s143, %s144
      %p153 = scmp.eq.s32.totalorder %s23, 0
      %p154 = por %p152, %p153
      %p155 = scmp.ne.s32.totalorder %s143, %s144
      %p156 = scmp.eq.s32.totalorder %s24, 1
      %p157 = por %p155, %p156
      %p159 = scmp.ne.s32.totalorder %s144, %s158
      %p160 = scmp.eq.s32.totalorder %s24, 0
      %p161 = por %p159, %p160
      %s163 = sadd.s32 %s162, 1
      %p166 = scmp.eq.s32.totalorder %s18, 1
      %p167 = scmp.ne.s32.totalorder %s162, %s164
      %p168 = scmp.eq.s32.totalorder %s18, 0
      %p169 = por %p167, %p168
      %p170 = scmp.ne.s32.totalorder %s162, %s164
      %p171 = scmp.eq.s32.totalorder %s23, 1
      %p172 = por %p170, %p171
      %p173 = scmp.ne.s32.totalorder %s164, %s165
      %p174 = scmp.eq.s32.totalorder %s23, 0
      %p175 = por %p173, %p174
      %p176 = scmp.ne.s32.totalorder %s164, %s165
      %p177 = scmp.eq.s32.totalorder %s24, 1
      %p178 = por %p176, %p177
      %p180 = scmp.ne.s32.totalorder %s165, %s179
      %p181 = scmp.eq.s32.totalorder %s24, 0
      %p182 = por %p180, %p181
      %s184 = sadd.s32 %s183, 1
      %p187 = scmp.eq.s32.totalorder %s18, 1
      %p188 = scmp.ne.s32.totalorder %s183, %s185
      %p189 = scmp.eq.s32.totalorder %s18, 0
      %p190 = por %p188, %p189
      %p191 = scmp.ne.s32.totalorder %s183, %s185
      %p192 = scmp.eq.s32.totalorder %s23, 1
      %p193 = por %p191, %p192
      %p194 = scmp.ne.s32.totalorder %s185, %s186
      %p195 = scmp.eq.s32.totalorder %s23, 0
      %p196 = por %p194, %p195
      %p197 = scmp.ne.s32.totalorder %s185, %s186
      %p198 = scmp.eq.s32.totalorder %s24, 1
      %p199 = por %p197, %p198
      %p201 = scmp.ne.s32.totalorder %s186, %s200
      %p202 = scmp.eq.s32.totalorder %s24, 0
      %p203 = por %p201, %p202
      %s204 = ssub.s32 %s18, %s25
      %p205 = scmp.eq.s32.totalorder %s204, 0
      %s207 = sadd.s32 %s206, 1
      %s208 = scalar_select %p205, %s206, %s207
      %p211 = pneg %p205
      %p212 = scmp.eq.s32.totalorder %s18, 1
      %p213 = por %p211, %p212
      %p214 = scmp.ne.s32.totalorder %s206, %s209
      %p215 = scmp.eq.s32.totalorder %s18, 0
      %p216 = por %p214, %p215
      %p217 = scmp.ne.s32.totalorder %s206, %s209
      %p218 = scmp.eq.s32.totalorder %s23, 1
      %p219 = por %p217, %p218
      %p220 = scmp.ne.s32.totalorder %s209, %s210
      %p221 = scmp.eq.s32.totalorder %s23, 0
      %p222 = por %p220, %p221
      %p223 = scmp.ne.s32.totalorder %s209, %s210
      %p224 = scmp.eq.s32.totalorder %s24, 1
      %p225 = por %p223, %p224
      %p227 = scmp.ne.s32.totalorder %s210, %s226
      %p228 = scmp.eq.s32.totalorder %s24, 0
      %p229 = por %p227, %p228
      %p230 = scmp.le.s32.totalorder 1, %s18
      %p231 = scmp.lt.s32.totalorder %s18, 3
      %p232 = pnand %p230, %p231
      %p233 = pneg %p232
      // Predicated region
      $region9: #{stablelm_forward.1} parent=5 // pred_check
        _
      $region10: #{stablelm_forward.1} parent=5 // pred_check_branch
        %235 = sbr.rel (%p232) target = $region12
      $region11: #{stablelm_forward.1} parent=5 // pred_region
        %s236 = ssub.s32 %s18, 1
        // Predicated region
        $region13: #{stablelm_forward.1} parent=11 // pred_check
          %p237 = pneg %p91
        $region14: #{stablelm_forward.1} parent=11 // pred_check_branch
          %239 = sbr.rel (%p237) target = $region16
        $region15: #{stablelm_forward.1} parent=11 // pred_region
          _
        $region16: #{stablelm_forward.1} parent=11 // pred_fallthru
          _
        // Predicated region
        $region17: #{stablelm_forward.1} parent=11 // pred_check
          %p240 = pneg %p112
        $region18: #{stablelm_forward.1} parent=11 // pred_check_branch
          %242 = sbr.rel (%p240) target = $region20
        $region19: #{stablelm_forward.1} parent=11 // pred_region
          _
        $region20: #{stablelm_forward.1} parent=11 // pred_fallthru
          _
        // Predicated region
        $region21: #{stablelm_forward.1} parent=11 // pred_check
          %p243 = pneg %p133
        $region22: #{stablelm_forward.1} parent=11 // pred_check_branch
          %245 = sbr.rel (%p243) target = $region24
        $region23: #{stablelm_forward.1} parent=11 // pred_region
          %s247 = ssub.s32 12288, 12288
          %248 = vsyncadd [#allocation3], %s247
          %s249 = sshll.u32 [#allocation2], 4
          %s250 = int_to_ptr.vmem [resolvable:$true] %s249
          %255 = dma.hbm_to_vmem [thread:$0]  %s4, 12288, %s250, [#allocation3], 768, 768, 48
        $region24: #{stablelm_forward.1} parent=11 // pred_fallthru
          _
        // Predicated region
        $region25: #{stablelm_forward.1} parent=11 // pred_check
          %p256 = pneg %p154
        $region26: #{stablelm_forward.1} parent=11 // pred_check_branch
          %258 = sbr.rel (%p256) target = $region28
        $region27: #{stablelm_forward.1} parent=11 // pred_region
          _
        $region28: #{stablelm_forward.1} parent=11 // pred_fallthru
          _
        // Predicated region
        $region29: #{stablelm_forward.1} parent=11 // pred_check
          %p259 = pneg %p175
        $region30: #{stablelm_forward.1} parent=11 // pred_check_branch
          %261 = sbr.rel (%p259) target = $region32
        $region31: #{stablelm_forward.1} parent=11 // pred_region
          _
        $region32: #{stablelm_forward.1} parent=11 // pred_fallthru
          _
        // Predicated region
        $region33: #{stablelm_forward.1} parent=11 // pred_check
          %p262 = pneg %p196
        $region34: #{stablelm_forward.1} parent=11 // pred_check_branch
          %264 = sbr.rel (%p262) target = $region36
        $region35: #{stablelm_forward.1} parent=11 // pred_region
          _
        $region36: #{stablelm_forward.1} parent=11 // pred_fallthru
          _
      $region12: #{stablelm_forward.1} parent=5 // pred_fallthru
        _
      %p265 = scmp.lt.s32.totalorder %s18, 2
      // Predicated region
      $region37: #{stablelm_forward.1} parent=5 // pred_check
        %p266 = pneg %p265
      $region38: #{stablelm_forward.1} parent=5 // pred_check_branch
        %268 = sbr.rel (%p266) target = $region40
      $region39: #{stablelm_forward.1} parent=5 // pred_region
        // Predicated region
        $region41: #{stablelm_forward.1} parent=39 // pred_check
          %p269 = pneg %p38
        $region42: #{stablelm_forward.1} parent=39 // pred_check_branch
          %271 = sbr.rel (%p269) target = $region44
        $region43: #{stablelm_forward.1} parent=39 // pred_region
          %p272 = scmp.lt.s32.totalorder %s18, 1
          %s273 = scalar_select %p272, %s18, 1
          %s274 = smul.addr %s273, 8
          %s275 = scalar_lea.vmem %s0, %s274
        $region44: #{stablelm_forward.1} parent=39 // pred_fallthru
          _
        // Predicated region
        $region45: #{stablelm_forward.1} parent=39 // pred_check
          %p276 = pneg %p64
        $region46: #{stablelm_forward.1} parent=39 // pred_check_branch
          %278 = sbr.rel (%p276) target = $region48
        $region47: #{stablelm_forward.1} parent=39 // pred_region
          %p279 = scmp.lt.s32.totalorder %s18, 1
          %s280 = scalar_select %p279, %s18, 1
          %s281 = scalar_lea.vmem %s1, %s280
        $region48: #{stablelm_forward.1} parent=39 // pred_fallthru
          _
      $region40: #{stablelm_forward.1} parent=5 // pred_fallthru
        _
      %p282 = scmp.le.s32.totalorder 1, %s18
      %p283 = scmp.lt.s32.totalorder %s18, 3
      %p284 = pnand %p282, %p283
      %p285 = pneg %p284
      // Predicated region
      $region49: #{stablelm_forward.1} parent=5 // pred_check
        _
      $region50: #{stablelm_forward.1} parent=5 // pred_check_branch
        %287 = sbr.rel (%p284) target = $region52
      $region51: #{stablelm_forward.1} parent=5 // pred_region
        %s288 = ssub.s32 %s18, 1
        // Predicated region
        $region53: #{stablelm_forward.1} parent=51 // pred_check
          %p289 = pneg %p133
        $region54: #{stablelm_forward.1} parent=51 // pred_check_branch
          %291 = sbr.rel (%p289) target = $region56
        $region55: #{stablelm_forward.1} parent=51 // pred_region
          %292 = dma.done [#allocation3], 12288
        $region56: #{stablelm_forward.1} parent=51 // pred_fallthru
          _
        %p293 = scmp.lt.s32.totalorder %s23, 1
        %s294 = scalar_select %p293, %s23, 1
        %s295 = smul.addr %s294, 8
        %s296 = scalar_lea.vmem %s0, %s295
        %p297 = pneg %p44
        %p298 = pneg %p41
        %p299 = scmp.lt.s32.totalorder %s23, 1
        %s300 = scalar_select %p299, %s23, 1
        %s301 = scalar_lea.vmem %s1, %s300
        %p302 = pneg %p70
        %p303 = pneg %p67
        %p304 = pneg %p91
        %p305 = pneg %p88
        %p306 = pneg %p112
        %p307 = pneg %p109
        %p308 = pneg %p133
        %p309 = pneg %p130
        %p310 = pneg %p154
        %p311 = pneg %p151
        %p312 = pneg %p175
        %p313 = pneg %p172
        %p314 = pneg %p196
        %p315 = pneg %p193
        %p316 = pneg %p222
        %p317 = pneg %p219
        %s318 = sand.u32 %s209, 1
        %s319 = scalar_lea.sflag [#allocation4], %s318
        %s320 = sand.u32 %s209, 1
        %s321 = smul.addr %s320, 8
        %s322 = scalar_lea.vmem [#allocation5], %s321
        %p323 = scmp.lt.s32.totalorder %s23, 1
        %s324 = scalar_select %p323, %s23, 1
        %s325 = smul.addr %s324, 8
        %s326 = scalar_lea.vmem %s0, %s325
        %p327 = scmp.lt.s32.totalorder %s23, 1
        %s328 = scalar_select %p327, %s23, 1
        %s329 = scalar_lea.vmem %s1, %s328
        %v331 = vld [vmem:[%s326] sm:$0xff]
        %v332 = vld [vmem:[%s2] sm:$0xff]
        %s333 = scalar_lea.vmem %s2, 8
        %v334 = vld [vmem:[%s333] sm:$0xff]
        %v335 = vld [vmem:[%s3] sm:$0xf]
        %v336 = vld [vmem:[%s3 + $0x4] sm:$0xf]
        %v337 = vld [vmem:[%s3 + $0x8] sm:$0xf]
        %v338 = vld [vmem:[%s3 + $0xc] sm:$0xf]
        %v339 = vld [vmem:[%s3 + $0x10] sm:$0xf]
        %v340 = vld [vmem:[%s3 + $0x14] sm:$0xf]
        %v341 = vld [vmem:[%s3 + $0x18] sm:$0xf]
        %v342 = vld [vmem:[%s3 + $0x1c] sm:$0xf]
        %v343 = vld [vmem:[%s3 + $0x20] sm:$0xf]
        %v344 = vld [vmem:[%s3 + $0x24] sm:$0xf]
        %v345 = vld [vmem:[%s3 + $0x28] sm:$0xf]
        %v346 = vld [vmem:[%s3 + $0x2c] sm:$0xf]
        %v347 = vld [vmem:[%s3 + $0x30] sm:$0xf]
        %v348 = vld [vmem:[%s3 + $0x34] sm:$0xf]
        %v349 = vld [vmem:[%s3 + $0x38] sm:$0xf]
        %v350 = vld [vmem:[%s3 + $0x3c] sm:$0xf]
        %v351 = vlaneseq
        %v352 = vshrl.u32 %v351, 7
        %v353 = vlaneseq
        %v354 = vand.u32 %v353, 127
        %v355 = vld [vmem:[%s329] sm:$0x1]
        %vm356 = vcmp.gt.f32.partialorder %v355, 0.5
        %vm357 = vcmp.le.s32.totalorder %v354, %v352
        %v358 = vsel %vm356, 1, 0
        %v359 = vlaneseq
        %v360 = vshrl.u32 %v359, 7
        %v361 = vsub.s32 0, %v360
        %v362 = vrot.slane %v358, %v361
        %vm363 = vcmp.eq.s32.totalorder %v362, 1
        %vm364 = vmand %vm357, %vm363
        %v365 = vsel %vm364, 0.0, -1e+09
        %vm366 = vcmp.ge.s32.totalorder %v354, 0
        %vm367 = vcmp.lt.s32.totalorder %v354, 8
        %vm368 = vmand %vm366, %vm367
        %v369 = vsel %vm368, 1.0, 0.0
        %v370 = vpack.c.bf16 %v369, %v369
        %vm371 = vcmp.ge.s32.totalorder %v354, 8
        %vm372 = vcmp.lt.s32.totalorder %v354, 16
        %vm373 = vmand %vm371, %vm372
        %v374 = vsel %vm373, 1.0, 0.0
        %v375 = vpack.c.bf16 %v374, %v374
        %vm376 = vcmp.ge.s32.totalorder %v354, 16
        %vm377 = vcmp.lt.s32.totalorder %v354, 24
        %vm378 = vmand %vm376, %vm377
        %v379 = vsel %vm378, 1.0, 0.0
        %v380 = vpack.c.bf16 %v379, %v379
        %vm381 = vcmp.ge.s32.totalorder %v354, 24
        %vm382 = vcmp.lt.s32.totalorder %v354, 32
        %vm383 = vmand %vm381, %vm382
        %v384 = vsel %vm383, 1.0, 0.0
        %v385 = vpack.c.bf16 %v384, %v384
        %v386 = vld [vmem:[#allocation2] sm:$0xff]
        %v387 = vld [vmem:[#allocation2 + $0x8] sm:$0xf]
        %v388 = vld [vmem:[#allocation2 + $0x30] sm:$0xff]
        %v389 = vld [vmem:[#allocation2 + $0x38] sm:$0xf]
        %v390 = vld [vmem:[#allocation2 + $0x60] sm:$0xff]
        %v391 = vld [vmem:[#allocation2 + $0x68] sm:$0xf]
        %v392 = vld [vmem:[#allocation2 + $0x90] sm:$0xff]
        %v393 = vld [vmem:[#allocation2 + $0x98] sm:$0xf]
        %v394 = vld [vmem:[#allocation2 + $0xc0] sm:$0xff]
        %v395 = vld [vmem:[#allocation2 + $0xc8] sm:$0xf]
        %v396 = vld [vmem:[#allocation2 + $0xf0] sm:$0xff]
        %v397 = vld [vmem:[#allocation2 + $0xf8] sm:$0xf]
        %v398 = vld [vmem:[#allocation2 + $0x120] sm:$0xff]
        %v399 = vld [vmem:[#allocation2 + $0x128] sm:$0xf]
        %v400 = vld [vmem:[#allocation2 + $0x150] sm:$0xff]
        %v401 = vld [vmem:[#allocation2 + $0x158] sm:$0xf]
        %v402 = vld [vmem:[#allocation2 + $0x180] sm:$0xff]
        %v403 = vld [vmem:[#allocation2 + $0x188] sm:$0xf]
        %v404 = vld [vmem:[#allocation2 + $0x1b0] sm:$0xff]
        %v405 = vld [vmem:[#allocation2 + $0x1b8] sm:$0xf]
        %v406 = vld [vmem:[#allocation2 + $0x1e0] sm:$0xff]
        %v407 = vld [vmem:[#allocation2 + $0x1e8] sm:$0xf]
        %v408 = vld [vmem:[#allocation2 + $0x210] sm:$0xff]
        %v409 = vld [vmem:[#allocation2 + $0x218] sm:$0xf]
        %v410 = vld [vmem:[#allocation2 + $0x240] sm:$0xff]
        %v411 = vld [vmem:[#allocation2 + $0x248] sm:$0xf]
        %v412 = vld [vmem:[#allocation2 + $0x270] sm:$0xff]
        %v413 = vld [vmem:[#allocation2 + $0x278] sm:$0xf]
        %v414 = vld [vmem:[#allocation2 + $0x2a0] sm:$0xff]
        %v415 = vld [vmem:[#allocation2 + $0x2a8] sm:$0xf]
        %v416 = vld [vmem:[#allocation2 + $0x2d0] sm:$0xff]
        %v417 = vld [vmem:[#allocation2 + $0x2d8] sm:$0xf]
        %v418 = vld [vmem:[#allocation2 + $0xc] sm:$0xf]
        %v419 = vld [vmem:[#allocation2 + $0x3c] sm:$0xf]
        %v420 = vld [vmem:[#allocation2 + $0x6c] sm:$0xf]
        %v421 = vld [vmem:[#allocation2 + $0x9c] sm:$0xf]
        %v422 = vld [vmem:[#allocation2 + $0xcc] sm:$0xf]
        %v423 = vld [vmem:[#allocation2 + $0xfc] sm:$0xf]
        %v424 = vld [vmem:[#allocation2 + $0x12c] sm:$0xf]
        %v425 = vld [vmem:[#allocation2 + $0x15c] sm:$0xf]
        %v426 = vld [vmem:[#allocation2 + $0x18c] sm:$0xf]
        %v427 = vld [vmem:[#allocation2 + $0x1bc] sm:$0xf]
        %v428 = vld [vmem:[#allocation2 + $0x1ec] sm:$0xf]
        %v429 = vld [vmem:[#allocation2 + $0x21c] sm:$0xf]
        %v430 = vld [vmem:[#allocation2 + $0x24c] sm:$0xf]
        %v431 = vld [vmem:[#allocation2 + $0x27c] sm:$0xf]
        %v432 = vld [vmem:[#allocation2 + $0x2ac] sm:$0xf]
        %v433 = vld [vmem:[#allocation2 + $0x2dc] sm:$0xf]
        %v434 = vld [vmem:[#allocation2 + $0x10] sm:$0xf]
        %v435 = vld [vmem:[#allocation2 + $0x40] sm:$0xf]
        %v436 = vld [vmem:[#allocation2 + $0x70] sm:$0xf]
        %v437 = vld [vmem:[#allocation2 + $0xa0] sm:$0xf]
        %v438 = vld [vmem:[#allocation2 + $0xd0] sm:$0xf]
        %v439 = vld [vmem:[#allocation2 + $0x100] sm:$0xf]
        %v440 = vld [vmem:[#allocation2 + $0x130] sm:$0xf]
        %v441 = vld [vmem:[#allocation2 + $0x160] sm:$0xf]
        %v442 = vld [vmem:[#allocation2 + $0x190] sm:$0xf]
        %v443 = vld [vmem:[#allocation2 + $0x1c0] sm:$0xf]
        %v444 = vld [vmem:[#allocation2 + $0x1f0] sm:$0xf]
        %v445 = vld [vmem:[#allocation2 + $0x220] sm:$0xf]
        %v446 = vld [vmem:[#allocation2 + $0x250] sm:$0xf]
        %v447 = vld [vmem:[#allocation2 + $0x280] sm:$0xf]
        %v448 = vld [vmem:[#allocation2 + $0x2b0] sm:$0xf]
        %v449 = vld [vmem:[#allocation2 + $0x2e0] sm:$0xf]
        %v450 = vld [vmem:[#allocation2 + $0x14] sm:$0xf]
        %v451 = vld [vmem:[#allocation2 + $0x44] sm:$0xf]
        %v452 = vld [vmem:[#allocation2 + $0x74] sm:$0xf]
        %v453 = vld [vmem:[#allocation2 + $0xa4] sm:$0xf]
        %v454 = vld [vmem:[#allocation2 + $0xd4] sm:$0xf]
        %v455 = vld [vmem:[#allocation2 + $0x104] sm:$0xf]
        %v456 = vld [vmem:[#allocation2 + $0x134] sm:$0xf]
        %v457 = vld [vmem:[#allocation2 + $0x164] sm:$0xf]
        %v458 = vld [vmem:[#allocation2 + $0x194] sm:$0xf]
        %v459 = vld [vmem:[#allocation2 + $0x1c4] sm:$0xf]
        %v460 = vld [vmem:[#allocation2 + $0x1f4] sm:$0xf]
        %v461 = vld [vmem:[#allocation2 + $0x224] sm:$0xf]
        %v462 = vld [vmem:[#allocation2 + $0x254] sm:$0xf]
        %v463 = vld [vmem:[#allocation2 + $0x284] sm:$0xf]
        %v464 = vld [vmem:[#allocation2 + $0x2b4] sm:$0xf]
        %v465 = vld [vmem:[#allocation2 + $0x2e4] sm:$0xf]
        %v466 = vld [vmem:[%s5] sm:$0xff]
        %v467 = vld [vmem:[%s5 + $0x8] sm:$0xff]
        %v468 = vld [vmem:[%s5 + $0x10] sm:$0xff]
        %469 = vadd.xlane.f32.xlu0 %v331
        %v470 = vpop.xlane.xlu0 %469
        %v471 = vmul.f32 %v470, 0.03125
        %v472 = vsub.f32 %v331, %v471
        %v473 = vsel %vm382, %v472, 0.0
        %v474 = vmul.f32 %v473, %v473
        %475 = vadd.xlane.f32.xlu0 %v474
        %v476 = vpop.xlane.xlu0 %475
        %v477 = vmul.f32 %v476, 0.03125
        %v478 = vadd.f32 %v477, 1e-05
        %v479 = vrsqrt.pop %v478
        %v480 = vmul.f32 %v472, %v479
        %v481 = vlaneseq
        %v482 = vshrl.u32 %v481, 7
        %v483 = vsub.s32 1, %v482
        %v484 = vrot.slane %v466, %v483
        %v485 = vmul.f32 %v480, %v484
        %v486 = vlaneseq
        %v487 = vshrl.u32 %v486, 7
        %v488 = vsub.s32 2, %v487
        %v489 = vrot.slane %v466, %v488
        %v490 = vadd.f32 %v485, %v489
        %v491 = vpack.c.bf16 %v490, %v490
        %v492 = vlaneseq
        %v493 = vshrl.u32 %v492, 7
        %v494 = vsub.s32 0, %v493
        %v495 = vrot.slane %v466, %v494
        %v496 = vlaneseq
        %v497 = vshrl.u32 %v496, 7
        %v498 = vsub.s32 0, %v497
        %v499 = vrot.slane %v467, %v498
        %v500 = vlaneseq
        %v501 = vshrl.u32 %v500, 7
        %v502 = vsub.s32 0, %v501
        %v503 = vrot.slane %v468, %v502
        %v536 = vunpack.c.l.b16 %v386
        %v537 = vunpack.c.h.b16 %v386
        %v538 = vunpack.c.l.b16 %v387
        %v539 = vunpack.c.l.b16 %v388
        %v540 = vunpack.c.h.b16 %v388
        %v541 = vunpack.c.l.b16 %v389
        %v542 = vunpack.c.l.b16 %v390
        %v543 = vunpack.c.h.b16 %v390
        %v544 = vunpack.c.l.b16 %v391
        %v545 = vunpack.c.l.b16 %v392
        %v546 = vunpack.c.h.b16 %v392
        %v547 = vunpack.c.l.b16 %v393
        %v548 = vunpack.c.l.b16 %v394
        %v549 = vunpack.c.h.b16 %v394
        %v550 = vunpack.c.l.b16 %v395
        %v551 = vunpack.c.l.b16 %v396
        %v552 = vunpack.c.h.b16 %v396
        %v553 = vunpack.c.l.b16 %v397
        %v554 = vunpack.c.l.b16 %v398
        %v555 = vunpack.c.h.b16 %v398
        %v556 = vunpack.c.l.b16 %v399
        %v557 = vunpack.c.l.b16 %v400
        %v558 = vunpack.c.h.b16 %v400
        %v559 = vunpack.c.l.b16 %v401
        %v560 = vunpack.c.l.b16 %v402
        %v561 = vunpack.c.h.b16 %v402
        %v562 = vunpack.c.l.b16 %v403
        %v563 = vunpack.c.l.b16 %v404
        %v564 = vunpack.c.h.b16 %v404
        %v565 = vunpack.c.l.b16 %v405
        %v566 = vunpack.c.l.b16 %v406
        %v567 = vunpack.c.h.b16 %v406
        %v568 = vunpack.c.l.b16 %v407
        %v569 = vunpack.c.l.b16 %v408
        %v570 = vunpack.c.h.b16 %v408
        %v571 = vunpack.c.l.b16 %v409
        %v572 = vunpack.c.l.b16 %v410
        %v573 = vunpack.c.h.b16 %v410
        %v574 = vunpack.c.l.b16 %v411
        %v575 = vunpack.c.l.b16 %v412
        %v576 = vunpack.c.h.b16 %v412
        %v577 = vunpack.c.l.b16 %v413
        %v578 = vunpack.c.l.b16 %v414
        %v579 = vunpack.c.h.b16 %v414
        %v580 = vunpack.c.l.b16 %v415
        %v581 = vunpack.c.l.b16 %v416
        %v582 = vunpack.c.h.b16 %v416
        %v583 = vunpack.c.l.b16 %v417
        %v584 = vpack.c.b16 %v539, %v536
        %v585 = vpack.c.b16 %v540, %v537
        %v586 = vpack.c.b16 %v541, %v538
        %v587 = vpack.c.b16 %v545, %v542
        %v588 = vpack.c.b16 %v546, %v543
        %v589 = vpack.c.b16 %v547, %v544
        %v590 = vpack.c.b16 %v551, %v548
        %v591 = vpack.c.b16 %v552, %v549
        %v592 = vpack.c.b16 %v553, %v550
        %v593 = vpack.c.b16 %v557, %v554
        %v594 = vpack.c.b16 %v558, %v555
        %v595 = vpack.c.b16 %v559, %v556
        %v596 = vpack.c.b16 %v563, %v560
        %v597 = vpack.c.b16 %v564, %v561
        %v598 = vpack.c.b16 %v565, %v562
        %v599 = vpack.c.b16 %v569, %v566
        %v600 = vpack.c.b16 %v570, %v567
        %v601 = vpack.c.b16 %v571, %v568
        %v602 = vpack.c.b16 %v575, %v572
        %v603 = vpack.c.b16 %v576, %v573
        %v604 = vpack.c.b16 %v577, %v574
        %v605 = vpack.c.b16 %v581, %v578
        %v606 = vpack.c.b16 %v582, %v579
        %v607 = vpack.c.b16 %v583, %v580
        %632 = vmatprep.subr.bf16.mxu0 %v606
        %633 = vmatpush1.bf16.msra.mxu0 %v605
        %634 = vmatprep.subr.bf16.mxu0 %v603
        %635 = vmatpush1.bf16.msra.mxu0 %v602
        %636 = vmatprep.subr.bf16.mxu0 %v600
        %637 = vmatpush1.bf16.msra.mxu0 %v599
        %638 = vmatprep.subr.bf16.mxu0 %v597
        %639 = vmatpush1.bf16.msra.mxu0 %v596
        %640 = vmatprep.subr.bf16.mxu0 %v594
        %641 = vmatpush1.bf16.msra.mxu0 %v593
        %642 = vmatprep.subr.bf16.mxu0 %v591
        %643 = vmatpush1.bf16.msra.mxu0 %v590
        %644 = vmatprep.subr.bf16.mxu0 %v588
        %645 = vmatpush1.bf16.msra.mxu0 %v587
        %646 = vmatprep.subr.bf16.mxu0 %v585
        %647 = vmatpush1.bf16.msra.mxu0 %v584
        %648 = vmatprep.subr.bf16.mxu0 0
        %649 = vmatpush2.bf16.msra.mxu0 0
        %650 = vmatprep.subr.bf16.mxu0 0
        %651 = vmatpush2.bf16.msra.mxu0 0
        %652 = vmatprep.subr.bf16.mxu0 0
        %653 = vmatpush2.bf16.msra.mxu0 0
        %654 = vmatprep.subr.bf16.mxu0 0
        %655 = vmatpush2.bf16.msra.mxu0 0
        %656 = vmatprep.subr.bf16.mxu0 0
        %657 = vmatpush2.bf16.msra.mxu0 0
        %658 = vmatprep.subr.bf16.mxu0 0
        %659 = vmatpush2.bf16.msra.mxu0 0
        %660 = vmatprep.subr.bf16.mxu0 0
        %661 = vmatpush2.bf16.msra.mxu0 0
        %662 = vmatprep.subr.bf16.mxu0 0
        %663 = vmatpush2.bf16.msra.mxu0 0
        %664 = vmatprep.mubr.bf16.mxu0 0
        %665 = vmatmul.mubr.bf16.gmra.mxu0 %v491
        %v666 = vpop.f32.mrf.mxu0
        %v667 = vadd.f32 %v495, %v666
        %v668 = vpop.f32.mrf.mxu0
        %v669 = vadd.f32 %v499, %v668
        %v670 = vpop.f32.mrf.mxu0
        %v671 = vpop.f32.mrf.mxu0
        %672 = vdwg.mxu0
        %673 = vmatprep.subr.bf16.mxu0 0
        %674 = vmatpush1.bf16.msra.mxu0 %v607
        %675 = vmatprep.subr.bf16.mxu0 0
        %676 = vmatpush1.bf16.msra.mxu0 %v604
        %677 = vmatprep.subr.bf16.mxu0 0
        %678 = vmatpush1.bf16.msra.mxu0 %v601
        %679 = vmatprep.subr.bf16.mxu0 0
        %680 = vmatpush1.bf16.msra.mxu0 %v598
        %681 = vmatprep.subr.bf16.mxu0 0
        %682 = vmatpush1.bf16.msra.mxu0 %v595
        %683 = vmatprep.subr.bf16.mxu0 0
        %684 = vmatpush1.bf16.msra.mxu0 %v592
        %685 = vmatprep.subr.bf16.mxu0 0
        %686 = vmatpush1.bf16.msra.mxu0 %v589
        %687 = vmatprep.subr.bf16.mxu0 0
        %688 = vmatpush1.bf16.msra.mxu0 %v586
        %689 = vmatprep.subr.bf16.mxu0 0
        %690 = vmatpush2.bf16.msra.mxu0 0
        %691 = vmatprep.subr.bf16.mxu0 0
        %692 = vmatpush2.bf16.msra.mxu0 0
        %693 = vmatprep.subr.bf16.mxu0 0
        %694 = vmatpush2.bf16.msra.mxu0 0
        %695 = vmatprep.subr.bf16.mxu0 0
        %696 = vmatpush2.bf16.msra.mxu0 0
        %697 = vmatprep.subr.bf16.mxu0 0
        %698 = vmatpush2.bf16.msra.mxu0 0
        %699 = vmatprep.subr.bf16.mxu0 0
        %700 = vmatpush2.bf16.msra.mxu0 0
        %701 = vmatprep.subr.bf16.mxu0 0
        %702 = vmatpush2.bf16.msra.mxu0 0
        %703 = vmatprep.subr.bf16.mxu0 0
        %704 = vmatpush2.bf16.msra.mxu0 0
        %705 = vmatprep.mubr.bf16.mxu0 0
        %706 = vmatmul.mubr.bf16.gmra.mxu0 %v491
        %v707 = vpop.f32.mrf.mxu0
        %v708 = vadd.f32 %v503, %v707
        %v709 = vpop.f32.mrf.mxu0
        %v710 = vpop.f32.mrf.mxu0
        %v711 = vpop.f32.mrf.mxu0
        %712 = vdwg.mxu0
        %v713 = vmul.f32 %v667, %v332
        %v714 = vpack.c.bf16 %v667, %v667
        %v731 = vunpack.c.l.b16 %v335
        %v732 = vunpack.c.l.b16 %v336
        %v733 = vunpack.c.l.b16 %v337
        %v734 = vunpack.c.l.b16 %v338
        %v735 = vunpack.c.l.b16 %v339
        %v736 = vunpack.c.l.b16 %v340
        %v737 = vunpack.c.l.b16 %v341
        %v738 = vunpack.c.l.b16 %v342
        %v739 = vunpack.c.l.b16 %v343
        %v740 = vunpack.c.l.b16 %v344
        %v741 = vunpack.c.l.b16 %v345
        %v742 = vunpack.c.l.b16 %v346
        %v743 = vunpack.c.l.b16 %v347
        %v744 = vunpack.c.l.b16 %v348
        %v745 = vunpack.c.l.b16 %v349
        %v746 = vunpack.c.l.b16 %v350
        %v747 = vpack.c.b16 %v732, %v731
        %v748 = vpack.c.b16 %v734, %v733
        %v749 = vpack.c.b16 %v736, %v735
        %v750 = vpack.c.b16 %v738, %v737
        %v751 = vpack.c.b16 %v740, %v739
        %v752 = vpack.c.b16 %v742, %v741
        %v753 = vpack.c.b16 %v744, %v743
        %v754 = vpack.c.b16 %v746, %v745
        %763 = vmatprep.subr.bf16.mxu0 0
        %764 = vmatpush1.bf16.msra.mxu0 %v754
        %765 = vmatprep.subr.bf16.mxu0 0
        %766 = vmatpush1.bf16.msra.mxu0 %v753
        %767 = vmatprep.subr.bf16.mxu0 0
        %768 = vmatpush1.bf16.msra.mxu0 %v752
        %769 = vmatprep.subr.bf16.mxu0 0
        %770 = vmatpush1.bf16.msra.mxu0 %v751
        %771 = vmatprep.subr.bf16.mxu0 0
        %772 = vmatpush1.bf16.msra.mxu0 %v750
        %773 = vmatprep.subr.bf16.mxu0 0
        %774 = vmatpush1.bf16.msra.mxu0 %v749
        %775 = vmatprep.subr.bf16.mxu0 0
        %776 = vmatpush1.bf16.msra.mxu0 %v748
        %777 = vmatprep.subr.bf16.mxu0 0
        %778 = vmatpush1.bf16.msra.mxu0 %v747
        %779 = vmatprep.subr.bf16.mxu0 0
        %780 = vmatpush2.bf16.msra.mxu0 0
        %781 = vmatprep.subr.bf16.mxu0 0
        %782 = vmatpush2.bf16.msra.mxu0 0
        %783 = vmatprep.subr.bf16.mxu0 0
        %784 = vmatpush2.bf16.msra.mxu0 0
        %785 = vmatprep.subr.bf16.mxu0 0
        %786 = vmatpush2.bf16.msra.mxu0 0
        %787 = vmatprep.subr.bf16.mxu0 0
        %788 = vmatpush2.bf16.msra.mxu0 0
        %789 = vmatprep.subr.bf16.mxu0 0
        %790 = vmatpush2.bf16.msra.mxu0 0
        %791 = vmatprep.subr.bf16.mxu0 0
        %792 = vmatpush2.bf16.msra.mxu0 0
        %793 = vmatprep.subr.bf16.mxu0 0
        %794 = vmatpush2.bf16.msra.mxu0 0
        %795 = vmatprep.mubr.bf16.mxu0 0
        %796 = vmatmul.mubr.bf16.gmra.mxu0 %v714
        %v797 = vpop.f32.mrf.mxu0
        %v798 = vadd.f32 0.0, %v797
        %v799 = vpop.f32.mrf.mxu0
        %v800 = vpop.f32.mrf.mxu0
        %v801 = vpop.f32.mrf.mxu0
        %802 = vdwg.mxu0
        %v803 = vmul.f32 %v798, %v334
        %v804 = vadd.f32 %v713, %v803
        %v805 = vmul.f32 %v669, %v332
        %v806 = vpack.c.bf16 %v669, %v669
        %807 = vmatprep.subr.bf16.mxu0 0
        %808 = vmatpush1.bf16.msra.mxu0 %v754
        %809 = vmatprep.subr.bf16.mxu0 0
        %810 = vmatpush1.bf16.msra.mxu0 %v753
        %811 = vmatprep.subr.bf16.mxu0 0
        %812 = vmatpush1.bf16.msra.mxu0 %v752
        %813 = vmatprep.subr.bf16.mxu0 0
        %814 = vmatpush1.bf16.msra.mxu0 %v751
        %815 = vmatprep.subr.bf16.mxu0 0
        %816 = vmatpush1.bf16.msra.mxu0 %v750
        %817 = vmatprep.subr.bf16.mxu0 0
        %818 = vmatpush1.bf16.msra.mxu0 %v749
        %819 = vmatprep.subr.bf16.mxu0 0
        %820 = vmatpush1.bf16.msra.mxu0 %v748
        %821 = vmatprep.subr.bf16.mxu0 0
        %822 = vmatpush1.bf16.msra.mxu0 %v747
        %823 = vmatprep.subr.bf16.mxu0 0
        %824 = vmatpush2.bf16.msra.mxu0 0
        %825 = vmatprep.subr.bf16.mxu0 0
        %826 = vmatpush2.bf16.msra.mxu0 0
        %827 = vmatprep.subr.bf16.mxu0 0
        %828 = vmatpush2.bf16.msra.mxu0 0
        %829 = vmatprep.subr.bf16.mxu0 0
        %830 = vmatpush2.bf16.msra.mxu0 0
        %831 = vmatprep.subr.bf16.mxu0 0
        %832 = vmatpush2.bf16.msra.mxu0 0
        %833 = vmatprep.subr.bf16.mxu0 0
        %834 = vmatpush2.bf16.msra.mxu0 0
        %835 = vmatprep.subr.bf16.mxu0 0
        %836 = vmatpush2.bf16.msra.mxu0 0
        %837 = vmatprep.subr.bf16.mxu0 0
        %838 = vmatpush2.bf16.msra.mxu0 0
        %839 = vmatprep.mubr.bf16.mxu0 0
        %840 = vmatmul.mubr.bf16.gmra.mxu0 %v806
        %v841 = vpop.f32.mrf.mxu0
        %v842 = vadd.f32 0.0, %v841
        %v843 = vpop.f32.mrf.mxu0
        %v844 = vpop.f32.mrf.mxu0
        %v845 = vpop.f32.mrf.mxu0
        %846 = vdwg.mxu0
        %v847 = vmul.f32 %v842, %v334
        %v848 = vadd.f32 %v805, %v847
        %v849 = vpack.c.bf16 %v804, %v804
        %v850 = vpack.c.bf16 %v848, %v848
        %v851 = vpack.c.bf16 %v708, %v708
        %v852 = vmul.bf16 %v849, %v370
        %853 = vmatprep.subr.bf16.mxu0 0
        %854 = vmatpush1.bf16.xpose.msra.mxu0 0
        %855 = vmatprep.subr.bf16.mxu0 0
        %856 = vmatpush1.bf16.xpose.msra.mxu0 0
        %857 = vmatprep.subr.bf16.mxu0 0
        %858 = vmatpush1.bf16.xpose.msra.mxu0 0
        %859 = vmatprep.subr.bf16.mxu0 0
        %860 = vmatpush1.bf16.xpose.msra.mxu0 0
        %861 = vmatprep.subr.bf16.mxu0 0
        %862 = vmatpush1.bf16.xpose.msra.mxu0 0
        %863 = vmatprep.subr.bf16.mxu0 0
        %864 = vmatpush1.bf16.xpose.msra.mxu0 0
        %865 = vmatprep.subr.bf16.mxu0 0
        %866 = vmatpush1.bf16.xpose.msra.mxu0 0
        %867 = vmatprep.subr.bf16.mxu0 0
        %868 = vmatpush1.bf16.xpose.msra.mxu0 %v850
        %869 = vmatprep.subr.bf16.mxu0 0
        %870 = vmatpush2.bf16.xpose.msra.mxu0 0
        %871 = vmatprep.subr.bf16.mxu0 0
        %872 = vmatpush2.bf16.xpose.msra.mxu0 0
        %873 = vmatprep.subr.bf16.mxu0 0
        %874 = vmatpush2.bf16.xpose.msra.mxu0 0
        %875 = vmatprep.subr.bf16.mxu0 0
        %876 = vmatpush2.bf16.xpose.msra.mxu0 0
        %877 = vmatprep.subr.bf16.mxu0 0
        %878 = vmatpush2.bf16.xpose.msra.mxu0 0
        %879 = vmatprep.subr.bf16.mxu0 0
        %880 = vmatpush2.bf16.xpose.msra.mxu0 0
        %881 = vmatprep.subr.bf16.mxu0 0
        %882 = vmatpush2.bf16.xpose.msra.mxu0 0
        %883 = vmatprep.subr.bf16.mxu0 0
        %884 = vmatpush2.bf16.xpose.msra.mxu0 0
        %885 = vmatprep.mubr.bf16.mxu0 0
        %886 = vmatmul.mubr.bf16.gmra.mxu0 %v852
        %v887 = vpop.f32.mrf.mxu0
        %v888 = vadd.f32 0.0, %v887
        %v889 = vpop.f32.mrf.mxu0
        %v890 = vpop.f32.mrf.mxu0
        %v891 = vpop.f32.mrf.mxu0
        %892 = vdwg.mxu0
        %v893 = vmul.f32 %v888, 0.35355338
        %v894 = vadd.f32 %v893, %v365
        %vm895 = vcmask 64512
        %v896 = vsel %vm895, %v894, -inf
        %897 = vmax.xlane.f32.xlu0 %v896
        %v898 = vpop.xlane.xlu0 %897
        %v899 = vsub.f32 %v894, %v898
        %v900 = vmul.f32 %v899, 1.442695
        %v901 = vpow.pop %v900
        %v902 = vsel %vm895, %v901, 0.0
        %903 = vadd.xlane.f32.xlu0 %v902
        %v904 = vpop.xlane.xlu0 %903
        %v905 = vrcp.pop %v904
        %v906 = vmul.f32 %v901, %v905
        %v907 = vpack.c.bf16 %v906, %v906
        %v908 = vmul.bf16 %v851, %v370
        %v909 = vmul.bf16 %v849, %v375
        %910 = vmatprep.subr.bf16.mxu0 0
        %911 = vmatpush1.bf16.xpose.msra.mxu0 0
        %912 = vmatprep.subr.bf16.mxu0 0
        %913 = vmatpush1.bf16.xpose.msra.mxu0 0
        %914 = vmatprep.subr.bf16.mxu0 0
        %915 = vmatpush1.bf16.xpose.msra.mxu0 0
        %916 = vmatprep.subr.bf16.mxu0 0
        %917 = vmatpush1.bf16.xpose.msra.mxu0 0
        %918 = vmatprep.subr.bf16.mxu0 0
        %919 = vmatpush1.bf16.xpose.msra.mxu0 0
        %920 = vmatprep.subr.bf16.mxu0 0
        %921 = vmatpush1.bf16.xpose.msra.mxu0 0
        %922 = vmatprep.subr.bf16.mxu0 0
        %923 = vmatpush1.bf16.xpose.msra.mxu0 0
        %924 = vmatprep.subr.bf16.mxu0 0
        %925 = vmatpush1.bf16.xpose.msra.mxu0 %v850
        %926 = vmatprep.subr.bf16.mxu0 0
        %927 = vmatpush2.bf16.xpose.msra.mxu0 0
        %928 = vmatprep.subr.bf16.mxu0 0
        %929 = vmatpush2.bf16.xpose.msra.mxu0 0
        %930 = vmatprep.subr.bf16.mxu0 0
        %931 = vmatpush2.bf16.xpose.msra.mxu0 0
        %932 = vmatprep.subr.bf16.mxu0 0
        %933 = vmatpush2.bf16.xpose.msra.mxu0 0
        %934 = vmatprep.subr.bf16.mxu0 0
        %935 = vmatpush2.bf16.xpose.msra.mxu0 0
        %936 = vmatprep.subr.bf16.mxu0 0
        %937 = vmatpush2.bf16.xpose.msra.mxu0 0
        %938 = vmatprep.subr.bf16.mxu0 0
        %939 = vmatpush2.bf16.xpose.msra.mxu0 0
        %940 = vmatprep.subr.bf16.mxu0 0
        %941 = vmatpush2.bf16.xpose.msra.mxu0 0
        %942 = vmatprep.mubr.bf16.mxu0 0
        %943 = vmatmul.mubr.bf16.gmra.mxu0 %v909
        %v944 = vpop.f32.mrf.mxu0
        %v945 = vadd.f32 0.0, %v944
        %v946 = vpop.f32.mrf.mxu0
        %v947 = vpop.f32.mrf.mxu0
        %v948 = vpop.f32.mrf.mxu0
        %949 = vdwg.mxu0
        %v950 = vmul.f32 %v945, 0.35355338
        %v951 = vadd.f32 %v950, %v365
        %v952 = vsel %vm895, %v951, -inf
        %953 = vmax.xlane.f32.xlu0 %v952
        %v954 = vpop.xlane.xlu0 %953
        %v955 = vsub.f32 %v951, %v954
        %v956 = vmul.f32 %v955, 1.442695
        %v957 = vpow.pop %v956
        %v958 = vsel %vm895, %v957, 0.0
        %959 = vadd.xlane.f32.xlu0 %v958
        %v960 = vpop.xlane.xlu0 %959
        %v961 = vrcp.pop %v960
        %v962 = vmul.f32 %v957, %v961
        %v963 = vpack.c.bf16 %v962, %v962
        %v964 = vmul.bf16 %v851, %v375
        %v966 = vsel %vm895, %v963, 0
        %vm968 = vcmask 1043456
        %v970 = vsel %vm968, %v964, 0
        %972 = vmatprep.subr.bf16.mxu0 0
        %973 = vmatpush1.bf16.msra.mxu0 0
        %974 = vmatprep.subr.bf16.mxu0 0
        %975 = vmatpush1.bf16.msra.mxu0 0
        %976 = vmatprep.subr.bf16.mxu0 0
        %977 = vmatpush1.bf16.msra.mxu0 0
        %978 = vmatprep.subr.bf16.mxu0 0
        %979 = vmatpush1.bf16.msra.mxu0 0
        %980 = vmatprep.subr.bf16.mxu0 0
        %981 = vmatpush1.bf16.msra.mxu0 0
        %982 = vmatprep.subr.bf16.mxu0 0
        %983 = vmatpush1.bf16.msra.mxu0 0
        %984 = vmatprep.subr.bf16.mxu0 0
        %985 = vmatpush1.bf16.msra.mxu0 0
        %986 = vmatprep.subr.bf16.mxu0 0
        %987 = vmatpush1.bf16.msra.mxu0 %v970
        %988 = vmatprep.subr.bf16.mxu0 0
        %989 = vmatpush2.bf16.msra.mxu0 0
        %990 = vmatprep.subr.bf16.mxu0 0
        %991 = vmatpush2.bf16.msra.mxu0 0
        %992 = vmatprep.subr.bf16.mxu0 0
        %993 = vmatpush2.bf16.msra.mxu0 0
        %994 = vmatprep.subr.bf16.mxu0 0
        %995 = vmatpush2.bf16.msra.mxu0 0
        %996 = vmatprep.subr.bf16.mxu0 0
        %997 = vmatpush2.bf16.msra.mxu0 0
        %998 = vmatprep.subr.bf16.mxu0 0
        %999 = vmatpush2.bf16.msra.mxu0 0
        %1000 = vmatprep.subr.bf16.mxu0 0
        %1001 = vmatpush2.bf16.msra.mxu0 0
        %1002 = vmatprep.subr.bf16.mxu0 0
        %1003 = vmatpush2.bf16.msra.mxu0 0
        %1004 = vmatprep.mubr.bf16.mxu0 0
        %1005 = vmatmul.mubr.bf16.gmra.mxu0 %v966
        %v1006 = vpop.f32.mrf.mxu0
        %v1007 = vadd.f32 0.0, %v1006
        %v1008 = vpop.f32.mrf.mxu0
        %v1009 = vpop.f32.mrf.mxu0
        %v1010 = vpop.f32.mrf.mxu0
        %1011 = vdwg.mxu0
        %v1013 = vsel %vm895, %v907, 0
        %v1016 = vsel %vm968, %v908, 0
        %1018 = vmatprep.subr.bf16.mxu0 0
        %1019 = vmatpush1.bf16.msra.mxu0 0
        %1020 = vmatprep.subr.bf16.mxu0 0
        %1021 = vmatpush1.bf16.msra.mxu0 0
        %1022 = vmatprep.subr.bf16.mxu0 0
        %1023 = vmatpush1.bf16.msra.mxu0 0
        %1024 = vmatprep.subr.bf16.mxu0 0
        %1025 = vmatpush1.bf16.msra.mxu0 0
        %1026 = vmatprep.subr.bf16.mxu0 0
        %1027 = vmatpush1.bf16.msra.mxu0 0
        %1028 = vmatprep.subr.bf16.mxu0 0
        %1029 = vmatpush1.bf16.msra.mxu0 0
        %1030 = vmatprep.subr.bf16.mxu0 0
        %1031 = vmatpush1.bf16.msra.mxu0 0
        %1032 = vmatprep.subr.bf16.mxu0 0
        %1033 = vmatpush1.bf16.msra.mxu0 %v1016
        %1034 = vmatprep.subr.bf16.mxu0 0
        %1035 = vmatpush2.bf16.msra.mxu0 0
        %1036 = vmatprep.subr.bf16.mxu0 0
        %1037 = vmatpush2.bf16.msra.mxu0 0
        %1038 = vmatprep.subr.bf16.mxu0 0
        %1039 = vmatpush2.bf16.msra.mxu0 0
        %1040 = vmatprep.subr.bf16.mxu0 0
        %1041 = vmatpush2.bf16.msra.mxu0 0
        %1042 = vmatprep.subr.bf16.mxu0 0
        %1043 = vmatpush2.bf16.msra.mxu0 0
        %1044 = vmatprep.subr.bf16.mxu0 0
        %1045 = vmatpush2.bf16.msra.mxu0 0
        %1046 = vmatprep.subr.bf16.mxu0 0
        %1047 = vmatpush2.bf16.msra.mxu0 0
        %1048 = vmatprep.subr.bf16.mxu0 0
        %1049 = vmatpush2.bf16.msra.mxu0 0
        %1050 = vmatprep.mubr.bf16.mxu0 0
        %1051 = vmatmul.mubr.bf16.gmra.mxu0 %v1013
        %v1052 = vpop.f32.mrf.mxu0
        %v1053 = vadd.f32 %v1007, %v1052
        %v1054 = vpop.f32.mrf.mxu0
        %v1055 = vpop.f32.mrf.mxu0
        %v1056 = vpop.f32.mrf.mxu0
        %1057 = vdwg.mxu0
        %v1058 = vmul.bf16 %v849, %v380
        %1059 = vmatprep.subr.bf16.mxu0 0
        %1060 = vmatpush1.bf16.xpose.msra.mxu0 0
        %1061 = vmatprep.subr.bf16.mxu0 0
        %1062 = vmatpush1.bf16.xpose.msra.mxu0 0
        %1063 = vmatprep.subr.bf16.mxu0 0
        %1064 = vmatpush1.bf16.xpose.msra.mxu0 0
        %1065 = vmatprep.subr.bf16.mxu0 0
        %1066 = vmatpush1.bf16.xpose.msra.mxu0 0
        %1067 = vmatprep.subr.bf16.mxu0 0
        %1068 = vmatpush1.bf16.xpose.msra.mxu0 0
        %1069 = vmatprep.subr.bf16.mxu0 0
        %1070 = vmatpush1.bf16.xpose.msra.mxu0 0
        %1071 = vmatprep.subr.bf16.mxu0 0
        %1072 = vmatpush1.bf16.xpose.msra.mxu0 0
        %1073 = vmatprep.subr.bf16.mxu0 0
        %1074 = vmatpush1.bf16.xpose.msra.mxu0 %v850
        %1075 = vmatprep.subr.bf16.mxu0 0
        %1076 = vmatpush2.bf16.xpose.msra.mxu0 0
        %1077 = vmatprep.subr.bf16.mxu0 0
        %1078 = vmatpush2.bf16.xpose.msra.mxu0 0
        %1079 = vmatprep.subr.bf16.mxu0 0
        %1080 = vmatpush2.bf16.xpose.msra.mxu0 0
        %1081 = vmatprep.subr.bf16.mxu0 0
        %1082 = vmatpush2.bf16.xpose.msra.mxu0 0
        %1083 = vmatprep.subr.bf16.mxu0 0
        %1084 = vmatpush2.bf16.xpose.msra.mxu0 0
        %1085 = vmatprep.subr.bf16.mxu0 0
        %1086 = vmatpush2.bf16.xpose.msra.mxu0 0
        %1087 = vmatprep.subr.bf16.mxu0 0
        %1088 = vmatpush2.bf16.xpose.msra.mxu0 0
        %1089 = vmatprep.subr.bf16.mxu0 0
        %1090 = vmatpush2.bf16.xpose.msra.mxu0 0
        %1091 = vmatprep.mubr.bf16.mxu0 0
        %1092 = vmatmul.mubr.bf16.gmra.mxu0 %v1058
        %v1093 = vpop.f32.mrf.mxu0
        %v1094 = vadd.f32 0.0, %v1093
        %v1095 = vpop.f32.mrf.mxu0
        %v1096 = vpop.f32.mrf.mxu0
        %v1097 = vpop.f32.mrf.mxu0
        %1098 = vdwg.mxu0
        %v1099 = vmul.f32 %v1094, 0.35355338
        %v1100 = vadd.f32 %v1099, %v365
        %v1101 = vsel %vm895, %v1100, -inf
        %1102 = vmax.xlane.f32.xlu0 %v1101
        %v1103 = vpop.xlane.xlu0 %1102
        %v1104 = vsub.f32 %v1100, %v1103
        %v1105 = vmul.f32 %v1104, 1.442695
        %v1106 = vpow.pop %v1105
        %v1107 = vsel %vm895, %v1106, 0.0
        %1108 = vadd.xlane.f32.xlu0 %v1107
        %v1109 = vpop.xlane.xlu0 %1108
        %v1110 = vrcp.pop %v1109
        %v1111 = vmul.f32 %v1106, %v1110
        %v1112 = vpack.c.bf16 %v1111, %v1111
        %v1113 = vmul.bf16 %v851, %v380
        %v1115 = vsel %vm895, %v1112, 0
        %v1118 = vsel %vm968, %v1113, 0
        %1120 = vmatprep.subr.bf16.mxu0 0
        %1121 = vmatpush1.bf16.msra.mxu0 0
        %1122 = vmatprep.subr.bf16.mxu0 0
        %1123 = vmatpush1.bf16.msra.mxu0 0
        %1124 = vmatprep.subr.bf16.mxu0 0
        %1125 = vmatpush1.bf16.msra.mxu0 0
        %1126 = vmatprep.subr.bf16.mxu0 0
        %1127 = vmatpush1.bf16.msra.mxu0 0
        %1128 = vmatprep.subr.bf16.mxu0 0
        %1129 = vmatpush1.bf16.msra.mxu0 0
        %1130 = vmatprep.subr.bf16.mxu0 0
        %1131 = vmatpush1.bf16.msra.mxu0 0
        %1132 = vmatprep.subr.bf16.mxu0 0
        %1133 = vmatpush1.bf16.msra.mxu0 0
        %1134 = vmatprep.subr.bf16.mxu0 0
        %1135 = vmatpush1.bf16.msra.mxu0 %v1118
        %1136 = vmatprep.subr.bf16.mxu0 0
        %1137 = vmatpush2.bf16.msra.mxu0 0
        %1138 = vmatprep.subr.bf16.mxu0 0
        %1139 = vmatpush2.bf16.msra.mxu0 0
        %1140 = vmatprep.subr.bf16.mxu0 0
        %1141 = vmatpush2.bf16.msra.mxu0 0
        %1142 = vmatprep.subr.bf16.mxu0 0
        %1143 = vmatpush2.bf16.msra.mxu0 0
        %1144 = vmatprep.subr.bf16.mxu0 0
        %1145 = vmatpush2.bf16.msra.mxu0 0
        %1146 = vmatprep.subr.bf16.mxu0 0
        %1147 = vmatpush2.bf16.msra.mxu0 0
        %1148 = vmatprep.subr.bf16.mxu0 0
        %1149 = vmatpush2.bf16.msra.mxu0 0
        %1150 = vmatprep.subr.bf16.mxu0 0
        %1151 = vmatpush2.bf16.msra.mxu0 0
        %1152 = vmatprep.mubr.bf16.mxu0 0
        %1153 = vmatmul.mubr.bf16.gmra.mxu0 %v1115
        %v1154 = vpop.f32.mrf.mxu0
        %v1155 = vadd.f32 0.0, %v1154
        %v1156 = vpop.f32.mrf.mxu0
        %v1157 = vpop.f32.mrf.mxu0
        %v1158 = vpop.f32.mrf.mxu0
        %1159 = vdwg.mxu0
        %v1160 = vadd.f32 %v1053, %v1155
        %v1161 = vmul.bf16 %v849, %v385
        %1162 = vmatprep.subr.bf16.mxu0 0
        %1163 = vmatpush1.bf16.xpose.msra.mxu0 0
        %1164 = vmatprep.subr.bf16.mxu0 0
        %1165 = vmatpush1.bf16.xpose.msra.mxu0 0
        %1166 = vmatprep.subr.bf16.mxu0 0
        %1167 = vmatpush1.bf16.xpose.msra.mxu0 0
        %1168 = vmatprep.subr.bf16.mxu0 0
        %1169 = vmatpush1.bf16.xpose.msra.mxu0 0
        %1170 = vmatprep.subr.bf16.mxu0 0
        %1171 = vmatpush1.bf16.xpose.msra.mxu0 0
        %1172 = vmatprep.subr.bf16.mxu0 0
        %1173 = vmatpush1.bf16.xpose.msra.mxu0 0
        %1174 = vmatprep.subr.bf16.mxu0 0
        %1175 = vmatpush1.bf16.xpose.msra.mxu0 0
        %1176 = vmatprep.subr.bf16.mxu0 0
        %1177 = vmatpush1.bf16.xpose.msra.mxu0 %v850
        %1178 = vmatprep.subr.bf16.mxu0 0
        %1179 = vmatpush2.bf16.xpose.msra.mxu0 0
        %1180 = vmatprep.subr.bf16.mxu0 0
        %1181 = vmatpush2.bf16.xpose.msra.mxu0 0
        %1182 = vmatprep.subr.bf16.mxu0 0
        %1183 = vmatpush2.bf16.xpose.msra.mxu0 0
        %1184 = vmatprep.subr.bf16.mxu0 0
        %1185 = vmatpush2.bf16.xpose.msra.mxu0 0
        %1186 = vmatprep.subr.bf16.mxu0 0
        %1187 = vmatpush2.bf16.xpose.msra.mxu0 0
        %1188 = vmatprep.subr.bf16.mxu0 0
        %1189 = vmatpush2.bf16.xpose.msra.mxu0 0
        %1190 = vmatprep.subr.bf16.mxu0 0
        %1191 = vmatpush2.bf16.xpose.msra.mxu0 0
        %1192 = vmatprep.subr.bf16.mxu0 0
        %1193 = vmatpush2.bf16.xpose.msra.mxu0 0
        %1194 = vmatprep.mubr.bf16.mxu0 0
        %1195 = vmatmul.mubr.bf16.gmra.mxu0 %v1161
        %v1196 = vpop.f32.mrf.mxu0
        %v1197 = vadd.f32 0.0, %v1196
        %v1198 = vpop.f32.mrf.mxu0
        %v1199 = vpop.f32.mrf.mxu0
        %v1200 = vpop.f32.mrf.mxu0
        %1201 = vdwg.mxu0
        %v1202 = vmul.f32 %v1197, 0.35355338
        %v1203 = vadd.f32 %v1202, %v365
        %v1204 = vsel %vm895, %v1203, -inf
        %1205 = vmax.xlane.f32.xlu0 %v1204
        %v1206 = vpop.xlane.xlu0 %1205
        %v1207 = vsub.f32 %v1203, %v1206
        %v1208 = vmul.f32 %v1207, 1.442695
        %v1209 = vpow.pop %v1208
        %v1210 = vsel %vm895, %v1209, 0.0
        %1211 = vadd.xlane.f32.xlu0 %v1210
        %v1212 = vpop.xlane.xlu0 %1211
        %v1213 = vrcp.pop %v1212
        %v1214 = vmul.f32 %v1209, %v1213
        %v1215 = vpack.c.bf16 %v1214, %v1214
        %v1216 = vmul.bf16 %v851, %v385
        %v1218 = vsel %vm895, %v1215, 0
        %v1221 = vsel %vm968, %v1216, 0
        %1223 = vmatprep.subr.bf16.mxu0 0
        %1224 = vmatpush1.bf16.msra.mxu0 0
        %1225 = vmatprep.subr.bf16.mxu0 0
        %1226 = vmatpush1.bf16.msra.mxu0 0
        %1227 = vmatprep.subr.bf16.mxu0 0
        %1228 = vmatpush1.bf16.msra.mxu0 0
        %1229 = vmatprep.subr.bf16.mxu0 0
        %1230 = vmatpush1.bf16.msra.mxu0 0
        %1231 = vmatprep.subr.bf16.mxu0 0
        %1232 = vmatpush1.bf16.msra.mxu0 0
        %1233 = vmatprep.subr.bf16.mxu0 0
        %1234 = vmatpush1.bf16.msra.mxu0 0
        %1235 = vmatprep.subr.bf16.mxu0 0
        %1236 = vmatpush1.bf16.msra.mxu0 0
        %1237 = vmatprep.subr.bf16.mxu0 0
        %1238 = vmatpush1.bf16.msra.mxu0 %v1221
        %1239 = vmatprep.subr.bf16.mxu0 0
        %1240 = vmatpush2.bf16.msra.mxu0 0
        %1241 = vmatprep.subr.bf16.mxu0 0
        %1242 = vmatpush2.bf16.msra.mxu0 0
        %1243 = vmatprep.subr.bf16.mxu0 0
        %1244 = vmatpush2.bf16.msra.mxu0 0
        %1245 = vmatprep.subr.bf16.mxu0 0
        %1246 = vmatpush2.bf16.msra.mxu0 0
        %1247 = vmatprep.subr.bf16.mxu0 0
        %1248 = vmatpush2.bf16.msra.mxu0 0
        %1249 = vmatprep.subr.bf16.mxu0 0
        %1250 = vmatpush2.bf16.msra.mxu0 0
        %1251 = vmatprep.subr.bf16.mxu0 0
        %1252 = vmatpush2.bf16.msra.mxu0 0
        %1253 = vmatprep.subr.bf16.mxu0 0
        %1254 = vmatpush2.bf16.msra.mxu0 0
        %1255 = vmatprep.mubr.bf16.mxu0 0
        %1256 = vmatmul.mubr.bf16.gmra.mxu0 %v1218
        %v1257 = vpop.f32.mrf.mxu0
        %v1258 = vadd.f32 0.0, %v1257
        %v1259 = vpop.f32.mrf.mxu0
        %v1260 = vpop.f32.mrf.mxu0
        %v1261 = vpop.f32.mrf.mxu0
        %1262 = vdwg.mxu0
        %v1263 = vadd.f32 %v1160, %v1258
        %v1264 = vpack.c.bf16 %v1263, %v1263
        %v1265 = vlaneseq
        %v1266 = vshrl.u32 %v1265, 7
        %v1267 = vsub.s32 5, %v1266
        %v1268 = vrot.slane %v466, %v1267
        %v1285 = vunpack.c.l.b16 %v418
        %v1286 = vunpack.c.l.b16 %v419
        %v1287 = vunpack.c.l.b16 %v420
        %v1288 = vunpack.c.l.b16 %v421
        %v1289 = vunpack.c.l.b16 %v422
        %v1290 = vunpack.c.l.b16 %v423
        %v1291 = vunpack.c.l.b16 %v424
        %v1292 = vunpack.c.l.b16 %v425
        %v1293 = vunpack.c.l.b16 %v426
        %v1294 = vunpack.c.l.b16 %v427
        %v1295 = vunpack.c.l.b16 %v428
        %v1296 = vunpack.c.l.b16 %v429
        %v1297 = vunpack.c.l.b16 %v430
        %v1298 = vunpack.c.l.b16 %v431
        %v1299 = vunpack.c.l.b16 %v432
        %v1300 = vunpack.c.l.b16 %v433
        %v1301 = vpack.c.b16 %v1286, %v1285
        %v1302 = vpack.c.b16 %v1288, %v1287
        %v1303 = vpack.c.b16 %v1290, %v1289
        %v1304 = vpack.c.b16 %v1292, %v1291
        %v1305 = vpack.c.b16 %v1294, %v1293
        %v1306 = vpack.c.b16 %v1296, %v1295
        %v1307 = vpack.c.b16 %v1298, %v1297
        %v1308 = vpack.c.b16 %v1300, %v1299
        %1317 = vmatprep.subr.bf16.mxu0 0
        %1318 = vmatpush1.bf16.msra.mxu0 %v1308
        %1319 = vmatprep.subr.bf16.mxu0 0
        %1320 = vmatpush1.bf16.msra.mxu0 %v1307
        %1321 = vmatprep.subr.bf16.mxu0 0
        %1322 = vmatpush1.bf16.msra.mxu0 %v1306
        %1323 = vmatprep.subr.bf16.mxu0 0
        %1324 = vmatpush1.bf16.msra.mxu0 %v1305
        %1325 = vmatprep.subr.bf16.mxu0 0
        %1326 = vmatpush1.bf16.msra.mxu0 %v1304
        %1327 = vmatprep.subr.bf16.mxu0 0
        %1328 = vmatpush1.bf16.msra.mxu0 %v1303
        %1329 = vmatprep.subr.bf16.mxu0 0
        %1330 = vmatpush1.bf16.msra.mxu0 %v1302
        %1331 = vmatprep.subr.bf16.mxu0 0
        %1332 = vmatpush1.bf16.msra.mxu0 %v1301
        %1333 = vmatprep.subr.bf16.mxu0 0
        %1334 = vmatpush2.bf16.msra.mxu0 0
        %1335 = vmatprep.subr.bf16.mxu0 0
        %1336 = vmatpush2.bf16.msra.mxu0 0
        %1337 = vmatprep.subr.bf16.mxu0 0
        %1338 = vmatpush2.bf16.msra.mxu0 0
        %1339 = vmatprep.subr.bf16.mxu0 0
        %1340 = vmatpush2.bf16.msra.mxu0 0
        %1341 = vmatprep.subr.bf16.mxu0 0
        %1342 = vmatpush2.bf16.msra.mxu0 0
        %1343 = vmatprep.subr.bf16.mxu0 0
        %1344 = vmatpush2.bf16.msra.mxu0 0
        %1345 = vmatprep.subr.bf16.mxu0 0
        %1346 = vmatpush2.bf16.msra.mxu0 0
        %1347 = vmatprep.subr.bf16.mxu0 0
        %1348 = vmatpush2.bf16.msra.mxu0 0
        %1349 = vmatprep.mubr.bf16.mxu0 0
        %1350 = vmatmul.mubr.bf16.gmra.mxu0 %v1264
        %v1351 = vpop.f32.mrf.mxu0
        %v1352 = vadd.f32 %v1268, %v1351
        %v1353 = vpop.f32.mrf.mxu0
        %v1354 = vpop.f32.mrf.mxu0
        %v1355 = vpop.f32.mrf.mxu0
        %1356 = vdwg.mxu0
        %v1357 = vlaneseq
        %v1358 = vshrl.u32 %v1357, 7
        %v1359 = vsub.s32 3, %v1358
        %v1360 = vrot.slane %v466, %v1359
        %v1361 = vmul.f32 %v480, %v1360
        %v1362 = vlaneseq
        %v1363 = vshrl.u32 %v1362, 7
        %v1364 = vsub.s32 4, %v1363
        %v1365 = vrot.slane %v466, %v1364
        %v1366 = vadd.f32 %v1361, %v1365
        %v1367 = vpack.c.bf16 %v1366, %v1366
        %v1368 = vlaneseq
        %v1369 = vshrl.u32 %v1368, 7
        %v1370 = vsub.s32 6, %v1369
        %v1371 = vrot.slane %v466, %v1370
        %v1388 = vunpack.c.l.b16 %v434
        %v1389 = vunpack.c.l.b16 %v435
        %v1390 = vunpack.c.l.b16 %v436
        %v1391 = vunpack.c.l.b16 %v437
        %v1392 = vunpack.c.l.b16 %v438
        %v1393 = vunpack.c.l.b16 %v439
        %v1394 = vunpack.c.l.b16 %v440
        %v1395 = vunpack.c.l.b16 %v441
        %v1396 = vunpack.c.l.b16 %v442
        %v1397 = vunpack.c.l.b16 %v443
        %v1398 = vunpack.c.l.b16 %v444
        %v1399 = vunpack.c.l.b16 %v445
        %v1400 = vunpack.c.l.b16 %v446
        %v1401 = vunpack.c.l.b16 %v447
        %v1402 = vunpack.c.l.b16 %v448
        %v1403 = vunpack.c.l.b16 %v449
        %v1404 = vpack.c.b16 %v1389, %v1388
        %v1405 = vpack.c.b16 %v1391, %v1390
        %v1406 = vpack.c.b16 %v1393, %v1392
        %v1407 = vpack.c.b16 %v1395, %v1394
        %v1408 = vpack.c.b16 %v1397, %v1396
        %v1409 = vpack.c.b16 %v1399, %v1398
        %v1410 = vpack.c.b16 %v1401, %v1400
        %v1411 = vpack.c.b16 %v1403, %v1402
        %1420 = vmatprep.subr.bf16.mxu0 0
        %1421 = vmatpush1.bf16.msra.mxu0 %v1411
        %1422 = vmatprep.subr.bf16.mxu0 0
        %1423 = vmatpush1.bf16.msra.mxu0 %v1410
        %1424 = vmatprep.subr.bf16.mxu0 0
        %1425 = vmatpush1.bf16.msra.mxu0 %v1409
        %1426 = vmatprep.subr.bf16.mxu0 0
        %1427 = vmatpush1.bf16.msra.mxu0 %v1408
        %1428 = vmatprep.subr.bf16.mxu0 0
        %1429 = vmatpush1.bf16.msra.mxu0 %v1407
        %1430 = vmatprep.subr.bf16.mxu0 0
        %1431 = vmatpush1.bf16.msra.mxu0 %v1406
        %1432 = vmatprep.subr.bf16.mxu0 0
        %1433 = vmatpush1.bf16.msra.mxu0 %v1405
        %1434 = vmatprep.subr.bf16.mxu0 0
        %1435 = vmatpush1.bf16.msra.mxu0 %v1404
        %1436 = vmatprep.subr.bf16.mxu0 0
        %1437 = vmatpush2.bf16.msra.mxu0 0
        %1438 = vmatprep.subr.bf16.mxu0 0
        %1439 = vmatpush2.bf16.msra.mxu0 0
        %1440 = vmatprep.subr.bf16.mxu0 0
        %1441 = vmatpush2.bf16.msra.mxu0 0
        %1442 = vmatprep.subr.bf16.mxu0 0
        %1443 = vmatpush2.bf16.msra.mxu0 0
        %1444 = vmatprep.subr.bf16.mxu0 0
        %1445 = vmatpush2.bf16.msra.mxu0 0
        %1446 = vmatprep.subr.bf16.mxu0 0
        %1447 = vmatpush2.bf16.msra.mxu0 0
        %1448 = vmatprep.subr.bf16.mxu0 0
        %1449 = vmatpush2.bf16.msra.mxu0 0
        %1450 = vmatprep.subr.bf16.mxu0 0
        %1451 = vmatpush2.bf16.msra.mxu0 0
        %1452 = vmatprep.mubr.bf16.mxu0 0
        %1453 = vmatmul.mubr.bf16.gmra.mxu0 %v1367
        %v1454 = vpop.f32.mrf.mxu0
        %v1455 = vadd.f32 %v1371, %v1454
        %v1456 = vpop.f32.mrf.mxu0
        %v1457 = vpop.f32.mrf.mxu0
        %v1458 = vpop.f32.mrf.mxu0
        %1459 = vdwg.mxu0
        %v1460 = vmul.f32 %v1455, %v1455
        %v1461 = vmul.f32 %v1455, %v1460
        %v1462 = vmul.f32 %v1461, 0.044715
        %v1463 = vadd.f32 %v1455, %v1462
        %v1464 = vmul.f32 %v1463, 0.7978846
        %v1465 = vtanh.pop %v1464
        %v1466 = vadd.f32 %v1465, 1.0
        %v1467 = vmul.f32 %v1466, 0.5
        %v1468 = vmul.f32 %v1455, %v1467
        %v1469 = vpack.c.bf16 %v1468, %v1468
        %v1470 = vlaneseq
        %v1471 = vshrl.u32 %v1470, 7
        %v1472 = vsub.s32 7, %v1471
        %v1473 = vrot.slane %v466, %v1472
        %v1490 = vunpack.c.l.b16 %v450
        %v1491 = vunpack.c.l.b16 %v451
        %v1492 = vunpack.c.l.b16 %v452
        %v1493 = vunpack.c.l.b16 %v453
        %v1494 = vunpack.c.l.b16 %v454
        %v1495 = vunpack.c.l.b16 %v455
        %v1496 = vunpack.c.l.b16 %v456
        %v1497 = vunpack.c.l.b16 %v457
        %v1498 = vunpack.c.l.b16 %v458
        %v1499 = vunpack.c.l.b16 %v459
        %v1500 = vunpack.c.l.b16 %v460
        %v1501 = vunpack.c.l.b16 %v461
        %v1502 = vunpack.c.l.b16 %v462
        %v1503 = vunpack.c.l.b16 %v463
        %v1504 = vunpack.c.l.b16 %v464
        %v1505 = vunpack.c.l.b16 %v465
        %v1506 = vpack.c.b16 %v1491, %v1490
        %v1507 = vpack.c.b16 %v1493, %v1492
        %v1508 = vpack.c.b16 %v1495, %v1494
        %v1509 = vpack.c.b16 %v1497, %v1496
        %v1510 = vpack.c.b16 %v1499, %v1498
        %v1511 = vpack.c.b16 %v1501, %v1500
        %v1512 = vpack.c.b16 %v1503, %v1502
        %v1513 = vpack.c.b16 %v1505, %v1504
        %1522 = vmatprep.subr.bf16.mxu0 0
        %1523 = vmatpush1.bf16.msra.mxu0 %v1513
        %1524 = vmatprep.subr.bf16.mxu0 0
        %1525 = vmatpush1.bf16.msra.mxu0 %v1512
        %1526 = vmatprep.subr.bf16.mxu0 0
        %1527 = vmatpush1.bf16.msra.mxu0 %v1511
        %1528 = vmatprep.subr.bf16.mxu0 0
        %1529 = vmatpush1.bf16.msra.mxu0 %v1510
        %1530 = vmatprep.subr.bf16.mxu0 0
        %1531 = vmatpush1.bf16.msra.mxu0 %v1509
        %1532 = vmatprep.subr.bf16.mxu0 0
        %1533 = vmatpush1.bf16.msra.mxu0 %v1508
        %1534 = vmatprep.subr.bf16.mxu0 0
        %1535 = vmatpush1.bf16.msra.mxu0 %v1507
        %1536 = vmatprep.subr.bf16.mxu0 0
        %1537 = vmatpush1.bf16.msra.mxu0 %v1506
        %1538 = vmatprep.subr.bf16.mxu0 0
        %1539 = vmatpush2.bf16.msra.mxu0 0
        %1540 = vmatprep.subr.bf16.mxu0 0
        %1541 = vmatpush2.bf16.msra.mxu0 0
        %1542 = vmatprep.subr.bf16.mxu0 0
        %1543 = vmatpush2.bf16.msra.mxu0 0
        %1544 = vmatprep.subr.bf16.mxu0 0
        %1545 = vmatpush2.bf16.msra.mxu0 0
        %1546 = vmatprep.subr.bf16.mxu0 0
        %1547 = vmatpush2.bf16.msra.mxu0 0
        %1548 = vmatprep.subr.bf16.mxu0 0
        %1549 = vmatpush2.bf16.msra.mxu0 0
        %1550 = vmatprep.subr.bf16.mxu0 0
        %1551 = vmatpush2.bf16.msra.mxu0 0
        %1552 = vmatprep.subr.bf16.mxu0 0
        %1553 = vmatpush2.bf16.msra.mxu0 0
        %1554 = vmatprep.mubr.bf16.mxu0 0
        %1555 = vmatmul.mubr.bf16.gmra.mxu0 %v1469
        %v1556 = vpop.f32.mrf.mxu0
        %v1557 = vadd.f32 %v1473, %v1556
        %v1558 = vpop.f32.mrf.mxu0
        %v1559 = vpop.f32.mrf.mxu0
        %v1560 = vpop.f32.mrf.mxu0
        %1561 = vdwg.mxu0
        %v1562 = vadd.f32 %v331, %v1352
        %v1563 = vadd.f32 %v1562, %v1557
        %v1564 = vld [vmem:[#allocation2 + $0x18] sm:$0xff]
        %v1565 = vld [vmem:[#allocation2 + $0x20] sm:$0xf]
        %v1566 = vld [vmem:[#allocation2 + $0x48] sm:$0xff]
        %v1567 = vld [vmem:[#allocation2 + $0x50] sm:$0xf]
        %v1568 = vld [vmem:[#allocation2 + $0x78] sm:$0xff]
        %v1569 = vld [vmem:[#allocation2 + $0x80] sm:$0xf]
        %v1570 = vld [vmem:[#allocation2 + $0xa8] sm:$0xff]
        %v1571 = vld [vmem:[#allocation2 + $0xb0] sm:$0xf]
        %v1572 = vld [vmem:[#allocation2 + $0xd8] sm:$0xff]
        %v1573 = vld [vmem:[#allocation2 + $0xe0] sm:$0xf]
        %v1574 = vld [vmem:[#allocation2 + $0x108] sm:$0xff]
        %v1575 = vld [vmem:[#allocation2 + $0x110] sm:$0xf]
        %v1576 = vld [vmem:[#allocation2 + $0x138] sm:$0xff]
        %v1577 = vld [vmem:[#allocation2 + $0x140] sm:$0xf]
        %v1578 = vld [vmem:[#allocation2 + $0x168] sm:$0xff]
        %v1579 = vld [vmem:[#allocation2 + $0x170] sm:$0xf]
        %v1580 = vld [vmem:[#allocation2 + $0x198] sm:$0xff]
        %v1581 = vld [vmem:[#allocation2 + $0x1a0] sm:$0xf]
        %v1582 = vld [vmem:[#allocation2 + $0x1c8] sm:$0xff]
        %v1583 = vld [vmem:[#allocation2 + $0x1d0] sm:$0xf]
        %v1584 = vld [vmem:[#allocation2 + $0x1f8] sm:$0xff]
        %v1585 = vld [vmem:[#allocation2 + $0x200] sm:$0xf]
        %v1586 = vld [vmem:[#allocation2 + $0x228] sm:$0xff]
        %v1587 = vld [vmem:[#allocation2 + $0x230] sm:$0xf]
        %v1588 = vld [vmem:[#allocation2 + $0x258] sm:$0xff]
        %v1589 = vld [vmem:[#allocation2 + $0x260] sm:$0xf]
        %v1590 = vld [vmem:[#allocation2 + $0x288] sm:$0xff]
        %v1591 = vld [vmem:[#allocation2 + $0x290] sm:$0xf]
        %v1592 = vld [vmem:[#allocation2 + $0x2b8] sm:$0xff]
        %v1593 = vld [vmem:[#allocation2 + $0x2c0] sm:$0xf]
        %v1594 = vld [vmem:[#allocation2 + $0x2e8] sm:$0xff]
        %v1595 = vld [vmem:[#allocation2 + $0x2f0] sm:$0xf]
        %v1596 = vld [vmem:[#allocation2 + $0x24] sm:$0xf]
        %v1597 = vld [vmem:[#allocation2 + $0x54] sm:$0xf]
        %v1598 = vld [vmem:[#allocation2 + $0x84] sm:$0xf]
        %v1599 = vld [vmem:[#allocation2 + $0xb4] sm:$0xf]
        %v1600 = vld [vmem:[#allocation2 + $0xe4] sm:$0xf]
        %v1601 = vld [vmem:[#allocation2 + $0x114] sm:$0xf]
        %v1602 = vld [vmem:[#allocation2 + $0x144] sm:$0xf]
        %v1603 = vld [vmem:[#allocation2 + $0x174] sm:$0xf]
        %v1604 = vld [vmem:[#allocation2 + $0x1a4] sm:$0xf]
        %v1605 = vld [vmem:[#allocation2 + $0x1d4] sm:$0xf]
        %v1606 = vld [vmem:[#allocation2 + $0x204] sm:$0xf]
        %v1607 = vld [vmem:[#allocation2 + $0x234] sm:$0xf]
        %v1608 = vld [vmem:[#allocation2 + $0x264] sm:$0xf]
        %v1609 = vld [vmem:[#allocation2 + $0x294] sm:$0xf]
        %v1610 = vld [vmem:[#allocation2 + $0x2c4] sm:$0xf]
        %v1611 = vld [vmem:[#allocation2 + $0x2f4] sm:$0xf]
        %v1612 = vld [vmem:[#allocation2 + $0x28] sm:$0xf]
        %v1613 = vld [vmem:[#allocation2 + $0x58] sm:$0xf]
        %v1614 = vld [vmem:[#allocation2 + $0x88] sm:$0xf]
        %v1615 = vld [vmem:[#allocation2 + $0xb8] sm:$0xf]
        %v1616 = vld [vmem:[#allocation2 + $0xe8] sm:$0xf]
        %v1617 = vld [vmem:[#allocation2 + $0x118] sm:$0xf]
        %v1618 = vld [vmem:[#allocation2 + $0x148] sm:$0xf]
        %v1619 = vld [vmem:[#allocation2 + $0x178] sm:$0xf]
        %v1620 = vld [vmem:[#allocation2 + $0x1a8] sm:$0xf]
        %v1621 = vld [vmem:[#allocation2 + $0x1d8] sm:$0xf]
        %v1622 = vld [vmem:[#allocation2 + $0x208] sm:$0xf]
        %v1623 = vld [vmem:[#allocation2 + $0x238] sm:$0xf]
        %v1624 = vld [vmem:[#allocation2 + $0x268] sm:$0xf]
        %v1625 = vld [vmem:[#allocation2 + $0x298] sm:$0xf]
        %v1626 = vld [vmem:[#allocation2 + $0x2c8] sm:$0xf]
        %v1627 = vld [vmem:[#allocation2 + $0x2f8] sm:$0xf]
        %v1628 = vld [vmem:[#allocation2 + $0x2c] sm:$0xf]
        %v1629 = vld [vmem:[#allocation2 + $0x5c] sm:$0xf]
        %v1630 = vld [vmem:[#allocation2 + $0x8c] sm:$0xf]
        %v1631 = vld [vmem:[#allocation2 + $0xbc] sm:$0xf]
        %v1632 = vld [vmem:[#allocation2 + $0xec] sm:$0xf]
        %v1633 = vld [vmem:[#allocation2 + $0x11c] sm:$0xf]
        %v1634 = vld [vmem:[#allocation2 + $0x14c] sm:$0xf]
        %v1635 = vld [vmem:[#allocation2 + $0x17c] sm:$0xf]
        %v1636 = vld [vmem:[#allocation2 + $0x1ac] sm:$0xf]
        %v1637 = vld [vmem:[#allocation2 + $0x1dc] sm:$0xf]
        %v1638 = vld [vmem:[#allocation2 + $0x20c] sm:$0xf]
        %v1639 = vld [vmem:[#allocation2 + $0x23c] sm:$0xf]
        %v1640 = vld [vmem:[#allocation2 + $0x26c] sm:$0xf]
        %v1641 = vld [vmem:[#allocation2 + $0x29c] sm:$0xf]
        %v1642 = vld [vmem:[#allocation2 + $0x2cc] sm:$0xf]
        %v1643 = vld [vmem:[#allocation2 + $0x2fc] sm:$0xf]
        %v1644 = vld [vmem:[%s5 + $0x18] sm:$0xff]
        %v1645 = vld [vmem:[%s5 + $0x20] sm:$0xff]
        %v1646 = vld [vmem:[%s5 + $0x28] sm:$0xff]
        %1647 = vadd.xlane.f32.xlu0 %v1563
        %v1648 = vpop.xlane.xlu0 %1647
        %v1649 = vmul.f32 %v1648, 0.03125
        %v1650 = vsub.f32 %v1563, %v1649
        %v1651 = vsel %vm382, %v1650, 0.0
        %v1652 = vmul.f32 %v1651, %v1651
        %1653 = vadd.xlane.f32.xlu0 %v1652
        %v1654 = vpop.xlane.xlu0 %1653
        %v1655 = vmul.f32 %v1654, 0.03125
        %v1656 = vadd.f32 %v1655, 1e-05
        %v1657 = vrsqrt.pop %v1656
        %v1658 = vmul.f32 %v1650, %v1657
        %v1659 = vlaneseq
        %v1660 = vshrl.u32 %v1659, 7
        %v1661 = vsub.s32 1, %v1660
        %v1662 = vrot.slane %v1644, %v1661
        %v1663 = vmul.f32 %v1658, %v1662
        %v1664 = vlaneseq
        %v1665 = vshrl.u32 %v1664, 7
        %v1666 = vsub.s32 2, %v1665
        %v1667 = vrot.slane %v1644, %v1666
        %v1668 = vadd.f32 %v1663, %v1667
        %v1669 = vpack.c.bf16 %v1668, %v1668
        %v1670 = vlaneseq
        %v1671 = vshrl.u32 %v1670, 7
        %v1672 = vsub.s32 0, %v1671
        %v1673 = vrot.slane %v1644, %v1672
        %v1674 = vlaneseq
        %v1675 = vshrl.u32 %v1674, 7
        %v1676 = vsub.s32 0, %v1675
        %v1677 = vrot.slane %v1645, %v1676
        %v1678 = vlaneseq
        %v1679 = vshrl.u32 %v1678, 7
        %v1680 = vsub.s32 0, %v1679
        %v1681 = vrot.slane %v1646, %v1680
        %v1714 = vunpack.c.l.b16 %v1564
        %v1715 = vunpack.c.h.b16 %v1564
        %v1716 = vunpack.c.l.b16 %v1565
        %v1717 = vunpack.c.l.b16 %v1566
        %v1718 = vunpack.c.h.b16 %v1566
        %v1719 = vunpack.c.l.b16 %v1567
        %v1720 = vunpack.c.l.b16 %v1568
        %v1721 = vunpack.c.h.b16 %v1568
        %v1722 = vunpack.c.l.b16 %v1569
        %v1723 = vunpack.c.l.b16 %v1570
        %v1724 = vunpack.c.h.b16 %v1570
        %v1725 = vunpack.c.l.b16 %v1571
        %v1726 = vunpack.c.l.b16 %v1572
        %v1727 = vunpack.c.h.b16 %v1572
        %v1728 = vunpack.c.l.b16 %v1573
        %v1729 = vunpack.c.l.b16 %v1574
        %v1730 = vunpack.c.h.b16 %v1574
        %v1731 = vunpack.c.l.b16 %v1575
        %v1732 = vunpack.c.l.b16 %v1576
        %v1733 = vunpack.c.h.b16 %v1576
        %v1734 = vunpack.c.l.b16 %v1577
        %v1735 = vunpack.c.l.b16 %v1578
        %v1736 = vunpack.c.h.b16 %v1578
        %v1737 = vunpack.c.l.b16 %v1579
        %v1738 = vunpack.c.l.b16 %v1580
        %v1739 = vunpack.c.h.b16 %v1580
        %v1740 = vunpack.c.l.b16 %v1581
        %v1741 = vunpack.c.l.b16 %v1582
        %v1742 = vunpack.c.h.b16 %v1582
        %v1743 = vunpack.c.l.b16 %v1583
        %v1744 = vunpack.c.l.b16 %v1584
        %v1745 = vunpack.c.h.b16 %v1584
        %v1746 = vunpack.c.l.b16 %v1585
        %v1747 = vunpack.c.l.b16 %v1586
        %v1748 = vunpack.c.h.b16 %v1586
        %v1749 = vunpack.c.l.b16 %v1587
        %v1750 = vunpack.c.l.b16 %v1588
        %v1751 = vunpack.c.h.b16 %v1588
        %v1752 = vunpack.c.l.b16 %v1589
        %v1753 = vunpack.c.l.b16 %v1590
        %v1754 = vunpack.c.h.b16 %v1590
        %v1755 = vunpack.c.l.b16 %v1591
        %v1756 = vunpack.c.l.b16 %v1592
        %v1757 = vunpack.c.h.b16 %v1592
        %v1758 = vunpack.c.l.b16 %v1593
        %v1759 = vunpack.c.l.b16 %v1594
        %v1760 = vunpack.c.h.b16 %v1594
        %v1761 = vunpack.c.l.b16 %v1595
        %v1762 = vpack.c.b16 %v1717, %v1714
        %v1763 = vpack.c.b16 %v1718, %v1715
        %v1764 = vpack.c.b16 %v1719, %v1716
        %v1765 = vpack.c.b16 %v1723, %v1720
        %v1766 = vpack.c.b16 %v1724, %v1721
        %v1767 = vpack.c.b16 %v1725, %v1722
        %v1768 = vpack.c.b16 %v1729, %v1726
        %v1769 = vpack.c.b16 %v1730, %v1727
        %v1770 = vpack.c.b16 %v1731, %v1728
        %v1771 = vpack.c.b16 %v1735, %v1732
        %v1772 = vpack.c.b16 %v1736, %v1733
        %v1773 = vpack.c.b16 %v1737, %v1734
        %v1774 = vpack.c.b16 %v1741, %v1738
        %v1775 = vpack.c.b16 %v1742, %v1739
        %v1776 = vpack.c.b16 %v1743, %v1740
        %v1777 = vpack.c.b16 %v1747, %v1744
        %v1778 = vpack.c.b16 %v1748, %v1745
        %v1779 = vpack.c.b16 %v1749, %v1746
        %v1780 = vpack.c.b16 %v1753, %v1750
        %v1781 = vpack.c.b16 %v1754, %v1751
        %v1782 = vpack.c.b16 %v1755, %v1752
        %v1783 = vpack.c.b16 %v1759, %v1756
        %v1784 = vpack.c.b16 %v1760, %v1757
        %v1785 = vpack.c.b16 %v1761, %v1758
        %1810 = vmatprep.subr.bf16.mxu0 %v1784
        %1811 = vmatpush1.bf16.msra.mxu0 %v1783
        %1812 = vmatprep.subr.bf16.mxu0 %v1781
        %1813 = vmatpush1.bf16.msra.mxu0 %v1780
        %1814 = vmatprep.subr.bf16.mxu0 %v1778
        %1815 = vmatpush1.bf16.msra.mxu0 %v1777
        %1816 = vmatprep.subr.bf16.mxu0 %v1775
        %1817 = vmatpush1.bf16.msra.mxu0 %v1774
        %1818 = vmatprep.subr.bf16.mxu0 %v1772
        %1819 = vmatpush1.bf16.msra.mxu0 %v1771
        %1820 = vmatprep.subr.bf16.mxu0 %v1769
        %1821 = vmatpush1.bf16.msra.mxu0 %v1768
        %1822 = vmatprep.subr.bf16.mxu0 %v1766
        %1823 = vmatpush1.bf16.msra.mxu0 %v1765
        %1824 = vmatprep.subr.bf16.mxu0 %v1763
        %1825 = vmatpush1.bf16.msra.mxu0 %v1762
        %1826 = vmatprep.subr.bf16.mxu0 0
        %1827 = vmatpush2.bf16.msra.mxu0 0
        %1828 = vmatprep.subr.bf16.mxu0 0
        %1829 = vmatpush2.bf16.msra.mxu0 0
        %1830 = vmatprep.subr.bf16.mxu0 0
        %1831 = vmatpush2.bf16.msra.mxu0 0
        %1832 = vmatprep.subr.bf16.mxu0 0
        %1833 = vmatpush2.bf16.msra.mxu0 0
        %1834 = vmatprep.subr.bf16.mxu0 0
        %1835 = vmatpush2.bf16.msra.mxu0 0
        %1836 = vmatprep.subr.bf16.mxu0 0
        %1837 = vmatpush2.bf16.msra.mxu0 0
        %1838 = vmatprep.subr.bf16.mxu0 0
        %1839 = vmatpush2.bf16.msra.mxu0 0
        %1840 = vmatprep.subr.bf16.mxu0 0
        %1841 = vmatpush2.bf16.msra.mxu0 0
        %1842 = vmatprep.mubr.bf16.mxu0 0
        %1843 = vmatmul.mubr.bf16.gmra.mxu0 %v1669
        %v1844 = vpop.f32.mrf.mxu0
        %v1845 = vadd.f32 %v1673, %v1844
        %v1846 = vpop.f32.mrf.mxu0
        %v1847 = vadd.f32 %v1677, %v1846
        %v1848 = vpop.f32.mrf.mxu0
        %v1849 = vpop.f32.mrf.mxu0
        %1850 = vdwg.mxu0
        %1851 = vmatprep.subr.bf16.mxu0 0
        %1852 = vmatpush1.bf16.msra.mxu0 %v1785
        %1853 = vmatprep.subr.bf16.mxu0 0
        %1854 = vmatpush1.bf16.msra.mxu0 %v1782
        %1855 = vmatprep.subr.bf16.mxu0 0
        %1856 = vmatpush1.bf16.msra.mxu0 %v1779
        %1857 = vmatprep.subr.bf16.mxu0 0
        %1858 = vmatpush1.bf16.msra.mxu0 %v1776
        %1859 = vmatprep.subr.bf16.mxu0 0
        %1860 = vmatpush1.bf16.msra.mxu0 %v1773
        %1861 = vmatprep.subr.bf16.mxu0 0
        %1862 = vmatpush1.bf16.msra.mxu0 %v1770
        %1863 = vmatprep.subr.bf16.mxu0 0
        %1864 = vmatpush1.bf16.msra.mxu0 %v1767
        %1865 = vmatprep.subr.bf16.mxu0 0
        %1866 = vmatpush1.bf16.msra.mxu0 %v1764
        %1867 = vmatprep.subr.bf16.mxu0 0
        %1868 = vmatpush2.bf16.msra.mxu0 0
        %1869 = vmatprep.subr.bf16.mxu0 0
        %1870 = vmatpush2.bf16.msra.mxu0 0
        %1871 = vmatprep.subr.bf16.mxu0 0
        %1872 = vmatpush2.bf16.msra.mxu0 0
        %1873 = vmatprep.subr.bf16.mxu0 0
        %1874 = vmatpush2.bf16.msra.mxu0 0
        %1875 = vmatprep.subr.bf16.mxu0 0
        %1876 = vmatpush2.bf16.msra.mxu0 0
        %1877 = vmatprep.subr.bf16.mxu0 0
        %1878 = vmatpush2.bf16.msra.mxu0 0
        %1879 = vmatprep.subr.bf16.mxu0 0
        %1880 = vmatpush2.bf16.msra.mxu0 0
        %1881 = vmatprep.subr.bf16.mxu0 0
        %1882 = vmatpush2.bf16.msra.mxu0 0
        %1883 = vmatprep.mubr.bf16.mxu0 0
        %1884 = vmatmul.mubr.bf16.gmra.mxu0 %v1669
        %v1885 = vpop.f32.mrf.mxu0
        %v1886 = vadd.f32 %v1681, %v1885
        %v1887 = vpop.f32.mrf.mxu0
        %v1888 = vpop.f32.mrf.mxu0
        %v1889 = vpop.f32.mrf.mxu0
        %1890 = vdwg.mxu0
        %v1891 = vmul.f32 %v1845, %v332
        %v1892 = vpack.c.bf16 %v1845, %v1845
        %1893 = vmatprep.subr.bf16.mxu0 0
        %1894 = vmatpush1.bf16.msra.mxu0 %v754
        %1895 = vmatprep.subr.bf16.mxu0 0
        %1896 = vmatpush1.bf16.msra.mxu0 %v753
        %1897 = vmatprep.subr.bf16.mxu0 0
        %1898 = vmatpush1.bf16.msra.mxu0 %v752
        %1899 = vmatprep.subr.bf16.mxu0 0
        %1900 = vmatpush1.bf16.msra.mxu0 %v751
        %1901 = vmatprep.subr.bf16.mxu0 0
        %1902 = vmatpush1.bf16.msra.mxu0 %v750
        %1903 = vmatprep.subr.bf16.mxu0 0
        %1904 = vmatpush1.bf16.msra.mxu0 %v749
        %1905 = vmatprep.subr.bf16.mxu0 0
        %1906 = vmatpush1.bf16.msra.mxu0 %v748
        %1907 = vmatprep.subr.bf16.mxu0 0
        %1908 = vmatpush1.bf16.msra.mxu0 %v747
        %1909 = vmatprep.subr.bf16.mxu0 0
        %1910 = vmatpush2.bf16.msra.mxu0 0
        %1911 = vmatprep.subr.bf16.mxu0 0
        %1912 = vmatpush2.bf16.msra.mxu0 0
        %1913 = vmatprep.subr.bf16.mxu0 0
        %1914 = vmatpush2.bf16.msra.mxu0 0
        %1915 = vmatprep.subr.bf16.mxu0 0
        %1916 = vmatpush2.bf16.msra.mxu0 0
        %1917 = vmatprep.subr.bf16.mxu0 0
        %1918 = vmatpush2.bf16.msra.mxu0 0
        %1919 = vmatprep.subr.bf16.mxu0 0
        %1920 = vmatpush2.bf16.msra.mxu0 0
        %1921 = vmatprep.subr.bf16.mxu0 0
        %1922 = vmatpush2.bf16.msra.mxu0 0
        %1923 = vmatprep.subr.bf16.mxu0 0
        %1924 = vmatpush2.bf16.msra.mxu0 0
        %1925 = vmatprep.mubr.bf16.mxu0 0
        %1926 = vmatmul.mubr.bf16.gmra.mxu0 %v1892
        %v1927 = vpop.f32.mrf.mxu0
        %v1928 = vadd.f32 0.0, %v1927
        %v1929 = vpop.f32.mrf.mxu0
        %v1930 = vpop.f32.mrf.mxu0
        %v1931 = vpop.f32.mrf.mxu0
        %1932 = vdwg.mxu0
        %v1933 = vmul.f32 %v1928, %v334
        %v1934 = vadd.f32 %v1891, %v1933
        %v1935 = vmul.f32 %v1847, %v332
        %v1936 = vpack.c.bf16 %v1847, %v1847
        %1937 = vmatprep.subr.bf16.mxu0 0
        %1938 = vmatpush1.bf16.msra.mxu0 %v754
        %1939 = vmatprep.subr.bf16.mxu0 0
        %1940 = vmatpush1.bf16.msra.mxu0 %v753
        %1941 = vmatprep.subr.bf16.mxu0 0
        %1942 = vmatpush1.bf16.msra.mxu0 %v752
        %1943 = vmatprep.subr.bf16.mxu0 0
        %1944 = vmatpush1.bf16.msra.mxu0 %v751
        %1945 = vmatprep.subr.bf16.mxu0 0
        %1946 = vmatpush1.bf16.msra.mxu0 %v750
        %1947 = vmatprep.subr.bf16.mxu0 0
        %1948 = vmatpush1.bf16.msra.mxu0 %v749
        %1949 = vmatprep.subr.bf16.mxu0 0
        %1950 = vmatpush1.bf16.msra.mxu0 %v748
        %1951 = vmatprep.subr.bf16.mxu0 0
        %1952 = vmatpush1.bf16.msra.mxu0 %v747
        %1953 = vmatprep.subr.bf16.mxu0 0
        %1954 = vmatpush2.bf16.msra.mxu0 0
        %1955 = vmatprep.subr.bf16.mxu0 0
        %1956 = vmatpush2.bf16.msra.mxu0 0
        %1957 = vmatprep.subr.bf16.mxu0 0
        %1958 = vmatpush2.bf16.msra.mxu0 0
        %1959 = vmatprep.subr.bf16.mxu0 0
        %1960 = vmatpush2.bf16.msra.mxu0 0
        %1961 = vmatprep.subr.bf16.mxu0 0
        %1962 = vmatpush2.bf16.msra.mxu0 0
        %1963 = vmatprep.subr.bf16.mxu0 0
        %1964 = vmatpush2.bf16.msra.mxu0 0
        %1965 = vmatprep.subr.bf16.mxu0 0
        %1966 = vmatpush2.bf16.msra.mxu0 0
        %1967 = vmatprep.subr.bf16.mxu0 0
        %1968 = vmatpush2.bf16.msra.mxu0 0
        %1969 = vmatprep.mubr.bf16.mxu0 0
        %1970 = vmatmul.mubr.bf16.gmra.mxu0 %v1936
        %v1971 = vpop.f32.mrf.mxu0
        %v1972 = vadd.f32 0.0, %v1971
        %v1973 = vpop.f32.mrf.mxu0
        %v1974 = vpop.f32.mrf.mxu0
        %v1975 = vpop.f32.mrf.mxu0
        %1976 = vdwg.mxu0
        %v1977 = vmul.f32 %v1972, %v334
        %v1978 = vadd.f32 %v1935, %v1977
        %v1979 = vpack.c.bf16 %v1934, %v1934
        %v1980 = vpack.c.bf16 %v1978, %v1978
        %v1981 = vpack.c.bf16 %v1886, %v1886
        %v1982 = vmul.bf16 %v1979, %v370
        %1983 = vmatprep.subr.bf16.mxu0 0
        %1984 = vmatpush1.bf16.xpose.msra.mxu0 0
        %1985 = vmatprep.subr.bf16.mxu0 0
        %1986 = vmatpush1.bf16.xpose.msra.mxu0 0
        %1987 = vmatprep.subr.bf16.mxu0 0
        %1988 = vmatpush1.bf16.xpose.msra.mxu0 0
        %1989 = vmatprep.subr.bf16.mxu0 0
        %1990 = vmatpush1.bf16.xpose.msra.mxu0 0
        %1991 = vmatprep.subr.bf16.mxu0 0
        %1992 = vmatpush1.bf16.xpose.msra.mxu0 0
        %1993 = vmatprep.subr.bf16.mxu0 0
        %1994 = vmatpush1.bf16.xpose.msra.mxu0 0
        %1995 = vmatprep.subr.bf16.mxu0 0
        %1996 = vmatpush1.bf16.xpose.msra.mxu0 0
        %1997 = vmatprep.subr.bf16.mxu0 0
        %1998 = vmatpush1.bf16.xpose.msra.mxu0 %v1980
        %1999 = vmatprep.subr.bf16.mxu0 0
        %2000 = vmatpush2.bf16.xpose.msra.mxu0 0
        %2001 = vmatprep.subr.bf16.mxu0 0
        %2002 = vmatpush2.bf16.xpose.msra.mxu0 0
        %2003 = vmatprep.subr.bf16.mxu0 0
        %2004 = vmatpush2.bf16.xpose.msra.mxu0 0
        %2005 = vmatprep.subr.bf16.mxu0 0
        %2006 = vmatpush2.bf16.xpose.msra.mxu0 0
        %2007 = vmatprep.subr.bf16.mxu0 0
        %2008 = vmatpush2.bf16.xpose.msra.mxu0 0
        %2009 = vmatprep.subr.bf16.mxu0 0
        %2010 = vmatpush2.bf16.xpose.msra.mxu0 0
        %2011 = vmatprep.subr.bf16.mxu0 0
        %2012 = vmatpush2.bf16.xpose.msra.mxu0 0
        %2013 = vmatprep.subr.bf16.mxu0 0
        %2014 = vmatpush2.bf16.xpose.msra.mxu0 0
        %2015 = vmatprep.mubr.bf16.mxu0 0
        %2016 = vmatmul.mubr.bf16.gmra.mxu0 %v1982
        %v2017 = vpop.f32.mrf.mxu0
        %v2018 = vadd.f32 0.0, %v2017
        %v2019 = vpop.f32.mrf.mxu0
        %v2020 = vpop.f32.mrf.mxu0
        %v2021 = vpop.f32.mrf.mxu0
        %2022 = vdwg.mxu0
        %v2023 = vmul.f32 %v2018, 0.35355338
        %v2024 = vadd.f32 %v2023, %v365
        %v2025 = vsel %vm895, %v2024, -inf
        %2026 = vmax.xlane.f32.xlu0 %v2025
        %v2027 = vpop.xlane.xlu0 %2026
        %v2028 = vsub.f32 %v2024, %v2027
        %v2029 = vmul.f32 %v2028, 1.442695
        %v2030 = vpow.pop %v2029
        %v2031 = vsel %vm895, %v2030, 0.0
        %2032 = vadd.xlane.f32.xlu0 %v2031
        %v2033 = vpop.xlane.xlu0 %2032
        %v2034 = vrcp.pop %v2033
        %v2035 = vmul.f32 %v2030, %v2034
        %v2036 = vpack.c.bf16 %v2035, %v2035
        %v2037 = vmul.bf16 %v1981, %v370
        %v2038 = vmul.bf16 %v1979, %v375
        %2039 = vmatprep.subr.bf16.mxu0 0
        %2040 = vmatpush1.bf16.xpose.msra.mxu0 0
        %2041 = vmatprep.subr.bf16.mxu0 0
        %2042 = vmatpush1.bf16.xpose.msra.mxu0 0
        %2043 = vmatprep.subr.bf16.mxu0 0
        %2044 = vmatpush1.bf16.xpose.msra.mxu0 0
        %2045 = vmatprep.subr.bf16.mxu0 0
        %2046 = vmatpush1.bf16.xpose.msra.mxu0 0
        %2047 = vmatprep.subr.bf16.mxu0 0
        %2048 = vmatpush1.bf16.xpose.msra.mxu0 0
        %2049 = vmatprep.subr.bf16.mxu0 0
        %2050 = vmatpush1.bf16.xpose.msra.mxu0 0
        %2051 = vmatprep.subr.bf16.mxu0 0
        %2052 = vmatpush1.bf16.xpose.msra.mxu0 0
        %2053 = vmatprep.subr.bf16.mxu0 0
        %2054 = vmatpush1.bf16.xpose.msra.mxu0 %v1980
        %2055 = vmatprep.subr.bf16.mxu0 0
        %2056 = vmatpush2.bf16.xpose.msra.mxu0 0
        %2057 = vmatprep.subr.bf16.mxu0 0
        %2058 = vmatpush2.bf16.xpose.msra.mxu0 0
        %2059 = vmatprep.subr.bf16.mxu0 0
        %2060 = vmatpush2.bf16.xpose.msra.mxu0 0
        %2061 = vmatprep.subr.bf16.mxu0 0
        %2062 = vmatpush2.bf16.xpose.msra.mxu0 0
        %2063 = vmatprep.subr.bf16.mxu0 0
        %2064 = vmatpush2.bf16.xpose.msra.mxu0 0
        %2065 = vmatprep.subr.bf16.mxu0 0
        %2066 = vmatpush2.bf16.xpose.msra.mxu0 0
        %2067 = vmatprep.subr.bf16.mxu0 0
        %2068 = vmatpush2.bf16.xpose.msra.mxu0 0
        %2069 = vmatprep.subr.bf16.mxu0 0
        %2070 = vmatpush2.bf16.xpose.msra.mxu0 0
        %2071 = vmatprep.mubr.bf16.mxu0 0
        %2072 = vmatmul.mubr.bf16.gmra.mxu0 %v2038
        %v2073 = vpop.f32.mrf.mxu0
        %v2074 = vadd.f32 0.0, %v2073
        %v2075 = vpop.f32.mrf.mxu0
        %v2076 = vpop.f32.mrf.mxu0
        %v2077 = vpop.f32.mrf.mxu0
        %2078 = vdwg.mxu0
        %v2079 = vmul.f32 %v2074, 0.35355338
        %v2080 = vadd.f32 %v2079, %v365
        %v2081 = vsel %vm895, %v2080, -inf
        %2082 = vmax.xlane.f32.xlu0 %v2081
        %v2083 = vpop.xlane.xlu0 %2082
        %v2084 = vsub.f32 %v2080, %v2083
        %v2085 = vmul.f32 %v2084, 1.442695
        %v2086 = vpow.pop %v2085
        %v2087 = vsel %vm895, %v2086, 0.0
        %2088 = vadd.xlane.f32.xlu0 %v2087
        %v2089 = vpop.xlane.xlu0 %2088
        %v2090 = vrcp.pop %v2089
        %v2091 = vmul.f32 %v2086, %v2090
        %v2092 = vpack.c.bf16 %v2091, %v2091
        %v2093 = vmul.bf16 %v1981, %v375
        %v2095 = vsel %vm895, %v2092, 0
        %v2098 = vsel %vm968, %v2093, 0
        %2100 = vmatprep.subr.bf16.mxu0 0
        %2101 = vmatpush1.bf16.msra.mxu0 0
        %2102 = vmatprep.subr.bf16.mxu0 0
        %2103 = vmatpush1.bf16.msra.mxu0 0
        %2104 = vmatprep.subr.bf16.mxu0 0
        %2105 = vmatpush1.bf16.msra.mxu0 0
        %2106 = vmatprep.subr.bf16.mxu0 0
        %2107 = vmatpush1.bf16.msra.mxu0 0
        %2108 = vmatprep.subr.bf16.mxu0 0
        %2109 = vmatpush1.bf16.msra.mxu0 0
        %2110 = vmatprep.subr.bf16.mxu0 0
        %2111 = vmatpush1.bf16.msra.mxu0 0
        %2112 = vmatprep.subr.bf16.mxu0 0
        %2113 = vmatpush1.bf16.msra.mxu0 0
        %2114 = vmatprep.subr.bf16.mxu0 0
        %2115 = vmatpush1.bf16.msra.mxu0 %v2098
        %2116 = vmatprep.subr.bf16.mxu0 0
        %2117 = vmatpush2.bf16.msra.mxu0 0
        %2118 = vmatprep.subr.bf16.mxu0 0
        %2119 = vmatpush2.bf16.msra.mxu0 0
        %2120 = vmatprep.subr.bf16.mxu0 0
        %2121 = vmatpush2.bf16.msra.mxu0 0
        %2122 = vmatprep.subr.bf16.mxu0 0
        %2123 = vmatpush2.bf16.msra.mxu0 0
        %2124 = vmatprep.subr.bf16.mxu0 0
        %2125 = vmatpush2.bf16.msra.mxu0 0
        %2126 = vmatprep.subr.bf16.mxu0 0
        %2127 = vmatpush2.bf16.msra.mxu0 0
        %2128 = vmatprep.subr.bf16.mxu0 0
        %2129 = vmatpush2.bf16.msra.mxu0 0
        %2130 = vmatprep.subr.bf16.mxu0 0
        %2131 = vmatpush2.bf16.msra.mxu0 0
        %2132 = vmatprep.mubr.bf16.mxu0 0
        %2133 = vmatmul.mubr.bf16.gmra.mxu0 %v2095
        %v2134 = vpop.f32.mrf.mxu0
        %v2135 = vadd.f32 0.0, %v2134
        %v2136 = vpop.f32.mrf.mxu0
        %v2137 = vpop.f32.mrf.mxu0
        %v2138 = vpop.f32.mrf.mxu0
        %2139 = vdwg.mxu0
        %v2141 = vsel %vm895, %v2036, 0
        %v2144 = vsel %vm968, %v2037, 0
        %2146 = vmatprep.subr.bf16.mxu0 0
        %2147 = vmatpush1.bf16.msra.mxu0 0
        %2148 = vmatprep.subr.bf16.mxu0 0
        %2149 = vmatpush1.bf16.msra.mxu0 0
        %2150 = vmatprep.subr.bf16.mxu0 0
        %2151 = vmatpush1.bf16.msra.mxu0 0
        %2152 = vmatprep.subr.bf16.mxu0 0
        %2153 = vmatpush1.bf16.msra.mxu0 0
        %2154 = vmatprep.subr.bf16.mxu0 0
        %2155 = vmatpush1.bf16.msra.mxu0 0
        %2156 = vmatprep.subr.bf16.mxu0 0
        %2157 = vmatpush1.bf16.msra.mxu0 0
        %2158 = vmatprep.subr.bf16.mxu0 0
        %2159 = vmatpush1.bf16.msra.mxu0 0
        %2160 = vmatprep.subr.bf16.mxu0 0
        %2161 = vmatpush1.bf16.msra.mxu0 %v2144
        %2162 = vmatprep.subr.bf16.mxu0 0
        %2163 = vmatpush2.bf16.msra.mxu0 0
        %2164 = vmatprep.subr.bf16.mxu0 0
        %2165 = vmatpush2.bf16.msra.mxu0 0
        %2166 = vmatprep.subr.bf16.mxu0 0
        %2167 = vmatpush2.bf16.msra.mxu0 0
        %2168 = vmatprep.subr.bf16.mxu0 0
        %2169 = vmatpush2.bf16.msra.mxu0 0
        %2170 = vmatprep.subr.bf16.mxu0 0
        %2171 = vmatpush2.bf16.msra.mxu0 0
        %2172 = vmatprep.subr.bf16.mxu0 0
        %2173 = vmatpush2.bf16.msra.mxu0 0
        %2174 = vmatprep.subr.bf16.mxu0 0
        %2175 = vmatpush2.bf16.msra.mxu0 0
        %2176 = vmatprep.subr.bf16.mxu0 0
        %2177 = vmatpush2.bf16.msra.mxu0 0
        %2178 = vmatprep.mubr.bf16.mxu0 0
        %2179 = vmatmul.mubr.bf16.gmra.mxu0 %v2141
        %v2180 = vpop.f32.mrf.mxu0
        %v2181 = vadd.f32 %v2135, %v2180
        %v2182 = vpop.f32.mrf.mxu0
        %v2183 = vpop.f32.mrf.mxu0
        %v2184 = vpop.f32.mrf.mxu0
        %2185 = vdwg.mxu0
        %v2186 = vmul.bf16 %v1979, %v380
        %2187 = vmatprep.subr.bf16.mxu0 0
        %2188 = vmatpush1.bf16.xpose.msra.mxu0 0
        %2189 = vmatprep.subr.bf16.mxu0 0
        %2190 = vmatpush1.bf16.xpose.msra.mxu0 0
        %2191 = vmatprep.subr.bf16.mxu0 0
        %2192 = vmatpush1.bf16.xpose.msra.mxu0 0
        %2193 = vmatprep.subr.bf16.mxu0 0
        %2194 = vmatpush1.bf16.xpose.msra.mxu0 0
        %2195 = vmatprep.subr.bf16.mxu0 0
        %2196 = vmatpush1.bf16.xpose.msra.mxu0 0
        %2197 = vmatprep.subr.bf16.mxu0 0
        %2198 = vmatpush1.bf16.xpose.msra.mxu0 0
        %2199 = vmatprep.subr.bf16.mxu0 0
        %2200 = vmatpush1.bf16.xpose.msra.mxu0 0
        %2201 = vmatprep.subr.bf16.mxu0 0
        %2202 = vmatpush1.bf16.xpose.msra.mxu0 %v1980
        %2203 = vmatprep.subr.bf16.mxu0 0
        %2204 = vmatpush2.bf16.xpose.msra.mxu0 0
        %2205 = vmatprep.subr.bf16.mxu0 0
        %2206 = vmatpush2.bf16.xpose.msra.mxu0 0
        %2207 = vmatprep.subr.bf16.mxu0 0
        %2208 = vmatpush2.bf16.xpose.msra.mxu0 0
        %2209 = vmatprep.subr.bf16.mxu0 0
        %2210 = vmatpush2.bf16.xpose.msra.mxu0 0
        %2211 = vmatprep.subr.bf16.mxu0 0
        %2212 = vmatpush2.bf16.xpose.msra.mxu0 0
        %2213 = vmatprep.subr.bf16.mxu0 0
        %2214 = vmatpush2.bf16.xpose.msra.mxu0 0
        %2215 = vmatprep.subr.bf16.mxu0 0
        %2216 = vmatpush2.bf16.xpose.msra.mxu0 0
        %2217 = vmatprep.subr.bf16.mxu0 0
        %2218 = vmatpush2.bf16.xpose.msra.mxu0 0
        %2219 = vmatprep.mubr.bf16.mxu0 0
        %2220 = vmatmul.mubr.bf16.gmra.mxu0 %v2186
        %v2221 = vpop.f32.mrf.mxu0
        %v2222 = vadd.f32 0.0, %v2221
        %v2223 = vpop.f32.mrf.mxu0
        %v2224 = vpop.f32.mrf.mxu0
        %v2225 = vpop.f32.mrf.mxu0
        %2226 = vdwg.mxu0
        %v2227 = vmul.f32 %v2222, 0.35355338
        %v2228 = vadd.f32 %v2227, %v365
        %v2229 = vsel %vm895, %v2228, -inf
        %2230 = vmax.xlane.f32.xlu0 %v2229
        %v2231 = vpop.xlane.xlu0 %2230
        %v2232 = vsub.f32 %v2228, %v2231
        %v2233 = vmul.f32 %v2232, 1.442695
        %v2234 = vpow.pop %v2233
        %v2235 = vsel %vm895, %v2234, 0.0
        %2236 = vadd.xlane.f32.xlu0 %v2235
        %v2237 = vpop.xlane.xlu0 %2236
        %v2238 = vrcp.pop %v2237
        %v2239 = vmul.f32 %v2234, %v2238
        %v2240 = vpack.c.bf16 %v2239, %v2239
        %v2241 = vmul.bf16 %v1981, %v380
        %v2243 = vsel %vm895, %v2240, 0
        %v2246 = vsel %vm968, %v2241, 0
        %2248 = vmatprep.subr.bf16.mxu0 0
        %2249 = vmatpush1.bf16.msra.mxu0 0
        %2250 = vmatprep.subr.bf16.mxu0 0
        %2251 = vmatpush1.bf16.msra.mxu0 0
        %2252 = vmatprep.subr.bf16.mxu0 0
        %2253 = vmatpush1.bf16.msra.mxu0 0
        %2254 = vmatprep.subr.bf16.mxu0 0
        %2255 = vmatpush1.bf16.msra.mxu0 0
        %2256 = vmatprep.subr.bf16.mxu0 0
        %2257 = vmatpush1.bf16.msra.mxu0 0
        %2258 = vmatprep.subr.bf16.mxu0 0
        %2259 = vmatpush1.bf16.msra.mxu0 0
        %2260 = vmatprep.subr.bf16.mxu0 0
        %2261 = vmatpush1.bf16.msra.mxu0 0
        %2262 = vmatprep.subr.bf16.mxu0 0
        %2263 = vmatpush1.bf16.msra.mxu0 %v2246
        %2264 = vmatprep.subr.bf16.mxu0 0
        %2265 = vmatpush2.bf16.msra.mxu0 0
        %2266 = vmatprep.subr.bf16.mxu0 0
        %2267 = vmatpush2.bf16.msra.mxu0 0
        %2268 = vmatprep.subr.bf16.mxu0 0
        %2269 = vmatpush2.bf16.msra.mxu0 0
        %2270 = vmatprep.subr.bf16.mxu0 0
        %2271 = vmatpush2.bf16.msra.mxu0 0
        %2272 = vmatprep.subr.bf16.mxu0 0
        %2273 = vmatpush2.bf16.msra.mxu0 0
        %2274 = vmatprep.subr.bf16.mxu0 0
        %2275 = vmatpush2.bf16.msra.mxu0 0
        %2276 = vmatprep.subr.bf16.mxu0 0
        %2277 = vmatpush2.bf16.msra.mxu0 0
        %2278 = vmatprep.subr.bf16.mxu0 0
        %2279 = vmatpush2.bf16.msra.mxu0 0
        %2280 = vmatprep.mubr.bf16.mxu0 0
        %2281 = vmatmul.mubr.bf16.gmra.mxu0 %v2243
        %v2282 = vpop.f32.mrf.mxu0
        %v2283 = vadd.f32 0.0, %v2282
        %v2284 = vpop.f32.mrf.mxu0
        %v2285 = vpop.f32.mrf.mxu0
        %v2286 = vpop.f32.mrf.mxu0
        %2287 = vdwg.mxu0
        %v2288 = vadd.f32 %v2181, %v2283
        %v2289 = vmul.bf16 %v1979, %v385
        %2290 = vmatprep.subr.bf16.mxu0 0
        %2291 = vmatpush1.bf16.xpose.msra.mxu0 0
        %2292 = vmatprep.subr.bf16.mxu0 0
        %2293 = vmatpush1.bf16.xpose.msra.mxu0 0
        %2294 = vmatprep.subr.bf16.mxu0 0
        %2295 = vmatpush1.bf16.xpose.msra.mxu0 0
        %2296 = vmatprep.subr.bf16.mxu0 0
        %2297 = vmatpush1.bf16.xpose.msra.mxu0 0
        %2298 = vmatprep.subr.bf16.mxu0 0
        %2299 = vmatpush1.bf16.xpose.msra.mxu0 0
        %2300 = vmatprep.subr.bf16.mxu0 0
        %2301 = vmatpush1.bf16.xpose.msra.mxu0 0
        %2302 = vmatprep.subr.bf16.mxu0 0
        %2303 = vmatpush1.bf16.xpose.msra.mxu0 0
        %2304 = vmatprep.subr.bf16.mxu0 0
        %2305 = vmatpush1.bf16.xpose.msra.mxu0 %v1980
        %2306 = vmatprep.subr.bf16.mxu0 0
        %2307 = vmatpush2.bf16.xpose.msra.mxu0 0
        %2308 = vmatprep.subr.bf16.mxu0 0
        %2309 = vmatpush2.bf16.xpose.msra.mxu0 0
        %2310 = vmatprep.subr.bf16.mxu0 0
        %2311 = vmatpush2.bf16.xpose.msra.mxu0 0
        %2312 = vmatprep.subr.bf16.mxu0 0
        %2313 = vmatpush2.bf16.xpose.msra.mxu0 0
        %2314 = vmatprep.subr.bf16.mxu0 0
        %2315 = vmatpush2.bf16.xpose.msra.mxu0 0
        %2316 = vmatprep.subr.bf16.mxu0 0
        %2317 = vmatpush2.bf16.xpose.msra.mxu0 0
        %2318 = vmatprep.subr.bf16.mxu0 0
        %2319 = vmatpush2.bf16.xpose.msra.mxu0 0
        %2320 = vmatprep.subr.bf16.mxu0 0
        %2321 = vmatpush2.bf16.xpose.msra.mxu0 0
        %2322 = vmatprep.mubr.bf16.mxu0 0
        %2323 = vmatmul.mubr.bf16.gmra.mxu0 %v2289
        %v2324 = vpop.f32.mrf.mxu0
        %v2325 = vadd.f32 0.0, %v2324
        %v2326 = vpop.f32.mrf.mxu0
        %v2327 = vpop.f32.mrf.mxu0
        %v2328 = vpop.f32.mrf.mxu0
        %2329 = vdwg.mxu0
        %v2330 = vmul.f32 %v2325, 0.35355338
        %v2331 = vadd.f32 %v2330, %v365
        %v2332 = vsel %vm895, %v2331, -inf
        %2333 = vmax.xlane.f32.xlu0 %v2332
        %v2334 = vpop.xlane.xlu0 %2333
        %v2335 = vsub.f32 %v2331, %v2334
        %v2336 = vmul.f32 %v2335, 1.442695
        %v2337 = vpow.pop %v2336
        %v2338 = vsel %vm895, %v2337, 0.0
        %2339 = vadd.xlane.f32.xlu0 %v2338
        %v2340 = vpop.xlane.xlu0 %2339
        %v2341 = vrcp.pop %v2340
        %v2342 = vmul.f32 %v2337, %v2341
        %v2343 = vpack.c.bf16 %v2342, %v2342
        %v2344 = vmul.bf16 %v1981, %v385
        %v2346 = vsel %vm895, %v2343, 0
        %v2349 = vsel %vm968, %v2344, 0
        %2351 = vmatprep.subr.bf16.mxu0 0
        %2352 = vmatpush1.bf16.msra.mxu0 0
        %2353 = vmatprep.subr.bf16.mxu0 0
        %2354 = vmatpush1.bf16.msra.mxu0 0
        %2355 = vmatprep.subr.bf16.mxu0 0
        %2356 = vmatpush1.bf16.msra.mxu0 0
        %2357 = vmatprep.subr.bf16.mxu0 0
        %2358 = vmatpush1.bf16.msra.mxu0 0
        %2359 = vmatprep.subr.bf16.mxu0 0
        %2360 = vmatpush1.bf16.msra.mxu0 0
        %2361 = vmatprep.subr.bf16.mxu0 0
        %2362 = vmatpush1.bf16.msra.mxu0 0
        %2363 = vmatprep.subr.bf16.mxu0 0
        %2364 = vmatpush1.bf16.msra.mxu0 0
        %2365 = vmatprep.subr.bf16.mxu0 0
        %2366 = vmatpush1.bf16.msra.mxu0 %v2349
        %2367 = vmatprep.subr.bf16.mxu0 0
        %2368 = vmatpush2.bf16.msra.mxu0 0
        %2369 = vmatprep.subr.bf16.mxu0 0
        %2370 = vmatpush2.bf16.msra.mxu0 0
        %2371 = vmatprep.subr.bf16.mxu0 0
        %2372 = vmatpush2.bf16.msra.mxu0 0
        %2373 = vmatprep.subr.bf16.mxu0 0
        %2374 = vmatpush2.bf16.msra.mxu0 0
        %2375 = vmatprep.subr.bf16.mxu0 0
        %2376 = vmatpush2.bf16.msra.mxu0 0
        %2377 = vmatprep.subr.bf16.mxu0 0
        %2378 = vmatpush2.bf16.msra.mxu0 0
        %2379 = vmatprep.subr.bf16.mxu0 0
        %2380 = vmatpush2.bf16.msra.mxu0 0
        %2381 = vmatprep.subr.bf16.mxu0 0
        %2382 = vmatpush2.bf16.msra.mxu0 0
        %2383 = vmatprep.mubr.bf16.mxu0 0
        %2384 = vmatmul.mubr.bf16.gmra.mxu0 %v2346
        %v2385 = vpop.f32.mrf.mxu0
        %v2386 = vadd.f32 0.0, %v2385
        %v2387 = vpop.f32.mrf.mxu0
        %v2388 = vpop.f32.mrf.mxu0
        %v2389 = vpop.f32.mrf.mxu0
        %2390 = vdwg.mxu0
        %v2391 = vadd.f32 %v2288, %v2386
        %v2392 = vpack.c.bf16 %v2391, %v2391
        %v2393 = vlaneseq
        %v2394 = vshrl.u32 %v2393, 7
        %v2395 = vsub.s32 5, %v2394
        %v2396 = vrot.slane %v1644, %v2395
        %v2413 = vunpack.c.l.b16 %v1596
        %v2414 = vunpack.c.l.b16 %v1597
        %v2415 = vunpack.c.l.b16 %v1598
        %v2416 = vunpack.c.l.b16 %v1599
        %v2417 = vunpack.c.l.b16 %v1600
        %v2418 = vunpack.c.l.b16 %v1601
        %v2419 = vunpack.c.l.b16 %v1602
        %v2420 = vunpack.c.l.b16 %v1603
        %v2421 = vunpack.c.l.b16 %v1604
        %v2422 = vunpack.c.l.b16 %v1605
        %v2423 = vunpack.c.l.b16 %v1606
        %v2424 = vunpack.c.l.b16 %v1607
        %v2425 = vunpack.c.l.b16 %v1608
        %v2426 = vunpack.c.l.b16 %v1609
        %v2427 = vunpack.c.l.b16 %v1610
        %v2428 = vunpack.c.l.b16 %v1611
        %v2429 = vpack.c.b16 %v2414, %v2413
        %v2430 = vpack.c.b16 %v2416, %v2415
        %v2431 = vpack.c.b16 %v2418, %v2417
        %v2432 = vpack.c.b16 %v2420, %v2419
        %v2433 = vpack.c.b16 %v2422, %v2421
        %v2434 = vpack.c.b16 %v2424, %v2423
        %v2435 = vpack.c.b16 %v2426, %v2425
        %v2436 = vpack.c.b16 %v2428, %v2427
        %2445 = vmatprep.subr.bf16.mxu0 0
        %2446 = vmatpush1.bf16.msra.mxu0 %v2436
        %2447 = vmatprep.subr.bf16.mxu0 0
        %2448 = vmatpush1.bf16.msra.mxu0 %v2435
        %2449 = vmatprep.subr.bf16.mxu0 0
        %2450 = vmatpush1.bf16.msra.mxu0 %v2434
        %2451 = vmatprep.subr.bf16.mxu0 0
        %2452 = vmatpush1.bf16.msra.mxu0 %v2433
        %2453 = vmatprep.subr.bf16.mxu0 0
        %2454 = vmatpush1.bf16.msra.mxu0 %v2432
        %2455 = vmatprep.subr.bf16.mxu0 0
        %2456 = vmatpush1.bf16.msra.mxu0 %v2431
        %2457 = vmatprep.subr.bf16.mxu0 0
        %2458 = vmatpush1.bf16.msra.mxu0 %v2430
        %2459 = vmatprep.subr.bf16.mxu0 0
        %2460 = vmatpush1.bf16.msra.mxu0 %v2429
        %2461 = vmatprep.subr.bf16.mxu0 0
        %2462 = vmatpush2.bf16.msra.mxu0 0
        %2463 = vmatprep.subr.bf16.mxu0 0
        %2464 = vmatpush2.bf16.msra.mxu0 0
        %2465 = vmatprep.subr.bf16.mxu0 0
        %2466 = vmatpush2.bf16.msra.mxu0 0
        %2467 = vmatprep.subr.bf16.mxu0 0
        %2468 = vmatpush2.bf16.msra.mxu0 0
        %2469 = vmatprep.subr.bf16.mxu0 0
        %2470 = vmatpush2.bf16.msra.mxu0 0
        %2471 = vmatprep.subr.bf16.mxu0 0
        %2472 = vmatpush2.bf16.msra.mxu0 0
        %2473 = vmatprep.subr.bf16.mxu0 0
        %2474 = vmatpush2.bf16.msra.mxu0 0
        %2475 = vmatprep.subr.bf16.mxu0 0
        %2476 = vmatpush2.bf16.msra.mxu0 0
        %2477 = vmatprep.mubr.bf16.mxu0 0
        %2478 = vmatmul.mubr.bf16.gmra.mxu0 %v2392
        %v2479 = vpop.f32.mrf.mxu0
        %v2480 = vadd.f32 %v2396, %v2479
        %v2481 = vpop.f32.mrf.mxu0
        %v2482 = vpop.f32.mrf.mxu0
        %v2483 = vpop.f32.mrf.mxu0
        %2484 = vdwg.mxu0
        %v2485 = vlaneseq
        %v2486 = vshrl.u32 %v2485, 7
        %v2487 = vsub.s32 3, %v2486
        %v2488 = vrot.slane %v1644, %v2487
        %v2489 = vmul.f32 %v1658, %v2488
        %v2490 = vlaneseq
        %v2491 = vshrl.u32 %v2490, 7
        %v2492 = vsub.s32 4, %v2491
        %v2493 = vrot.slane %v1644, %v2492
        %v2494 = vadd.f32 %v2489, %v2493
        %v2495 = vpack.c.bf16 %v2494, %v2494
        %v2496 = vlaneseq
        %v2497 = vshrl.u32 %v2496, 7
        %v2498 = vsub.s32 6, %v2497
        %v2499 = vrot.slane %v1644, %v2498
        %v2516 = vunpack.c.l.b16 %v1612
        %v2517 = vunpack.c.l.b16 %v1613
        %v2518 = vunpack.c.l.b16 %v1614
        %v2519 = vunpack.c.l.b16 %v1615
        %v2520 = vunpack.c.l.b16 %v1616
        %v2521 = vunpack.c.l.b16 %v1617
        %v2522 = vunpack.c.l.b16 %v1618
        %v2523 = vunpack.c.l.b16 %v1619
        %v2524 = vunpack.c.l.b16 %v1620
        %v2525 = vunpack.c.l.b16 %v1621
        %v2526 = vunpack.c.l.b16 %v1622
        %v2527 = vunpack.c.l.b16 %v1623
        %v2528 = vunpack.c.l.b16 %v1624
        %v2529 = vunpack.c.l.b16 %v1625
        %v2530 = vunpack.c.l.b16 %v1626
        %v2531 = vunpack.c.l.b16 %v1627
        %v2532 = vpack.c.b16 %v2517, %v2516
        %v2533 = vpack.c.b16 %v2519, %v2518
        %v2534 = vpack.c.b16 %v2521, %v2520
        %v2535 = vpack.c.b16 %v2523, %v2522
        %v2536 = vpack.c.b16 %v2525, %v2524
        %v2537 = vpack.c.b16 %v2527, %v2526
        %v2538 = vpack.c.b16 %v2529, %v2528
        %v2539 = vpack.c.b16 %v2531, %v2530
        %2548 = vmatprep.subr.bf16.mxu0 0
        %2549 = vmatpush1.bf16.msra.mxu0 %v2539
        %2550 = vmatprep.subr.bf16.mxu0 0
        %2551 = vmatpush1.bf16.msra.mxu0 %v2538
        %2552 = vmatprep.subr.bf16.mxu0 0
        %2553 = vmatpush1.bf16.msra.mxu0 %v2537
        %2554 = vmatprep.subr.bf16.mxu0 0
        %2555 = vmatpush1.bf16.msra.mxu0 %v2536
        %2556 = vmatprep.subr.bf16.mxu0 0
        %2557 = vmatpush1.bf16.msra.mxu0 %v2535
        %2558 = vmatprep.subr.bf16.mxu0 0
        %2559 = vmatpush1.bf16.msra.mxu0 %v2534
        %2560 = vmatprep.subr.bf16.mxu0 0
        %2561 = vmatpush1.bf16.msra.mxu0 %v2533
        %2562 = vmatprep.subr.bf16.mxu0 0
        %2563 = vmatpush1.bf16.msra.mxu0 %v2532
        %2564 = vmatprep.subr.bf16.mxu0 0
        %2565 = vmatpush2.bf16.msra.mxu0 0
        %2566 = vmatprep.subr.bf16.mxu0 0
        %2567 = vmatpush2.bf16.msra.mxu0 0
        %2568 = vmatprep.subr.bf16.mxu0 0
        %2569 = vmatpush2.bf16.msra.mxu0 0
        %2570 = vmatprep.subr.bf16.mxu0 0
        %2571 = vmatpush2.bf16.msra.mxu0 0
        %2572 = vmatprep.subr.bf16.mxu0 0
        %2573 = vmatpush2.bf16.msra.mxu0 0
        %2574 = vmatprep.subr.bf16.mxu0 0
        %2575 = vmatpush2.bf16.msra.mxu0 0
        %2576 = vmatprep.subr.bf16.mxu0 0
        %2577 = vmatpush2.bf16.msra.mxu0 0
        %2578 = vmatprep.subr.bf16.mxu0 0
        %2579 = vmatpush2.bf16.msra.mxu0 0
        %2580 = vmatprep.mubr.bf16.mxu0 0
        %2581 = vmatmul.mubr.bf16.gmra.mxu0 %v2495
        %v2582 = vpop.f32.mrf.mxu0
        %v2583 = vadd.f32 %v2499, %v2582
        %v2584 = vpop.f32.mrf.mxu0
        %v2585 = vpop.f32.mrf.mxu0
        %v2586 = vpop.f32.mrf.mxu0
        %2587 = vdwg.mxu0
        %v2588 = vmul.f32 %v2583, %v2583
        %v2589 = vmul.f32 %v2583, %v2588
        %v2590 = vmul.f32 %v2589, 0.044715
        %v2591 = vadd.f32 %v2583, %v2590
        %v2592 = vmul.f32 %v2591, 0.7978846
        %v2593 = vtanh.pop %v2592
        %v2594 = vadd.f32 %v2593, 1.0
        %v2595 = vmul.f32 %v2594, 0.5
        %v2596 = vmul.f32 %v2583, %v2595
        %v2597 = vpack.c.bf16 %v2596, %v2596
        %v2598 = vlaneseq
        %v2599 = vshrl.u32 %v2598, 7
        %v2600 = vsub.s32 7, %v2599
        %v2601 = vrot.slane %v1644, %v2600
        %v2618 = vunpack.c.l.b16 %v1628
        %v2619 = vunpack.c.l.b16 %v1629
        %v2620 = vunpack.c.l.b16 %v1630
        %v2621 = vunpack.c.l.b16 %v1631
        %v2622 = vunpack.c.l.b16 %v1632
        %v2623 = vunpack.c.l.b16 %v1633
        %v2624 = vunpack.c.l.b16 %v1634
        %v2625 = vunpack.c.l.b16 %v1635
        %v2626 = vunpack.c.l.b16 %v1636
        %v2627 = vunpack.c.l.b16 %v1637
        %v2628 = vunpack.c.l.b16 %v1638
        %v2629 = vunpack.c.l.b16 %v1639
        %v2630 = vunpack.c.l.b16 %v1640
        %v2631 = vunpack.c.l.b16 %v1641
        %v2632 = vunpack.c.l.b16 %v1642
        %v2633 = vunpack.c.l.b16 %v1643
        %v2634 = vpack.c.b16 %v2619, %v2618
        %v2635 = vpack.c.b16 %v2621, %v2620
        %v2636 = vpack.c.b16 %v2623, %v2622
        %v2637 = vpack.c.b16 %v2625, %v2624
        %v2638 = vpack.c.b16 %v2627, %v2626
        %v2639 = vpack.c.b16 %v2629, %v2628
        %v2640 = vpack.c.b16 %v2631, %v2630
        %v2641 = vpack.c.b16 %v2633, %v2632
        %2650 = vmatprep.subr.bf16.mxu0 0
        %2651 = vmatpush1.bf16.msra.mxu0 %v2641
        %2652 = vmatprep.subr.bf16.mxu0 0
        %2653 = vmatpush1.bf16.msra.mxu0 %v2640
        %2654 = vmatprep.subr.bf16.mxu0 0
        %2655 = vmatpush1.bf16.msra.mxu0 %v2639
        %2656 = vmatprep.subr.bf16.mxu0 0
        %2657 = vmatpush1.bf16.msra.mxu0 %v2638
        %2658 = vmatprep.subr.bf16.mxu0 0
        %2659 = vmatpush1.bf16.msra.mxu0 %v2637
        %2660 = vmatprep.subr.bf16.mxu0 0
        %2661 = vmatpush1.bf16.msra.mxu0 %v2636
        %2662 = vmatprep.subr.bf16.mxu0 0
        %2663 = vmatpush1.bf16.msra.mxu0 %v2635
        %2664 = vmatprep.subr.bf16.mxu0 0
        %2665 = vmatpush1.bf16.msra.mxu0 %v2634
        %2666 = vmatprep.subr.bf16.mxu0 0
        %2667 = vmatpush2.bf16.msra.mxu0 0
        %2668 = vmatprep.subr.bf16.mxu0 0
        %2669 = vmatpush2.bf16.msra.mxu0 0
        %2670 = vmatprep.subr.bf16.mxu0 0
        %2671 = vmatpush2.bf16.msra.mxu0 0
        %2672 = vmatprep.subr.bf16.mxu0 0
        %2673 = vmatpush2.bf16.msra.mxu0 0
        %2674 = vmatprep.subr.bf16.mxu0 0
        %2675 = vmatpush2.bf16.msra.mxu0 0
        %2676 = vmatprep.subr.bf16.mxu0 0
        %2677 = vmatpush2.bf16.msra.mxu0 0
        %2678 = vmatprep.subr.bf16.mxu0 0
        %2679 = vmatpush2.bf16.msra.mxu0 0
        %2680 = vmatprep.subr.bf16.mxu0 0
        %2681 = vmatpush2.bf16.msra.mxu0 0
        %2682 = vmatprep.mubr.bf16.mxu0 0
        %2683 = vmatmul.mubr.bf16.gmra.mxu0 %v2597
        %v2684 = vpop.f32.mrf.mxu0
        %v2685 = vadd.f32 %v2601, %v2684
        %v2686 = vpop.f32.mrf.mxu0
        %v2687 = vpop.f32.mrf.mxu0
        %v2688 = vpop.f32.mrf.mxu0
        %2689 = vdwg.mxu0
        %v2690 = vadd.f32 %v1563, %v2480
        %v2691 = vadd.f32 %v2690, %v2685
        %v2692 = vld [vmem:[%s6] sm:$0x1]
        %v2693 = vld [vmem:[%s6 + $0x1] sm:$0x1]
        %2694 = vadd.xlane.f32.xlu0 %v2691
        %v2695 = vpop.xlane.xlu0 %2694
        %v2696 = vmul.f32 %v2695, 0.03125
        %v2697 = vsub.f32 %v2691, %v2696
        %v2698 = vsel %vm382, %v2697, 0.0
        %v2699 = vmul.f32 %v2698, %v2698
        %2700 = vadd.xlane.f32.xlu0 %v2699
        %v2701 = vpop.xlane.xlu0 %2700
        %v2702 = vmul.f32 %v2701, 0.03125
        %v2703 = vadd.f32 %v2702, 1e-05
        %v2704 = vrsqrt.pop %v2703
        %v2705 = vmul.f32 %v2697, %v2704
        %v2706 = vlaneseq
        %v2707 = vshrl.u32 %v2706, 7
        %v2708 = vsub.s32 0, %v2707
        %v2709 = vrot.slane %v2692, %v2708
        %v2710 = vmul.f32 %v2705, %v2709
        %v2711 = vlaneseq
        %v2712 = vshrl.u32 %v2711, 7
        %v2713 = vsub.s32 0, %v2712
        %v2714 = vrot.slane %v2693, %v2713
        %v2715 = vadd.f32 %v2710, %v2714
        %v2716 = vpack.c.bf16 %v2715, %v2715
        %v2717 = vld [vmem:[%s7] sm:$0xf]
        %v2718 = vld [vmem:[%s7 + $0x4] sm:$0xf]
        %v2719 = vld [vmem:[%s7 + $0x8] sm:$0xf]
        %v2720 = vld [vmem:[%s7 + $0xc] sm:$0xf]
        %v2721 = vld [vmem:[%s7 + $0x10] sm:$0xf]
        %v2722 = vld [vmem:[%s7 + $0x14] sm:$0xf]
        %v2723 = vld [vmem:[%s7 + $0x18] sm:$0xf]
        %v2724 = vld [vmem:[%s7 + $0x1c] sm:$0xf]
        %v2725 = vld [vmem:[%s7 + $0x20] sm:$0xf]
        %v2726 = vld [vmem:[%s7 + $0x24] sm:$0xf]
        %v2727 = vld [vmem:[%s7 + $0x28] sm:$0xf]
        %v2728 = vld [vmem:[%s7 + $0x2c] sm:$0xf]
        %v2729 = vld [vmem:[%s7 + $0x30] sm:$0xf]
        %v2730 = vld [vmem:[%s7 + $0x34] sm:$0xf]
        %v2731 = vld [vmem:[%s7 + $0x38] sm:$0xf]
        %v2732 = vld [vmem:[%s7 + $0x3c] sm:$0xf]
        %v2749 = vunpack.c.l.b16 %v2717
        %v2750 = vunpack.c.l.b16 %v2718
        %v2751 = vunpack.c.l.b16 %v2719
        %v2752 = vunpack.c.l.b16 %v2720
        %v2753 = vunpack.c.l.b16 %v2721
        %v2754 = vunpack.c.l.b16 %v2722
        %v2755 = vunpack.c.l.b16 %v2723
        %v2756 = vunpack.c.l.b16 %v2724
        %v2757 = vunpack.c.l.b16 %v2725
        %v2758 = vunpack.c.l.b16 %v2726
        %v2759 = vunpack.c.l.b16 %v2727
        %v2760 = vunpack.c.l.b16 %v2728
        %v2761 = vunpack.c.l.b16 %v2729
        %v2762 = vunpack.c.l.b16 %v2730
        %v2763 = vunpack.c.l.b16 %v2731
        %v2764 = vunpack.c.l.b16 %v2732
        %v2765 = vpack.c.b16 %v2750, %v2749
        %v2766 = vpack.c.b16 %v2752, %v2751
        %v2767 = vpack.c.b16 %v2754, %v2753
        %v2768 = vpack.c.b16 %v2756, %v2755
        %v2769 = vpack.c.b16 %v2758, %v2757
        %v2770 = vpack.c.b16 %v2760, %v2759
        %v2771 = vpack.c.b16 %v2762, %v2761
        %v2772 = vpack.c.b16 %v2764, %v2763
        %2781 = vmatprep.subr.bf16.mxu0 0
        %2782 = vmatpush1.bf16.msra.mxu0 %v2772
        %2783 = vmatprep.subr.bf16.mxu0 0
        %2784 = vmatpush1.bf16.msra.mxu0 %v2771
        %2785 = vmatprep.subr.bf16.mxu0 0
        %2786 = vmatpush1.bf16.msra.mxu0 %v2770
        %2787 = vmatprep.subr.bf16.mxu0 0
        %2788 = vmatpush1.bf16.msra.mxu0 %v2769
        %2789 = vmatprep.subr.bf16.mxu0 0
        %2790 = vmatpush1.bf16.msra.mxu0 %v2768
        %2791 = vmatprep.subr.bf16.mxu0 0
        %2792 = vmatpush1.bf16.msra.mxu0 %v2767
        %2793 = vmatprep.subr.bf16.mxu0 0
        %2794 = vmatpush1.bf16.msra.mxu0 %v2766
        %2795 = vmatprep.subr.bf16.mxu0 0
        %2796 = vmatpush1.bf16.msra.mxu0 %v2765
        %2797 = vmatprep.subr.bf16.mxu0 0
        %2798 = vmatpush2.bf16.msra.mxu0 0
        %2799 = vmatprep.subr.bf16.mxu0 0
        %2800 = vmatpush2.bf16.msra.mxu0 0
        %2801 = vmatprep.subr.bf16.mxu0 0
        %2802 = vmatpush2.bf16.msra.mxu0 0
        %2803 = vmatprep.subr.bf16.mxu0 0
        %2804 = vmatpush2.bf16.msra.mxu0 0
        %2805 = vmatprep.subr.bf16.mxu0 0
        %2806 = vmatpush2.bf16.msra.mxu0 0
        %2807 = vmatprep.subr.bf16.mxu0 0
        %2808 = vmatpush2.bf16.msra.mxu0 0
        %2809 = vmatprep.subr.bf16.mxu0 0
        %2810 = vmatpush2.bf16.msra.mxu0 0
        %2811 = vmatprep.subr.bf16.mxu0 0
        %2812 = vmatpush2.bf16.msra.mxu0 0
        %2813 = vmatprep.mubr.bf16.mxu0 0
        %2814 = vmatmul.mubr.bf16.gmra.mxu0 %v2716
        %v2815 = vpop.f32.mrf.mxu0
        %v2816 = vadd.f32 0.0, %v2815
        %v2817 = vpop.f32.mrf.mxu0
        %v2818 = vpop.f32.mrf.mxu0
        %v2819 = vpop.f32.mrf.mxu0
        %2820 = vdwg.mxu0
        %2821 = vst [vmem:[%s322] sm:$0xff] %v2816
        %s2822 = sand.u32 %s209, 1
        %s2823 = scalar_lea.sflag [#allocation4], %s2822
        %s2824 = sand.u32 %s209, 1
        %s2825 = smul.addr %s2824, 8
        %s2826 = scalar_lea.vmem [#allocation5], %s2825
        // Predicated region
        $region57: #{stablelm_forward.1} parent=51 // pred_check
          %p2827 = pneg %p219
        $region58: #{stablelm_forward.1} parent=51 // pred_check_branch
          %2829 = sbr.rel (%p2827) target = $region60
        $region59: #{stablelm_forward.1} parent=51 // pred_region
          %s2831 = ssub.s32 128, 128
          %2832 = vsyncadd %s2823, %s2831
          %s2833 = smul.addr %s23, 128
          %s2834 = scalar_lea.hbm %s8, %s2833
          %s2836 = sshll.u32 %s2826, 4
          %s2837 = int_to_ptr.vmem [resolvable:$true] %s2836
          %2839 = dma.vmem_to_hbm [thread:$0]  %s2837, 128, %s2834, %s2823
        $region60: #{stablelm_forward.1} parent=51 // pred_fallthru
          _
      $region52: #{stablelm_forward.1} parent=5 // pred_fallthru
        _
      %p2840 = scmp.le.s32.totalorder 2, %s18
      // Predicated region
      $region61: #{stablelm_forward.1} parent=5 // pred_check
        %p2841 = pneg %p2840
      $region62: #{stablelm_forward.1} parent=5 // pred_check_branch
        %2843 = sbr.rel (%p2841) target = $region64
      $region63: #{stablelm_forward.1} parent=5 // pred_region
        %s2844 = ssub.s32 %s18, 2
        // Predicated region
        $region65: #{stablelm_forward.1} parent=63 // pred_check
          %p2845 = pneg %p225
        $region66: #{stablelm_forward.1} parent=63 // pred_check_branch
          %2847 = sbr.rel (%p2845) target = $region68
        $region67: #{stablelm_forward.1} parent=63 // pred_region
          %s2848 = sand.u32 %s210, 1
          %s2849 = scalar_lea.sflag [#allocation4], %s2848
          %s2850 = sand.u32 %s210, 1
          %s2851 = smul.addr %s2850, 8
          %s2852 = scalar_lea.vmem [#allocation5], %s2851
          %2853 = dma.done %s2849, 128
        $region68: #{stablelm_forward.1} parent=63 // pred_fallthru
          _
      $region64: #{stablelm_forward.1} parent=5 // pred_fallthru
        _
    $region6: #{stablelm_forward.1} parent=1 // loop_footer
      %s22 = sadd.s32 1, %s18
    $region7: #{stablelm_forward.1} parent=1 // loop_footer_branch
      %17 = sbr.rel target = $region3
    $region8: #{stablelm_forward.1} parent=1 // loop_exit
      _
    %2854 = vsyncpa [#allocation3], 1
    %s2855 = scalar_lea.sflag [#allocation3], 1
    %2856 = vsyncpa %s2855, 1
    %2857 = vsyncpa [#allocation4], 1
    %s2858 = scalar_lea.sflag [#allocation4], 1
    %2859 = vsyncpa %s2858, 1

</llo_original>
